<compile_context>
chip_gen: v7x
topology: tpu7x:2x2x1
jax: 0.10.0
libtpu: 0.0.40
codegen_flags: <defaults>
</compile_context>

<pallas_src>
import math

import jax
import jax.numpy as jnp
import numpy as np
from jax import lax
from jax.experimental import pallas as pl
from jax.experimental.pallas import tpu as pltpu

TB = 8  # images per grid step (one sublane tile)


# ---------------------------------------------------------------------------
# Fused kernel
# ---------------------------------------------------------------------------
def _lenet_fused_kernel(x_ref, a1_ref, b1_ref, a2_ref, b2_ref,
                        w1p_ref, fb1_ref, w2t_ref, fb2_ref, out_ref):
    tb = x_ref.shape[1]  # batch tile (sublanes)

    # ---- conv1 (1->6, 5x5) + relu + 2x2 maxpool -------------------------------------
    # acc1 rows = (h_out 0..23, b); lanes = pool_w_offset*128 + pooled_w*6 + chan
    acc1 = jnp.zeros((24 * tb, 256), jnp.float32)
    for kh in range(5):  # static unroll over kernel rows
        slab = x_ref[pl.ds(kh, 24), :, :].reshape(24 * tb, 28)
        acc1 = acc1 + jnp.dot(slab, a1_ref[kh], preferred_element_type=jnp.float32)
    y1 = acc1.reshape(12, 2, tb, 256)
    y1 = jnp.maximum(y1[:, 0], y1[:, 1])                   # pool over H  -> [12, tb, 256]
    y1 = jnp.maximum(y1[:, :, 0:128], y1[:, :, 128:256])   # pool over W  -> [12, tb, 128]
    h1 = jnp.maximum(y1[:, :, 0:72] + b1_ref[...], 0.0)    # [12, tb, 72]; lane = w*6 + c

    # ---- conv2 (6->16, 5x5) + relu + 2x2 maxpool ------------------------------------
    acc2 = jnp.zeros((8 * tb, 256), jnp.float32)
    for kh in range(5):
        slab = h1[kh:kh + 8].reshape(8 * tb, 72)
        acc2 = acc2 + jnp.dot(slab, a2_ref[kh], preferred_element_type=jnp.float32)
    y2 = acc2.reshape(4, 2, tb, 256)
    y2 = jnp.maximum(y2[:, 0], y2[:, 1])                   # pool over H  -> [4, tb, 256]
    y2 = jnp.maximum(y2[:, :, 0:128], y2[:, :, 128:256])   # pool over W  -> [4, tb, 128]
    h2 = jnp.maximum(y2[:, :, 0:64] + b2_ref[...], 0.0)    # [4, tb, 64]; lane = w*16 + c

    # ---- fc1 (256->64): NCHW flatten folded into the permuted weight slabs ----------
    accf = jnp.zeros((tb, 64), jnp.float32)
    for hi in range(4):
        accf = accf + jnp.dot(h2[hi], w1p_ref[hi], preferred_element_type=jnp.float32)
    f1 = jnp.maximum(accf + fb1_ref[...], 0.0)             # [tb, 64]

    # ---- fc2 (64->10) + log_softmax --------------------------------------------------
    logits = jnp.dot(f1, w2t_ref[...], preferred_element_type=jnp.float32) + fb2_ref[...]
    m = jnp.max(logits, axis=-1, keepdims=True)
    s = logits - m
    lse = jnp.log(jnp.sum(jnp.exp(s), axis=-1, keepdims=True))
    out_ref[...] = s - lse


# ---------------------------------------------------------------------------
# One-time parameter repacking (tiny XLA glue, runs once per call under jit)
# ---------------------------------------------------------------------------
def _prep_weights(params):
    w1, b1, w2, b2, fw1, fb1, fw2, fb2 = [p.astype(jnp.float32) for p in params]
    kw = jnp.arange(5)

    # conv1 banded matrices: A1[kh, w_in, pj*128 + j*6 + c] = w1[c, 0, kh, w_in - 2j - pj]
    w1s = w1.reshape(6, 5, 5)                                                  # [c, kh, kw]
    w_in = jnp.arange(28)
    pj = jnp.arange(2)
    j = jnp.arange(12)
    tgt1 = 2 * j[None, :, None] + pj[:, None, None] + kw[None, None, :]        # [2,12,5]
    m1 = (w_in[:, None, None, None] == tgt1[None]).astype(jnp.float32)         # [28,2,12,5]
    a1 = jnp.einsum('wpjk,chk->hwpjc', m1, w1s)                                # [5,28,2,12,6]
    a1 = jnp.pad(a1.reshape(5, 28, 2, 72), ((0, 0), (0, 0), (0, 0), (0, 56)))
    a1 = a1.reshape(5, 28, 256)

    # conv2 banded matrices: A2[kh, j*6 + ci, pj*128 + jj*16 + co] = w2[co, ci, kh, j - 2jj - pj]
    jin = jnp.arange(12)
    jj = jnp.arange(4)
    tgt2 = 2 * jj[None, :, None] + pj[:, None, None] + kw[None, None, :]       # [2,4,5]
    m2 = (jin[:, None, None, None] == tgt2[None]).astype(jnp.float32)          # [12,2,4,5]
    a2 = jnp.einsum('jpqk,oihk->hjipqo', m2, w2)                               # [5,12,6,2,4,16]
    a2 = jnp.pad(a2.reshape(5, 72, 2, 64), ((0, 0), (0, 0), (0, 0), (0, 64)))
    a2 = a2.reshape(5, 72, 256)

    b1l = jnp.tile(b1, 12).reshape(1, 72)        # lane j*6 + c    -> b1[c]
    b2l = jnp.tile(b2, 4).reshape(1, 64)         # lane jj*16 + co -> b2[co]

    # fc1: permute columns so kernel layout (hi, jj*16+co) matches NCHW flatten co*16 + hi*4 + jj
    w1p = fw1.reshape(64, 16, 4, 4).transpose(2, 3, 1, 0).reshape(4, 64, 64)
    return (a1, b1l, a2, b2l, w1p, fb1.reshape(1, 64), fw2.T, fb2.reshape(1, 10))


# ---------------------------------------------------------------------------
# Forward pass
# ---------------------------------------------------------------------------
def net_forward(x, params):
    """x: [B, 1, 28, 28] float32 -> [B, 10] log-probabilities."""
    B = x.shape[0]
    a1, b1l, a2, b2l, w1p, fb1r, w2t, fb2r = _prep_weights(params)

    bp = ((B + TB - 1) // TB) * TB
    xt = jnp.transpose(x.reshape(B, 28, 28).astype(jnp.float32), (1, 0, 2))   # [28, B, 28]
    if bp != B:
        xt = jnp.pad(xt, ((0, 0), (0, bp - B), (0, 0)))

    out = pl.pallas_call(
        _lenet_fused_kernel,
        out_shape=jax.ShapeDtypeStruct((bp, 10), jnp.float32),
        grid_spec=pltpu.PrefetchScalarGridSpec(
            num_scalar_prefetch=0,
            grid=(bp // TB,),
            in_specs=[
                pl.BlockSpec((28, TB, 28), lambda i: (0, i, 0)),    # x tile (gridded over batch)
                pl.BlockSpec((5, 28, 256), lambda i: (0, 0, 0)),    # conv1 banded weights (resident)
                pl.BlockSpec((1, 72), lambda i: (0, 0)),            # conv1 bias (lane layout)
                pl.BlockSpec((5, 72, 256), lambda i: (0, 0, 0)),    # conv2 banded weights (resident)
                pl.BlockSpec((1, 64), lambda i: (0, 0)),            # conv2 bias
                pl.BlockSpec((4, 64, 64), lambda i: (0, 0, 0)),     # fc1 (flatten-permuted)
                pl.BlockSpec((1, 64), lambda i: (0, 0)),            # fc1 bias
                pl.BlockSpec((64, 10), lambda i: (0, 0)),           # fc2 (transposed)
                pl.BlockSpec((1, 10), lambda i: (0, 0)),            # fc2 bias
            ],
            out_specs=pl.BlockSpec((TB, 10), lambda i: (i, 0)),
        ),
        compiler_params=pltpu.CompilerParams(
            dimension_semantics=("parallel",),
            vmem_limit_bytes=32 * 1024 * 1024,
        ),
    )(xt, a1, b1l, a2, b2l, w1p, fb1r, w2t, fb2r)
    return out[:B]


# ---------------------------------------------------------------------------
# Deterministic parameter init (PyTorch-default-like uniform(-1/sqrt(fan_in), ..))
# ---------------------------------------------------------------------------
def init_params(key):
    ks = jax.random.split(key, 8)

    def u(k, shape, fan_in):
        bound = 1.0 / math.sqrt(fan_in)
        return jax.random.uniform(k, shape, jnp.float32, -bound, bound)

    w1 = u(ks[0], (6, 1, 5, 5), 25)
    b1 = u(ks[1], (6,), 25)
    w2 = u(ks[2], (16, 6, 5, 5), 150)
    b2 = u(ks[3], (16,), 150)
    fw1 = u(ks[4], (64, 256), 256)
    fb1 = u(ks[5], (64,), 256)
    fw2 = u(ks[6], (10, 64), 64)
    fb2 = u(ks[7], (10,), 64)
    return (w1, b1, w2, b2, fw1, fb1, fw2, fb2)


# ---------------------------------------------------------------------------
# Pure-JAX reference (mirrors the PyTorch forward) for a correctness check
# ---------------------------------------------------------------------------
def reference_forward(x, params):
    w1, b1, w2, b2, fw1, fb1, fw2, fb2 = params
    dn = ("NCHW", "OIHW", "NCHW")
    y = lax.conv_general_dilated(x, w1, (1, 1), "VALID", dimension_numbers=dn)
    y = jnp.maximum(y + b1[None, :, None, None], 0.0)
    y = lax.reduce_window(y, -jnp.inf, lax.max, (1, 1, 2, 2), (1, 1, 2, 2), "VALID")
    y = lax.conv_general_dilated(y, w2, (1, 1), "VALID", dimension_numbers=dn)
    y = jnp.maximum(y + b2[None, :, None, None], 0.0)
    y = lax.reduce_window(y, -jnp.inf, lax.max, (1, 1, 2, 2), (1, 1, 2, 2), "VALID")
    y = y.reshape(y.shape[0], -1)                 # == x.view(-1, 256) (NCHW order)
    y = jnp.maximum(y @ fw1.T + fb1, 0.0)
    y = y @ fw2.T + fb2
    return jax.nn.log_softmax(y, axis=1)          # F.log_softmax default dim for 2D is 1


if __name__ == "__main__":
    key = jax.random.PRNGKey(0)
    kx, kp = jax.random.split(key)

    # smallest shape consistent with the module: fc1 in-features 256 = 16*4*4 => 28x28 input
    x = jax.random.normal(kx, (2, 1, 28, 28), jnp.float32)
    params = init_params(kp)

    out = jax.block_until_ready(jax.jit(net_forward)(x, params))
    assert out.shape == (2, 10) and out.dtype == jnp.float32

    ref = jax.block_until_ready(jax.jit(reference_forward)(x, params))
    np.testing.assert_allclose(np.asarray(out), np.asarray(ref), atol=2e-2, rtol=2e-2)

    print("KERNEL_OK")
</pallas_src>

<mosaic_0001>
module attributes {stable_mosaic.version = 11 : i64} {
  func.func @_lenet_fused_kernel(%arg0: i32, %arg1: memref<28x8x28xf32, #tpu.memory_space<vmem>>, %arg2: memref<5x28x256xf32, #tpu.memory_space<vmem>>, %arg3: memref<1x72xf32, #tpu.memory_space<vmem>>, %arg4: memref<5x72x256xf32, #tpu.memory_space<vmem>>, %arg5: memref<1x64xf32, #tpu.memory_space<vmem>>, %arg6: memref<4x64x64xf32, #tpu.memory_space<vmem>>, %arg7: memref<1x64xf32, #tpu.memory_space<vmem>>, %arg8: memref<64x10xf32, #tpu.memory_space<vmem>>, %arg9: memref<1x10xf32, #tpu.memory_space<vmem>>, %arg10: memref<8x10xf32, #tpu.memory_space<vmem>>) attributes {dimension_semantics = [#tpu.dimension_semantics<parallel>], iteration_bounds = array<i64: 1>, scalar_prefetch = 0 : i64, scratch_operands = 0 : i64, tpu.core_type = #tpu.core_type<tc>, window_params = [{transform_indices = @transform_0, window_bounds = array<i64: 28, 8, 28>}, {pipeline_mode = #tpu.pipeline_mode<synchronous>, transform_indices = @transform_1, window_bounds = array<i64: 5, 28, 256>}, {pipeline_mode = #tpu.pipeline_mode<synchronous>, transform_indices = @transform_2, window_bounds = array<i64: 1, 72>}, {pipeline_mode = #tpu.pipeline_mode<synchronous>, transform_indices = @transform_3, window_bounds = array<i64: 5, 72, 256>}, {pipeline_mode = #tpu.pipeline_mode<synchronous>, transform_indices = @transform_4, window_bounds = array<i64: 1, 64>}, {pipeline_mode = #tpu.pipeline_mode<synchronous>, transform_indices = @transform_5, window_bounds = array<i64: 4, 64, 64>}, {pipeline_mode = #tpu.pipeline_mode<synchronous>, transform_indices = @transform_6, window_bounds = array<i64: 1, 64>}, {pipeline_mode = #tpu.pipeline_mode<synchronous>, transform_indices = @transform_7, window_bounds = array<i64: 64, 10>}, {pipeline_mode = #tpu.pipeline_mode<synchronous>, transform_indices = @transform_8, window_bounds = array<i64: 1, 10>}, {transform_indices = @transform_9, window_bounds = array<i64: 8, 10>}]} {
    %cst = arith.constant 0.000000e+00 : f32
    %0 = vector.broadcast %cst : f32 to vector<192x256xf32>
    %c0 = arith.constant 0 : index
    %c0_0 = arith.constant 0 : index
    %c0_1 = arith.constant 0 : index
    %1 = vector.load %arg1[%c0, %c0_0, %c0_1] : memref<28x8x28xf32, #tpu.memory_space<vmem>>, vector<24x8x28xf32>
    %2 = vector.shape_cast %1 : vector<24x8x28xf32> to vector<192x28xf32>
    %c0_2 = arith.constant 0 : index
    %c0_3 = arith.constant 0 : index
    %c0_4 = arith.constant 0 : index
    %3 = vector.load %arg2[%c0_2, %c0_3, %c0_4] : memref<5x28x256xf32, #tpu.memory_space<vmem>>, vector<1x28x256xf32>
    %4 = vector.shape_cast %3 : vector<1x28x256xf32> to vector<28x256xf32>
    %cst_5 = arith.constant dense<0.000000e+00> : vector<192x256xf32>
    %5 = tpu.matmul %2, %4, %cst_5 {dimension_numbers = #tpu.dot_dimension_numbers<[1], [0], [0], [1], [0, 0, 1, 1], [], []>} : vector<192x28xf32>, vector<28x256xf32>, vector<192x256xf32> -> vector<192x256xf32>
    %6 = arith.addf %0, %5 : vector<192x256xf32>
    %c1 = arith.constant 1 : index
    %c0_6 = arith.constant 0 : index
    %c0_7 = arith.constant 0 : index
    %7 = vector.load %arg1[%c1, %c0_6, %c0_7] : memref<28x8x28xf32, #tpu.memory_space<vmem>>, vector<24x8x28xf32>
    %8 = vector.shape_cast %7 : vector<24x8x28xf32> to vector<192x28xf32>
    %c1_8 = arith.constant 1 : index
    %c0_9 = arith.constant 0 : index
    %c0_10 = arith.constant 0 : index
    %9 = vector.load %arg2[%c1_8, %c0_9, %c0_10] : memref<5x28x256xf32, #tpu.memory_space<vmem>>, vector<1x28x256xf32>
    %10 = vector.shape_cast %9 : vector<1x28x256xf32> to vector<28x256xf32>
    %cst_11 = arith.constant dense<0.000000e+00> : vector<192x256xf32>
    %11 = tpu.matmul %8, %10, %cst_11 {dimension_numbers = #tpu.dot_dimension_numbers<[1], [0], [0], [1], [0, 0, 1, 1], [], []>} : vector<192x28xf32>, vector<28x256xf32>, vector<192x256xf32> -> vector<192x256xf32>
    %12 = arith.addf %6, %11 : vector<192x256xf32>
    %c2 = arith.constant 2 : index
    %c0_12 = arith.constant 0 : index
    %c0_13 = arith.constant 0 : index
    %13 = vector.load %arg1[%c2, %c0_12, %c0_13] : memref<28x8x28xf32, #tpu.memory_space<vmem>>, vector<24x8x28xf32>
    %14 = vector.shape_cast %13 : vector<24x8x28xf32> to vector<192x28xf32>
    %c2_14 = arith.constant 2 : index
    %c0_15 = arith.constant 0 : index
    %c0_16 = arith.constant 0 : index
    %15 = vector.load %arg2[%c2_14, %c0_15, %c0_16] : memref<5x28x256xf32, #tpu.memory_space<vmem>>, vector<1x28x256xf32>
    %16 = vector.shape_cast %15 : vector<1x28x256xf32> to vector<28x256xf32>
    %cst_17 = arith.constant dense<0.000000e+00> : vector<192x256xf32>
    %17 = tpu.matmul %14, %16, %cst_17 {dimension_numbers = #tpu.dot_dimension_numbers<[1], [0], [0], [1], [0, 0, 1, 1], [], []>} : vector<192x28xf32>, vector<28x256xf32>, vector<192x256xf32> -> vector<192x256xf32>
    %18 = arith.addf %12, %17 : vector<192x256xf32>
    %c3 = arith.constant 3 : index
    %c0_18 = arith.constant 0 : index
    %c0_19 = arith.constant 0 : index
    %19 = vector.load %arg1[%c3, %c0_18, %c0_19] : memref<28x8x28xf32, #tpu.memory_space<vmem>>, vector<24x8x28xf32>
    %20 = vector.shape_cast %19 : vector<24x8x28xf32> to vector<192x28xf32>
    %c3_20 = arith.constant 3 : index
    %c0_21 = arith.constant 0 : index
    %c0_22 = arith.constant 0 : index
    %21 = vector.load %arg2[%c3_20, %c0_21, %c0_22] : memref<5x28x256xf32, #tpu.memory_space<vmem>>, vector<1x28x256xf32>
    %22 = vector.shape_cast %21 : vector<1x28x256xf32> to vector<28x256xf32>
    %cst_23 = arith.constant dense<0.000000e+00> : vector<192x256xf32>
    %23 = tpu.matmul %20, %22, %cst_23 {dimension_numbers = #tpu.dot_dimension_numbers<[1], [0], [0], [1], [0, 0, 1, 1], [], []>} : vector<192x28xf32>, vector<28x256xf32>, vector<192x256xf32> -> vector<192x256xf32>
    %24 = arith.addf %18, %23 : vector<192x256xf32>
    %c4 = arith.constant 4 : index
    %c0_24 = arith.constant 0 : index
    %c0_25 = arith.constant 0 : index
    %25 = vector.load %arg1[%c4, %c0_24, %c0_25] : memref<28x8x28xf32, #tpu.memory_space<vmem>>, vector<24x8x28xf32>
    %26 = vector.shape_cast %25 : vector<24x8x28xf32> to vector<192x28xf32>
    %c4_26 = arith.constant 4 : index
    %c0_27 = arith.constant 0 : index
    %c0_28 = arith.constant 0 : index
    %27 = vector.load %arg2[%c4_26, %c0_27, %c0_28] : memref<5x28x256xf32, #tpu.memory_space<vmem>>, vector<1x28x256xf32>
    %28 = vector.shape_cast %27 : vector<1x28x256xf32> to vector<28x256xf32>
    %cst_29 = arith.constant dense<0.000000e+00> : vector<192x256xf32>
    %29 = tpu.matmul %26, %28, %cst_29 {dimension_numbers = #tpu.dot_dimension_numbers<[1], [0], [0], [1], [0, 0, 1, 1], [], []>} : vector<192x28xf32>, vector<28x256xf32>, vector<192x256xf32> -> vector<192x256xf32>
    %30 = arith.addf %24, %29 : vector<192x256xf32>
    %31 = vector.shape_cast %30 : vector<192x256xf32> to vector<12x2x8x256xf32>
    %32 = vector.extract_strided_slice %31 {offsets = [0, 0, 0, 0], sizes = [12, 1, 8, 256], strides = [1, 1, 1, 1]} : vector<12x2x8x256xf32> to vector<12x1x8x256xf32>
    %33 = vector.shape_cast %32 : vector<12x1x8x256xf32> to vector<12x8x256xf32>
    %34 = vector.extract_strided_slice %31 {offsets = [0, 1, 0, 0], sizes = [12, 1, 8, 256], strides = [1, 1, 1, 1]} : vector<12x2x8x256xf32> to vector<12x1x8x256xf32>
    %35 = vector.shape_cast %34 : vector<12x1x8x256xf32> to vector<12x8x256xf32>
    %36 = arith.maximumf %33, %35 : vector<12x8x256xf32>
    %37 = vector.extract_strided_slice %36 {offsets = [0, 0, 0], sizes = [12, 8, 128], strides = [1, 1, 1]} : vector<12x8x256xf32> to vector<12x8x128xf32>
    %38 = vector.extract_strided_slice %36 {offsets = [0, 0, 128], sizes = [12, 8, 128], strides = [1, 1, 1]} : vector<12x8x256xf32> to vector<12x8x128xf32>
    %39 = arith.maximumf %37, %38 : vector<12x8x128xf32>
    %40 = vector.extract_strided_slice %39 {offsets = [0, 0, 0], sizes = [12, 8, 72], strides = [1, 1, 1]} : vector<12x8x128xf32> to vector<12x8x72xf32>
    %c0_30 = arith.constant 0 : index
    %c0_31 = arith.constant 0 : index
    %41 = vector.load %arg3[%c0_30, %c0_31] : memref<1x72xf32, #tpu.memory_space<vmem>>, vector<1x72xf32>
    %42 = vector.shape_cast %41 : vector<1x72xf32> to vector<1x1x72xf32>
    %43 = vector.broadcast %42 : vector<1x1x72xf32> to vector<12x8x72xf32>
    %44 = arith.addf %40, %43 : vector<12x8x72xf32>
    %cst_32 = arith.constant 0.000000e+00 : f32
    %45 = vector.broadcast %cst_32 : f32 to vector<12x8x72xf32>
    %46 = arith.maximumf %44, %45 : vector<12x8x72xf32>
    %cst_33 = arith.constant 0.000000e+00 : f32
    %47 = vector.broadcast %cst_33 : f32 to vector<64x256xf32>
    %48 = vector.extract_strided_slice %46 {offsets = [0, 0, 0], sizes = [8, 8, 72], strides = [1, 1, 1]} : vector<12x8x72xf32> to vector<8x8x72xf32>
    %49 = vector.shape_cast %48 : vector<8x8x72xf32> to vector<64x72xf32>
    %c0_34 = arith.constant 0 : index
    %c0_35 = arith.constant 0 : index
    %c0_36 = arith.constant 0 : index
    %50 = vector.load %arg4[%c0_34, %c0_35, %c0_36] : memref<5x72x256xf32, #tpu.memory_space<vmem>>, vector<1x72x256xf32>
    %51 = vector.shape_cast %50 : vector<1x72x256xf32> to vector<72x256xf32>
    %cst_37 = arith.constant dense<0.000000e+00> : vector<64x256xf32>
    %52 = tpu.matmul %49, %51, %cst_37 {dimension_numbers = #tpu.dot_dimension_numbers<[1], [0], [0], [1], [0, 0, 1, 1], [], []>} : vector<64x72xf32>, vector<72x256xf32>, vector<64x256xf32> -> vector<64x256xf32>
    %53 = arith.addf %47, %52 : vector<64x256xf32>
    %54 = vector.extract_strided_slice %46 {offsets = [1, 0, 0], sizes = [8, 8, 72], strides = [1, 1, 1]} : vector<12x8x72xf32> to vector<8x8x72xf32>
    %55 = vector.shape_cast %54 : vector<8x8x72xf32> to vector<64x72xf32>
    %c1_38 = arith.constant 1 : index
    %c0_39 = arith.constant 0 : index
    %c0_40 = arith.constant 0 : index
    %56 = vector.load %arg4[%c1_38, %c0_39, %c0_40] : memref<5x72x256xf32, #tpu.memory_space<vmem>>, vector<1x72x256xf32>
    %57 = vector.shape_cast %56 : vector<1x72x256xf32> to vector<72x256xf32>
    %cst_41 = arith.constant dense<0.000000e+00> : vector<64x256xf32>
    %58 = tpu.matmul %55, %57, %cst_41 {dimension_numbers = #tpu.dot_dimension_numbers<[1], [0], [0], [1], [0, 0, 1, 1], [], []>} : vector<64x72xf32>, vector<72x256xf32>, vector<64x256xf32> -> vector<64x256xf32>
    %59 = arith.addf %53, %58 : vector<64x256xf32>
    %60 = vector.extract_strided_slice %46 {offsets = [2, 0, 0], sizes = [8, 8, 72], strides = [1, 1, 1]} : vector<12x8x72xf32> to vector<8x8x72xf32>
    %61 = vector.shape_cast %60 : vector<8x8x72xf32> to vector<64x72xf32>
    %c2_42 = arith.constant 2 : index
    %c0_43 = arith.constant 0 : index
    %c0_44 = arith.constant 0 : index
    %62 = vector.load %arg4[%c2_42, %c0_43, %c0_44] : memref<5x72x256xf32, #tpu.memory_space<vmem>>, vector<1x72x256xf32>
    %63 = vector.shape_cast %62 : vector<1x72x256xf32> to vector<72x256xf32>
    %cst_45 = arith.constant dense<0.000000e+00> : vector<64x256xf32>
    %64 = tpu.matmul %61, %63, %cst_45 {dimension_numbers = #tpu.dot_dimension_numbers<[1], [0], [0], [1], [0, 0, 1, 1], [], []>} : vector<64x72xf32>, vector<72x256xf32>, vector<64x256xf32> -> vector<64x256xf32>
    %65 = arith.addf %59, %64 : vector<64x256xf32>
    %66 = vector.extract_strided_slice %46 {offsets = [3, 0, 0], sizes = [8, 8, 72], strides = [1, 1, 1]} : vector<12x8x72xf32> to vector<8x8x72xf32>
    %67 = vector.shape_cast %66 : vector<8x8x72xf32> to vector<64x72xf32>
    %c3_46 = arith.constant 3 : index
    %c0_47 = arith.constant 0 : index
    %c0_48 = arith.constant 0 : index
    %68 = vector.load %arg4[%c3_46, %c0_47, %c0_48] : memref<5x72x256xf32, #tpu.memory_space<vmem>>, vector<1x72x256xf32>
    %69 = vector.shape_cast %68 : vector<1x72x256xf32> to vector<72x256xf32>
    %cst_49 = arith.constant dense<0.000000e+00> : vector<64x256xf32>
    %70 = tpu.matmul %67, %69, %cst_49 {dimension_numbers = #tpu.dot_dimension_numbers<[1], [0], [0], [1], [0, 0, 1, 1], [], []>} : vector<64x72xf32>, vector<72x256xf32>, vector<64x256xf32> -> vector<64x256xf32>
    %71 = arith.addf %65, %70 : vector<64x256xf32>
    %72 = vector.extract_strided_slice %46 {offsets = [4, 0, 0], sizes = [8, 8, 72], strides = [1, 1, 1]} : vector<12x8x72xf32> to vector<8x8x72xf32>
    %73 = vector.shape_cast %72 : vector<8x8x72xf32> to vector<64x72xf32>
    %c4_50 = arith.constant 4 : index
    %c0_51 = arith.constant 0 : index
    %c0_52 = arith.constant 0 : index
    %74 = vector.load %arg4[%c4_50, %c0_51, %c0_52] : memref<5x72x256xf32, #tpu.memory_space<vmem>>, vector<1x72x256xf32>
    %75 = vector.shape_cast %74 : vector<1x72x256xf32> to vector<72x256xf32>
    %cst_53 = arith.constant dense<0.000000e+00> : vector<64x256xf32>
    %76 = tpu.matmul %73, %75, %cst_53 {dimension_numbers = #tpu.dot_dimension_numbers<[1], [0], [0], [1], [0, 0, 1, 1], [], []>} : vector<64x72xf32>, vector<72x256xf32>, vector<64x256xf32> -> vector<64x256xf32>
    %77 = arith.addf %71, %76 : vector<64x256xf32>
    %78 = vector.shape_cast %77 : vector<64x256xf32> to vector<4x2x8x256xf32>
    %79 = vector.extract_strided_slice %78 {offsets = [0, 0, 0, 0], sizes = [4, 1, 8, 256], strides = [1, 1, 1, 1]} : vector<4x2x8x256xf32> to vector<4x1x8x256xf32>
    %80 = vector.shape_cast %79 : vector<4x1x8x256xf32> to vector<4x8x256xf32>
    %81 = vector.extract_strided_slice %78 {offsets = [0, 1, 0, 0], sizes = [4, 1, 8, 256], strides = [1, 1, 1, 1]} : vector<4x2x8x256xf32> to vector<4x1x8x256xf32>
    %82 = vector.shape_cast %81 : vector<4x1x8x256xf32> to vector<4x8x256xf32>
    %83 = arith.maximumf %80, %82 : vector<4x8x256xf32>
    %84 = vector.extract_strided_slice %83 {offsets = [0, 0, 0], sizes = [4, 8, 128], strides = [1, 1, 1]} : vector<4x8x256xf32> to vector<4x8x128xf32>
    %85 = vector.extract_strided_slice %83 {offsets = [0, 0, 128], sizes = [4, 8, 128], strides = [1, 1, 1]} : vector<4x8x256xf32> to vector<4x8x128xf32>
    %86 = arith.maximumf %84, %85 : vector<4x8x128xf32>
    %87 = vector.extract_strided_slice %86 {offsets = [0, 0, 0], sizes = [4, 8, 64], strides = [1, 1, 1]} : vector<4x8x128xf32> to vector<4x8x64xf32>
    %c0_54 = arith.constant 0 : index
    %c0_55 = arith.constant 0 : index
    %88 = vector.load %arg5[%c0_54, %c0_55] : memref<1x64xf32, #tpu.memory_space<vmem>>, vector<1x64xf32>
    %89 = vector.shape_cast %88 : vector<1x64xf32> to vector<1x1x64xf32>
    %90 = vector.broadcast %89 : vector<1x1x64xf32> to vector<4x8x64xf32>
    %91 = arith.addf %87, %90 : vector<4x8x64xf32>
    %cst_56 = arith.constant 0.000000e+00 : f32
    %92 = vector.broadcast %cst_56 : f32 to vector<4x8x64xf32>
    %93 = arith.maximumf %91, %92 : vector<4x8x64xf32>
    %cst_57 = arith.constant 0.000000e+00 : f32
    %94 = vector.broadcast %cst_57 : f32 to vector<8x64xf32>
    %95 = vector.extract_strided_slice %93 {offsets = [0, 0, 0], sizes = [1, 8, 64], strides = [1, 1, 1]} : vector<4x8x64xf32> to vector<1x8x64xf32>
    %96 = vector.shape_cast %95 : vector<1x8x64xf32> to vector<8x64xf32>
    %c0_58 = arith.constant 0 : index
    %c0_59 = arith.constant 0 : index
    %c0_60 = arith.constant 0 : index
    %97 = vector.load %arg6[%c0_58, %c0_59, %c0_60] : memref<4x64x64xf32, #tpu.memory_space<vmem>>, vector<1x64x64xf32>
    %98 = vector.shape_cast %97 : vector<1x64x64xf32> to vector<64x64xf32>
    %cst_61 = arith.constant dense<0.000000e+00> : vector<8x64xf32>
    %99 = tpu.matmul %96, %98, %cst_61 {dimension_numbers = #tpu.dot_dimension_numbers<[1], [0], [0], [1], [0, 0, 1, 1], [], []>} : vector<8x64xf32>, vector<64x64xf32>, vector<8x64xf32> -> vector<8x64xf32>
    %100 = arith.addf %94, %99 : vector<8x64xf32>
    %101 = vector.extract_strided_slice %93 {offsets = [1, 0, 0], sizes = [1, 8, 64], strides = [1, 1, 1]} : vector<4x8x64xf32> to vector<1x8x64xf32>
    %102 = vector.shape_cast %101 : vector<1x8x64xf32> to vector<8x64xf32>
    %c1_62 = arith.constant 1 : index
    %c0_63 = arith.constant 0 : index
    %c0_64 = arith.constant 0 : index
    %103 = vector.load %arg6[%c1_62, %c0_63, %c0_64] : memref<4x64x64xf32, #tpu.memory_space<vmem>>, vector<1x64x64xf32>
    %104 = vector.shape_cast %103 : vector<1x64x64xf32> to vector<64x64xf32>
    %cst_65 = arith.constant dense<0.000000e+00> : vector<8x64xf32>
    %105 = tpu.matmul %102, %104, %cst_65 {dimension_numbers = #tpu.dot_dimension_numbers<[1], [0], [0], [1], [0, 0, 1, 1], [], []>} : vector<8x64xf32>, vector<64x64xf32>, vector<8x64xf32> -> vector<8x64xf32>
    %106 = arith.addf %100, %105 : vector<8x64xf32>
    %107 = vector.extract_strided_slice %93 {offsets = [2, 0, 0], sizes = [1, 8, 64], strides = [1, 1, 1]} : vector<4x8x64xf32> to vector<1x8x64xf32>
    %108 = vector.shape_cast %107 : vector<1x8x64xf32> to vector<8x64xf32>
    %c2_66 = arith.constant 2 : index
    %c0_67 = arith.constant 0 : index
    %c0_68 = arith.constant 0 : index
    %109 = vector.load %arg6[%c2_66, %c0_67, %c0_68] : memref<4x64x64xf32, #tpu.memory_space<vmem>>, vector<1x64x64xf32>
    %110 = vector.shape_cast %109 : vector<1x64x64xf32> to vector<64x64xf32>
    %cst_69 = arith.constant dense<0.000000e+00> : vector<8x64xf32>
    %111 = tpu.matmul %108, %110, %cst_69 {dimension_numbers = #tpu.dot_dimension_numbers<[1], [0], [0], [1], [0, 0, 1, 1], [], []>} : vector<8x64xf32>, vector<64x64xf32>, vector<8x64xf32> -> vector<8x64xf32>
    %112 = arith.addf %106, %111 : vector<8x64xf32>
    %113 = vector.extract_strided_slice %93 {offsets = [3, 0, 0], sizes = [1, 8, 64], strides = [1, 1, 1]} : vector<4x8x64xf32> to vector<1x8x64xf32>
    %114 = vector.shape_cast %113 : vector<1x8x64xf32> to vector<8x64xf32>
    %c3_70 = arith.constant 3 : index
    %c0_71 = arith.constant 0 : index
    %c0_72 = arith.constant 0 : index
    %115 = vector.load %arg6[%c3_70, %c0_71, %c0_72] : memref<4x64x64xf32, #tpu.memory_space<vmem>>, vector<1x64x64xf32>
    %116 = vector.shape_cast %115 : vector<1x64x64xf32> to vector<64x64xf32>
    %cst_73 = arith.constant dense<0.000000e+00> : vector<8x64xf32>
    %117 = tpu.matmul %114, %116, %cst_73 {dimension_numbers = #tpu.dot_dimension_numbers<[1], [0], [0], [1], [0, 0, 1, 1], [], []>} : vector<8x64xf32>, vector<64x64xf32>, vector<8x64xf32> -> vector<8x64xf32>
    %118 = arith.addf %112, %117 : vector<8x64xf32>
    %c0_74 = arith.constant 0 : index
    %c0_75 = arith.constant 0 : index
    %119 = vector.load %arg7[%c0_74, %c0_75] : memref<1x64xf32, #tpu.memory_space<vmem>>, vector<1x64xf32>
    %120 = vector.broadcast %119 : vector<1x64xf32> to vector<8x64xf32>
    %121 = arith.addf %118, %120 : vector<8x64xf32>
    %cst_76 = arith.constant 0.000000e+00 : f32
    %122 = vector.broadcast %cst_76 : f32 to vector<8x64xf32>
    %123 = arith.maximumf %121, %122 : vector<8x64xf32>
    %c0_77 = arith.constant 0 : index
    %c0_78 = arith.constant 0 : index
    %124 = vector.load %arg8[%c0_77, %c0_78] : memref<64x10xf32, #tpu.memory_space<vmem>>, vector<64x10xf32>
    %cst_79 = arith.constant dense<0.000000e+00> : vector<8x10xf32>
    %125 = tpu.matmul %123, %124, %cst_79 {dimension_numbers = #tpu.dot_dimension_numbers<[1], [0], [0], [1], [0, 0, 1, 1], [], []>} : vector<8x64xf32>, vector<64x10xf32>, vector<8x10xf32> -> vector<8x10xf32>
    %c0_80 = arith.constant 0 : index
    %c0_81 = arith.constant 0 : index
    %126 = vector.load %arg9[%c0_80, %c0_81] : memref<1x10xf32, #tpu.memory_space<vmem>>, vector<1x10xf32>
    %127 = vector.broadcast %126 : vector<1x10xf32> to vector<8x10xf32>
    %128 = arith.addf %125, %127 : vector<8x10xf32>
    %cst_82 = arith.constant dense<0xFF800000> : vector<8xf32>
    %129 = vector.multi_reduction <maximumf>, %128, %cst_82 [1] : vector<8x10xf32> to vector<8xf32>
    %130 = vector.shape_cast %129 : vector<8xf32> to vector<8x1xf32>
    %131 = vector.broadcast %130 : vector<8x1xf32> to vector<8x10xf32>
    %132 = arith.subf %128, %131 : vector<8x10xf32>
    %133 = math.exp %132 : vector<8x10xf32>
    %cst_83 = arith.constant dense<0.000000e+00> : vector<8xf32>
    %134 = vector.multi_reduction <add>, %133, %cst_83 [1] : vector<8x10xf32> to vector<8xf32>
    %135 = vector.shape_cast %134 : vector<8xf32> to vector<8x1xf32>
    %136 = math.log %135 : vector<8x1xf32>
    %137 = vector.broadcast %136 : vector<8x1xf32> to vector<8x10xf32>
    %138 = arith.subf %132, %137 : vector<8x10xf32>
    %c0_84 = arith.constant 0 : index
    %c0_85 = arith.constant 0 : index
    %139 = vector.load %arg10[%c0_84, %c0_85] : memref<8x10xf32, #tpu.memory_space<vmem>>, vector<8x10xf32>
    tpu.vector_store %arg10[%c0_84, %c0_85], %138 {strides = array<i32>} : memref<8x10xf32, #tpu.memory_space<vmem>>, vector<8x10xf32>,
    return
  }
  func.func @transform_0(%arg0: i32) -> (i32, i32, i32) {
    %c0_i32 = arith.constant 0 : i32
    %c0_i32_0 = arith.constant 0 : i32
    %c0_i32_1 = arith.constant 0 : i32
    return %c0_i32, %arg0, %c0_i32_0 : i32, i32, i32
  }
  func.func @transform_1(%arg0: i32) -> (i32, i32, i32) {
    %c0_i32 = arith.constant 0 : i32
    %c0_i32_0 = arith.constant 0 : i32
    %c0_i32_1 = arith.constant 0 : i32
    %c0_i32_2 = arith.constant 0 : i32
    return %c0_i32, %c0_i32_0, %c0_i32_1 : i32, i32, i32
  }
  func.func @transform_2(%arg0: i32) -> (i32, i32) {
    %c0_i32 = arith.constant 0 : i32
    %c0_i32_0 = arith.constant 0 : i32
    %c0_i32_1 = arith.constant 0 : i32
    return %c0_i32, %c0_i32_0 : i32, i32
  }
  func.func @transform_3(%arg0: i32) -> (i32, i32, i32) {
    %c0_i32 = arith.constant 0 : i32
    %c0_i32_0 = arith.constant 0 : i32
    %c0_i32_1 = arith.constant 0 : i32
    %c0_i32_2 = arith.constant 0 : i32
    return %c0_i32, %c0_i32_0, %c0_i32_1 : i32, i32, i32
  }
  func.func @transform_4(%arg0: i32) -> (i32, i32) {
    %c0_i32 = arith.constant 0 : i32
    %c0_i32_0 = arith.constant 0 : i32
    %c0_i32_1 = arith.constant 0 : i32
    return %c0_i32, %c0_i32_0 : i32, i32
  }
  func.func @transform_5(%arg0: i32) -> (i32, i32, i32) {
    %c0_i32 = arith.constant 0 : i32
    %c0_i32_0 = arith.constant 0 : i32
    %c0_i32_1 = arith.constant 0 : i32
    %c0_i32_2 = arith.constant 0 : i32
    return %c0_i32, %c0_i32_0, %c0_i32_1 : i32, i32, i32
  }
  func.func @transform_6(%arg0: i32) -> (i32, i32) {
    %c0_i32 = arith.constant 0 : i32
    %c0_i32_0 = arith.constant 0 : i32
    %c0_i32_1 = arith.constant 0 : i32
    return %c0_i32, %c0_i32_0 : i32, i32
  }
  func.func @transform_7(%arg0: i32) -> (i32, i32) {
    %c0_i32 = arith.constant 0 : i32
    %c0_i32_0 = arith.constant 0 : i32
    %c0_i32_1 = arith.constant 0 : i32
    return %c0_i32, %c0_i32_0 : i32, i32
  }
  func.func @transform_8(%arg0: i32) -> (i32, i32) {
    %c0_i32 = arith.constant 0 : i32
    %c0_i32_0 = arith.constant 0 : i32
    %c0_i32_1 = arith.constant 0 : i32
    return %c0_i32, %c0_i32_0 : i32, i32
  }
  func.func @transform_9(%arg0: i32) -> (i32, i32) {
    %c0_i32 = arith.constant 0 : i32
    %c0_i32_0 = arith.constant 0 : i32
    return %arg0, %c0_i32 : i32, i32
  }
}

</mosaic_0001>

<llo_original>
// kernel: tile.13
$region0: #{tile.13}
  #allocation0 [shape = 's32[1]{0}', space=sflag, size = 0x4, scoped, tag = 'scoped memory for tile.13']
  %s0 = inlined_call_operand.vmem [shape: f32[6], index: 0, kind: input, shape index: {}]
  %s1 = inlined_call_operand.vmem [shape: f32[12,6], index: 1, kind: output, shape index: {}]
  // Predicated region
  $region2: #{tile.13} parent=0 // pred_check
    _
  $region3: #{tile.13} parent=0 // pred_check_branch
    %3 = sbr.rel (0) target = $region5
  $region4: #{tile.13} parent=0 // pred_region
    _
  $region5: #{tile.13} parent=0 // pred_fallthru
    _
  %v4 = vld [vmem:[%s0] ss:$0 sm:$0xff]
  %5 = vst [vmem:[%s1] sm:$0xff] %v4
  %s6 = scalar_lea.vmem %s1, 8
  %7 = vst [vmem:[%s6] sm:$0xff] %v4

// kernel: tile.14
$region0: #{tile.14}
  %s0 = inlined_call_operand.vmem [shape: f32[12,6], index: 0, kind: input, shape index: {}]
  %s1 = inlined_call_operand.vmem [shape: f32[1,72], index: 1, kind: output, shape index: {}]
  $region1: #{tile.14} parent=0
    #allocation0 [shape = 'u8[4096]{0}', space=vmem, size = 0x1000, scoped, tag = 'scoped mem for output reshape']
    %v2 = vld [vmem:[%s0] sm:$0x1]
    %vm3 = vcmask 48128
    %4 = vst.msk [vmem:[#allocation0] sm:$0x1] %vm3, %v2
    %s5 = scalar_lea.vmem %s0, 11
    %v6 = vld [vmem:[%s5] sm:$0x1]
    %7 = vrot.lane.b32.xlu0 %v6, 66
    %v8 = vpop.permute.xlu0 %7
    %vm9 = vcmask 589328
    %10 = vst.msk [vmem:[#allocation0] sm:$0x1] %vm9, %v8
    %s11 = scalar_lea.vmem %s0, 10
    %v12 = vld [vmem:[%s11] sm:$0x1]
    %13 = vrot.lane.b32.xlu0 %v12, 60
    %v14 = vpop.permute.xlu0 %13
    %vm15 = vcmask 540128
    %16 = vst.msk [vmem:[#allocation0] sm:$0x1] %vm15, %v14
    %s17 = scalar_lea.vmem %s0, 9
    %v18 = vld [vmem:[%s17] sm:$0x1]
    %19 = vrot.lane.b32.xlu0 %v18, 54
    %v20 = vpop.permute.xlu0 %19
    %vm21 = vcmask 490928
    %22 = vst.msk [vmem:[#allocation0] sm:$0x1] %vm21, %v20
    %s23 = scalar_lea.vmem %s0, 8
    %v24 = vld [vmem:[%s23] sm:$0x1]
    %25 = vrot.lane.b32.xlu0 %v24, 48
    %v26 = vpop.permute.xlu0 %25
    %vm27 = vcmask 441728
    %28 = vst.msk [vmem:[#allocation0] sm:$0x1] %vm27, %v26
    %s29 = scalar_lea.vmem %s0, 7
    %v30 = vld [vmem:[%s29] sm:$0x1]
    %31 = vrot.lane.b32.xlu0 %v30, 42
    %v32 = vpop.permute.xlu0 %31
    %vm33 = vcmask 392528
    %34 = vst.msk [vmem:[#allocation0] sm:$0x1] %vm33, %v32
    %s35 = scalar_lea.vmem %s0, 6
    %v36 = vld [vmem:[%s35] sm:$0x1]
    %37 = vrot.lane.b32.xlu0 %v36, 36
    %v38 = vpop.permute.xlu0 %37
    %vm39 = vcmask 343328
    %40 = vst.msk [vmem:[#allocation0] sm:$0x1] %vm39, %v38
    %s41 = scalar_lea.vmem %s0, 5
    %v42 = vld [vmem:[%s41] sm:$0x1]
    %43 = vrot.lane.b32.xlu0 %v42, 30
    %v44 = vpop.permute.xlu0 %43
    %vm45 = vcmask 294128
    %46 = vst.msk [vmem:[#allocation0] sm:$0x1] %vm45, %v44
    %s47 = scalar_lea.vmem %s0, 4
    %v48 = vld [vmem:[%s47] sm:$0x1]
    %49 = vrot.lane.b32.xlu0 %v48, 24
    %v50 = vpop.permute.xlu0 %49
    %vm51 = vcmask 244928
    %52 = vst.msk [vmem:[#allocation0] sm:$0x1] %vm51, %v50
    %s53 = scalar_lea.vmem %s0, 3
    %v54 = vld [vmem:[%s53] sm:$0x1]
    %55 = vrot.lane.b32.xlu0 %v54, 18
    %v56 = vpop.permute.xlu0 %55
    %vm57 = vcmask 195728
    %58 = vst.msk [vmem:[#allocation0] sm:$0x1] %vm57, %v56
    %s59 = scalar_lea.vmem %s0, 2
    %v60 = vld [vmem:[%s59] sm:$0x1]
    %61 = vrot.lane.b32.xlu0 %v60, 12
    %v62 = vpop.permute.xlu0 %61
    %vm63 = vcmask 146528
    %64 = vst.msk [vmem:[#allocation0] sm:$0x1] %vm63, %v62
    %s65 = scalar_lea.vmem %s0, 1
    %v66 = vld [vmem:[%s65] sm:$0x1]
    %67 = vrot.lane.b32.xlu0 %v66, 6
    %v68 = vpop.permute.xlu0 %67
    %vm69 = vcmask 97328
    %70 = vst.msk [vmem:[#allocation0] sm:$0x1] %vm69, %v68
    %s72 = sshllo.u32 0, 1
    %v74 = vld [vmem:[#allocation0] sm:%s72]
    %s75 = sshllo.u32 0, 1
    %76 = vst [vmem:[%s1] sm:%s75] %v74

// kernel: tile.18
$region0: #{tile.18}
  #allocation0 [shape = 's32[1]{0}', space=sflag, size = 0x4, scoped, tag = 'scoped memory for tile.18']
  %s0 = inlined_call_operand.vmem [shape: f32[16], index: 0, kind: input, shape index: {}]
  %s1 = inlined_call_operand.vmem [shape: f32[4,16], index: 1, kind: output, shape index: {}]
  // Predicated region
  $region2: #{tile.18} parent=0 // pred_check
    _
  $region3: #{tile.18} parent=0 // pred_check_branch
    %3 = sbr.rel (0) target = $region5
  $region4: #{tile.18} parent=0 // pred_region
    _
  $region5: #{tile.18} parent=0 // pred_fallthru
    _
  %v4 = vld [vmem:[%s0] ss:$0 sm:$0xff]
  %5 = vst [vmem:[%s1] sm:$0xf] %v4

// kernel: tile.19
$region0: #{tile.19}
  %s0 = inlined_call_operand.vmem [shape: f32[4,16], index: 0, kind: input, shape index: {}]
  %s1 = inlined_call_operand.vmem [shape: f32[1,64], index: 1, kind: output, shape index: {}]
  $region1: #{tile.19} parent=0
    #allocation0 [shape = 'u8[4096]{0}', space=vmem, size = 0x1000, scoped, tag = 'scoped mem for output reshape']
    #allocation1 [shape = 'u8[4096]{0}', space=vmem, size = 0x1000, scoped, tag = 'scoped mem for input reshape']
    %s3 = sshllo.u32 0, 4
    %v4 = vld [vmem:[%s0] sm:%s3]
    %5 = vst [vmem:[#allocation1] sm:%s3] %v4
    %v6 = vld [vmem:[#allocation1] sm:$0x1]
    %vm7 = vcmask 130048
    %8 = vst.msk [vmem:[#allocation0] sm:$0x1] %vm7, %v6
    %s9 = scalar_lea.vmem [#allocation1], 3
    %v10 = vld [vmem:[%s9] sm:$0x1]
    %11 = vrot.lane.b32.xlu0 %v10, 48
    %v12 = vpop.permute.xlu0 %11
    %vm13 = vcmask 523648
    %14 = vst.msk [vmem:[#allocation0] sm:$0x1] %vm13, %v12
    %s15 = scalar_lea.vmem [#allocation1], 2
    %v16 = vld [vmem:[%s15] sm:$0x1]
    %17 = vrot.lane.b32.xlu0 %v16, 32
    %v18 = vpop.permute.xlu0 %17
    %vm19 = vcmask 392448
    %20 = vst.msk [vmem:[#allocation0] sm:$0x1] %vm19, %v18
    %s21 = scalar_lea.vmem [#allocation1], 1
    %v22 = vld [vmem:[%s21] sm:$0x1]
    %23 = vrot.lane.b32.xlu0 %v22, 16
    %v24 = vpop.permute.xlu0 %23
    %vm25 = vcmask 261248
    %26 = vst.msk [vmem:[#allocation0] sm:$0x1] %vm25, %v24
    %s28 = sshllo.u32 0, 1
    %v30 = vld [vmem:[#allocation0] sm:%s28]
    %s31 = sshllo.u32 0, 1
    %32 = vst [vmem:[%s1] sm:%s31] %v30

// kernel: net_forward.1
$region0: #{net_forward.1}
  #allocation0 [shape = 'u32[]', space=smem, size = 0x4, offset = 0x4, fixed_abs, tag = 'smem constant byte address 0x4 - core index']
  #allocation1 [shape = 'u32[144,128]{1,0:T(1,128)}', space=vmem, size = 0x12000, scoped, tag = 'internal scratch']
  %s0 = inlined_call_operand.vmem [shape: f32[28,8,28], index: 0, kind: input, shape index: {}]
  %s1 = inlined_call_operand.vmem [shape: f32[5,28,256], index: 1, kind: input, shape index: {}]
  %s2 = inlined_call_operand.vmem [shape: f32[1,72], index: 2, kind: input, shape index: {}]
  %s3 = inlined_call_operand.vmem [shape: f32[5,72,256], index: 3, kind: input, shape index: {}]
  %s4 = inlined_call_operand.vmem [shape: f32[1,64], index: 4, kind: input, shape index: {}]
  %s5 = inlined_call_operand.vmem [shape: f32[4,64,64], index: 5, kind: input, shape index: {}]
  %s6 = inlined_call_operand.vmem [shape: f32[1,64], index: 6, kind: input, shape index: {}]
  %s7 = inlined_call_operand.vmem [shape: f32[64,10], index: 7, kind: input, shape index: {}]
  %s8 = inlined_call_operand.vmem [shape: f32[1,10], index: 8, kind: input, shape index: {}]
  %s9 = inlined_call_operand.vmem [shape: f32[8,10], index: 9, kind: output, shape index: {}]
  %s10 = sld [smem:[#allocation0]]
  $region46: #{net_forward.1} parent=0
    _
  %s12 = ssub.s32 1, %s10
  %s13 = scalar_select 0, %s12, %s10
  // Predicated region
  $region2: #{net_forward.1} parent=0 // pred_check
    _
  $region3: #{net_forward.1} parent=0 // pred_check_branch
    %15 = sbr.rel (0) target = $region5
  $region4: #{net_forward.1} parent=0 // pred_region
    _
  $region5: #{net_forward.1} parent=0 // pred_fallthru
    _
  // Predicated region
  $region6: #{net_forward.1} parent=0 // pred_check
    _
  $region7: #{net_forward.1} parent=0 // pred_check_branch
    %17 = sbr.rel (0) target = $region9
  $region8: #{net_forward.1} parent=0 // pred_region
    _
  $region9: #{net_forward.1} parent=0 // pred_fallthru
    _
  // Predicated region
  $region10: #{net_forward.1} parent=0 // pred_check
    _
  $region11: #{net_forward.1} parent=0 // pred_check_branch
    %19 = sbr.rel (0) target = $region13
  $region12: #{net_forward.1} parent=0 // pred_region
    _
  $region13: #{net_forward.1} parent=0 // pred_fallthru
    _
  // Predicated region
  $region14: #{net_forward.1} parent=0 // pred_check
    _
  $region15: #{net_forward.1} parent=0 // pred_check_branch
    %21 = sbr.rel (0) target = $region17
  $region16: #{net_forward.1} parent=0 // pred_region
    _
  $region17: #{net_forward.1} parent=0 // pred_fallthru
    _
  // Predicated region
  $region18: #{net_forward.1} parent=0 // pred_check
    _
  $region19: #{net_forward.1} parent=0 // pred_check_branch
    %23 = sbr.rel (0) target = $region21
  $region20: #{net_forward.1} parent=0 // pred_region
    _
  $region21: #{net_forward.1} parent=0 // pred_fallthru
    _
  // Predicated region
  $region22: #{net_forward.1} parent=0 // pred_check
    _
  $region23: #{net_forward.1} parent=0 // pred_check_branch
    %25 = sbr.rel (0) target = $region25
  $region24: #{net_forward.1} parent=0 // pred_region
    _
  $region25: #{net_forward.1} parent=0 // pred_fallthru
    _
  // Predicated region
  $region26: #{net_forward.1} parent=0 // pred_check
    _
  $region27: #{net_forward.1} parent=0 // pred_check_branch
    %27 = sbr.rel (0) target = $region29
  $region28: #{net_forward.1} parent=0 // pred_region
    _
  $region29: #{net_forward.1} parent=0 // pred_fallthru
    _
  // Predicated region
  $region30: #{net_forward.1} parent=0 // pred_check
    _
  $region31: #{net_forward.1} parent=0 // pred_check_branch
    %29 = sbr.rel (0) target = $region33
  $region32: #{net_forward.1} parent=0 // pred_region
    _
  $region33: #{net_forward.1} parent=0 // pred_fallthru
    _
  // Predicated region
  $region34: #{net_forward.1} parent=0 // pred_check
    _
  $region35: #{net_forward.1} parent=0 // pred_check_branch
    %31 = sbr.rel (0) target = $region37
  $region36: #{net_forward.1} parent=0 // pred_region
    _
  $region37: #{net_forward.1} parent=0 // pred_fallthru
    _
  %v32 = vld [vmem:[%s0] sm:$0xff]
  %v33 = vld [vmem:[%s0 + $0x8] sm:$0xff]
  %v34 = vld [vmem:[%s0 + $0x10] sm:$0xff]
  %v35 = vld [vmem:[%s0 + $0x18] sm:$0xff]
  %v36 = vld [vmem:[%s0 + $0x20] sm:$0xff]
  %v37 = vld [vmem:[%s0 + $0x28] sm:$0xff]
  %v38 = vld [vmem:[%s0 + $0x30] sm:$0xff]
  %v39 = vld [vmem:[%s0 + $0x38] sm:$0xff]
  %v40 = vld [vmem:[%s0 + $0x40] sm:$0xff]
  %v41 = vld [vmem:[%s0 + $0x48] sm:$0xff]
  %v42 = vld [vmem:[%s0 + $0x50] sm:$0xff]
  %v43 = vld [vmem:[%s0 + $0x58] sm:$0xff]
  %v44 = vld [vmem:[%s0 + $0x60] sm:$0xff]
  %v45 = vld [vmem:[%s0 + $0x68] sm:$0xff]
  %v46 = vld [vmem:[%s0 + $0x70] sm:$0xff]
  %v47 = vld [vmem:[%s0 + $0x78] sm:$0xff]
  %v48 = vld [vmem:[%s0 + $0x80] sm:$0xff]
  %v49 = vld [vmem:[%s0 + $0x88] sm:$0xff]
  %v50 = vld [vmem:[%s0 + $0x90] sm:$0xff]
  %v51 = vld [vmem:[%s0 + $0x98] sm:$0xff]
  %v52 = vld [vmem:[%s0 + $0xa0] sm:$0xff]
  %v53 = vld [vmem:[%s0 + $0xa8] sm:$0xff]
  %v54 = vld [vmem:[%s0 + $0xb0] sm:$0xff]
  %v55 = vld [vmem:[%s0 + $0xb8] sm:$0xff]
  %v56 = vld [vmem:[%s1] sm:$0xff]
  %v57 = vld [vmem:[%s1 + $0x8] sm:$0xff]
  %v58 = vld [vmem:[%s1 + $0x10] sm:$0xff]
  %v59 = vld [vmem:[%s1 + $0x18] sm:$0xff]
  %v60 = vld [vmem:[%s1 + $0x20] sm:$0xff]
  %v61 = vld [vmem:[%s1 + $0x28] sm:$0xff]
  %v62 = vld [vmem:[%s1 + $0x30] sm:$0xf]
  %v63 = vld [vmem:[%s1 + $0x38] sm:$0xf]
  %s64 = scalar_lea.vmem %s0, 8
  %v65 = vld [vmem:[%s64] sm:$0xff]
  %v66 = vld [vmem:[%s64 + $0x8] sm:$0xff]
  %v67 = vld [vmem:[%s64 + $0x10] sm:$0xff]
  %v68 = vld [vmem:[%s64 + $0x18] sm:$0xff]
  %v69 = vld [vmem:[%s64 + $0x20] sm:$0xff]
  %v70 = vld [vmem:[%s64 + $0x28] sm:$0xff]
  %v71 = vld [vmem:[%s64 + $0x30] sm:$0xff]
  %v72 = vld [vmem:[%s64 + $0x38] sm:$0xff]
  %v73 = vld [vmem:[%s64 + $0x40] sm:$0xff]
  %v74 = vld [vmem:[%s64 + $0x48] sm:$0xff]
  %v75 = vld [vmem:[%s64 + $0x50] sm:$0xff]
  %v76 = vld [vmem:[%s64 + $0x58] sm:$0xff]
  %v77 = vld [vmem:[%s64 + $0x60] sm:$0xff]
  %v78 = vld [vmem:[%s64 + $0x68] sm:$0xff]
  %v79 = vld [vmem:[%s64 + $0x70] sm:$0xff]
  %v80 = vld [vmem:[%s64 + $0x78] sm:$0xff]
  %v81 = vld [vmem:[%s64 + $0x80] sm:$0xff]
  %v82 = vld [vmem:[%s64 + $0x88] sm:$0xff]
  %v83 = vld [vmem:[%s64 + $0x90] sm:$0xff]
  %v84 = vld [vmem:[%s64 + $0x98] sm:$0xff]
  %v85 = vld [vmem:[%s64 + $0xa0] sm:$0xff]
  %v86 = vld [vmem:[%s64 + $0xa8] sm:$0xff]
  %v87 = vld [vmem:[%s64 + $0xb0] sm:$0xff]
  %v88 = vld [vmem:[%s64 + $0xb8] sm:$0xff]
  %s89 = scalar_lea.vmem %s1, 64
  %v90 = vld [vmem:[%s89] sm:$0xff]
  %v91 = vld [vmem:[%s89 + $0x8] sm:$0xff]
  %v92 = vld [vmem:[%s89 + $0x10] sm:$0xff]
  %v93 = vld [vmem:[%s89 + $0x18] sm:$0xff]
  %v94 = vld [vmem:[%s89 + $0x20] sm:$0xff]
  %v95 = vld [vmem:[%s89 + $0x28] sm:$0xff]
  %v96 = vld [vmem:[%s89 + $0x30] sm:$0xf]
  %v97 = vld [vmem:[%s89 + $0x38] sm:$0xf]
  %vm98 = vcmask 228352
  %v100 = vsel %vm98, %v65, 0
  %v103 = vsel %vm98, %v66, 0
  %v106 = vsel %vm98, %v67, 0
  %v109 = vsel %vm98, %v68, 0
  %v112 = vsel %vm98, %v69, 0
  %v115 = vsel %vm98, %v70, 0
  %v118 = vsel %vm98, %v71, 0
  %v121 = vsel %vm98, %v72, 0
  %v124 = vsel %vm98, %v73, 0
  %v127 = vsel %vm98, %v74, 0
  %v130 = vsel %vm98, %v75, 0
  %v133 = vsel %vm98, %v76, 0
  %v136 = vsel %vm98, %v77, 0
  %v139 = vsel %vm98, %v78, 0
  %v142 = vsel %vm98, %v79, 0
  %v145 = vsel %vm98, %v80, 0
  %v148 = vsel %vm98, %v81, 0
  %v151 = vsel %vm98, %v82, 0
  %v154 = vsel %vm98, %v83, 0
  %v157 = vsel %vm98, %v84, 0
  %v160 = vsel %vm98, %v85, 0
  %v163 = vsel %vm98, %v86, 0
  %v166 = vsel %vm98, %v87, 0
  %v169 = vsel %vm98, %v88, 0
  %vm171 = vcmask 1043456
  %v173 = vsel %vm171, %v96, 0
  %v176 = vsel %vm171, %v97, 0
  %178 = vmatprep.subr.mxu0 %v91
  %179 = vmatpush1.msra.mxu0 %v90
  %180 = vmatprep.subr.mxu0 %v93
  %181 = vmatpush1.msra.mxu0 %v92
  %182 = vmatprep.subr.mxu0 %v95
  %183 = vmatpush1.msra.mxu0 %v94
  %184 = vmatprep.subr.mxu0 %v176
  %185 = vmatpush1.msra.mxu0 %v173
  %186 = vmatprep.subr.mxu0 0.0
  %187 = vmatpush1.msra.mxu0 0.0
  %188 = vmatprep.subr.mxu0 0.0
  %189 = vmatpush1.msra.mxu0 0.0
  %190 = vmatprep.subr.mxu0 0.0
  %191 = vmatpush1.msra.mxu0 0.0
  %192 = vmatprep.subr.mxu0 0.0
  %193 = vmatpush1.msra.mxu0 0.0
  %194 = vmatprep.subr.mxu0 0.0
  %195 = vmatpush1.msra.mxu0 0.0
  %196 = vmatprep.subr.mxu0 0.0
  %197 = vmatpush1.msra.mxu0 0.0
  %198 = vmatprep.subr.mxu0 0.0
  %199 = vmatpush1.msra.mxu0 0.0
  %200 = vmatprep.subr.mxu0 0.0
  %201 = vmatpush1.msra.mxu0 0.0
  %202 = vmatprep.subr.mxu0 0.0
  %203 = vmatpush1.msra.mxu0 0.0
  %204 = vmatprep.subr.mxu0 0.0
  %205 = vmatpush1.msra.mxu0 0.0
  %206 = vmatprep.subr.mxu0 0.0
  %207 = vmatpush1.msra.mxu0 0.0
  %208 = vmatprep.subr.mxu0 0.0
  %209 = vmatpush1.msra.mxu0 0.0
  %210 = vmatprep.subr.mxu0 0.0
  %211 = vmatpush1.msra.mxu0 0.0
  %212 = vmatprep.subr.mxu0 0.0
  %213 = vmatpush1.msra.mxu0 0.0
  %214 = vmatprep.subr.mxu0 0.0
  %215 = vmatpush1.msra.mxu0 0.0
  %216 = vmatprep.subr.mxu0 0.0
  %217 = vmatpush1.msra.mxu0 0.0
  %218 = vmatprep.subr.mxu0 0.0
  %219 = vmatpush1.msra.mxu0 0.0
  %220 = vmatprep.subr.mxu0 0.0
  %221 = vmatpush1.msra.mxu0 0.0
  %222 = vmatprep.subr.mxu0 0.0
  %223 = vmatpush1.msra.mxu0 0.0
  %224 = vmatprep.subr.mxu0 0.0
  %225 = vmatpush1.msra.mxu0 0.0
  %226 = vmatprep.subr.mxu0 0.0
  %227 = vmatpush1.msra.mxu0 0.0
  %228 = vmatprep.subr.mxu0 0.0
  %229 = vmatpush1.msra.mxu0 0.0
  %230 = vmatprep.subr.mxu0 0.0
  %231 = vmatpush1.msra.mxu0 0.0
  %232 = vmatprep.subr.mxu0 0.0
  %233 = vmatpush1.msra.mxu0 0.0
  %234 = vmatprep.subr.mxu0 0.0
  %235 = vmatpush1.msra.mxu0 0.0
  %236 = vmatprep.subr.mxu0 0.0
  %237 = vmatpush1.msra.mxu0 0.0
  %238 = vmatprep.subr.mxu0 0.0
  %239 = vmatpush1.msra.mxu0 0.0
  %240 = vmatprep.subr.mxu0 0.0
  %241 = vmatpush1.msra.mxu0 0.0
  %242 = vmatprep.mubr.f32.mxu0 0.0
  %243 = vmatmul.mubr.f32.gmra.mrb[0].mxu0 %v100
  %v244 = vpop.f32.mrb[0].mxu0
  %v245 = vadd.f32 0.0, %v244
  %v246 = vpop.f32.mrb[0].mxu0
  %v247 = vadd.f32 0.0, %v246
  %248 = vmatprep.mubr.f32.mxu0 0.0
  %249 = vmatmul.mubr.f32.gmra.mrb[0].mxu0 %v103
  %v250 = vpop.f32.mrb[0].mxu0
  %v251 = vadd.f32 0.0, %v250
  %v252 = vpop.f32.mrb[0].mxu0
  %v253 = vadd.f32 0.0, %v252
  %254 = vmatprep.mubr.f32.mxu0 0.0
  %255 = vmatmul.mubr.f32.gmra.mrb[0].mxu0 %v106
  %v256 = vpop.f32.mrb[0].mxu0
  %v257 = vadd.f32 0.0, %v256
  %v258 = vpop.f32.mrb[0].mxu0
  %v259 = vadd.f32 0.0, %v258
  %260 = vmatprep.mubr.f32.mxu0 0.0
  %261 = vmatmul.mubr.f32.gmra.mrb[0].mxu0 %v109
  %v262 = vpop.f32.mrb[0].mxu0
  %v263 = vadd.f32 0.0, %v262
  %v264 = vpop.f32.mrb[0].mxu0
  %v265 = vadd.f32 0.0, %v264
  %266 = vmatprep.mubr.f32.mxu0 0.0
  %267 = vmatmul.mubr.f32.gmra.mrb[0].mxu0 %v112
  %v268 = vpop.f32.mrb[0].mxu0
  %v269 = vadd.f32 0.0, %v268
  %v270 = vpop.f32.mrb[0].mxu0
  %v271 = vadd.f32 0.0, %v270
  %272 = vmatprep.mubr.f32.mxu0 0.0
  %273 = vmatmul.mubr.f32.gmra.mrb[0].mxu0 %v115
  %v274 = vpop.f32.mrb[0].mxu0
  %v275 = vadd.f32 0.0, %v274
  %v276 = vpop.f32.mrb[0].mxu0
  %v277 = vadd.f32 0.0, %v276
  %278 = vmatprep.mubr.f32.mxu0 0.0
  %279 = vmatmul.mubr.f32.gmra.mrb[0].mxu0 %v118
  %v280 = vpop.f32.mrb[0].mxu0
  %v281 = vadd.f32 0.0, %v280
  %v282 = vpop.f32.mrb[0].mxu0
  %v283 = vadd.f32 0.0, %v282
  %284 = vmatprep.mubr.f32.mxu0 0.0
  %285 = vmatmul.mubr.f32.gmra.mrb[0].mxu0 %v121
  %v286 = vpop.f32.mrb[0].mxu0
  %v287 = vadd.f32 0.0, %v286
  %v288 = vpop.f32.mrb[0].mxu0
  %v289 = vadd.f32 0.0, %v288
  %290 = vmatprep.mubr.f32.mxu0 0.0
  %291 = vmatmul.mubr.f32.gmra.mrb[0].mxu0 %v124
  %v292 = vpop.f32.mrb[0].mxu0
  %v293 = vadd.f32 0.0, %v292
  %v294 = vpop.f32.mrb[0].mxu0
  %v295 = vadd.f32 0.0, %v294
  %296 = vmatprep.mubr.f32.mxu0 0.0
  %297 = vmatmul.mubr.f32.gmra.mrb[0].mxu0 %v127
  %v298 = vpop.f32.mrb[0].mxu0
  %v299 = vadd.f32 0.0, %v298
  %v300 = vpop.f32.mrb[0].mxu0
  %v301 = vadd.f32 0.0, %v300
  %302 = vmatprep.mubr.f32.mxu0 0.0
  %303 = vmatmul.mubr.f32.gmra.mrb[0].mxu0 %v130
  %v304 = vpop.f32.mrb[0].mxu0
  %v305 = vadd.f32 0.0, %v304
  %v306 = vpop.f32.mrb[0].mxu0
  %v307 = vadd.f32 0.0, %v306
  %308 = vmatprep.mubr.f32.mxu0 0.0
  %309 = vmatmul.mubr.f32.gmra.mrb[0].mxu0 %v133
  %v310 = vpop.f32.mrb[0].mxu0
  %v311 = vadd.f32 0.0, %v310
  %v312 = vpop.f32.mrb[0].mxu0
  %v313 = vadd.f32 0.0, %v312
  %314 = vmatprep.mubr.f32.mxu0 0.0
  %315 = vmatmul.mubr.f32.gmra.mrb[0].mxu0 %v136
  %v316 = vpop.f32.mrb[0].mxu0
  %v317 = vadd.f32 0.0, %v316
  %v318 = vpop.f32.mrb[0].mxu0
  %v319 = vadd.f32 0.0, %v318
  %320 = vmatprep.mubr.f32.mxu0 0.0
  %321 = vmatmul.mubr.f32.gmra.mrb[0].mxu0 %v139
  %v322 = vpop.f32.mrb[0].mxu0
  %v323 = vadd.f32 0.0, %v322
  %v324 = vpop.f32.mrb[0].mxu0
  %v325 = vadd.f32 0.0, %v324
  %326 = vmatprep.mubr.f32.mxu0 0.0
  %327 = vmatmul.mubr.f32.gmra.mrb[0].mxu0 %v142
  %v328 = vpop.f32.mrb[0].mxu0
  %v329 = vadd.f32 0.0, %v328
  %v330 = vpop.f32.mrb[0].mxu0
  %v331 = vadd.f32 0.0, %v330
  %332 = vmatprep.mubr.f32.mxu0 0.0
  %333 = vmatmul.mubr.f32.gmra.mrb[0].mxu0 %v145
  %v334 = vpop.f32.mrb[0].mxu0
  %v335 = vadd.f32 0.0, %v334
  %v336 = vpop.f32.mrb[0].mxu0
  %v337 = vadd.f32 0.0, %v336
  %338 = vmatprep.mubr.f32.mxu0 0.0
  %339 = vmatmul.mubr.f32.gmra.mrb[0].mxu0 %v148
  %v340 = vpop.f32.mrb[0].mxu0
  %v341 = vadd.f32 0.0, %v340
  %v342 = vpop.f32.mrb[0].mxu0
  %v343 = vadd.f32 0.0, %v342
  %344 = vmatprep.mubr.f32.mxu0 0.0
  %345 = vmatmul.mubr.f32.gmra.mrb[0].mxu0 %v151
  %v346 = vpop.f32.mrb[0].mxu0
  %v347 = vadd.f32 0.0, %v346
  %v348 = vpop.f32.mrb[0].mxu0
  %v349 = vadd.f32 0.0, %v348
  %350 = vmatprep.mubr.f32.mxu0 0.0
  %351 = vmatmul.mubr.f32.gmra.mrb[0].mxu0 %v154
  %v352 = vpop.f32.mrb[0].mxu0
  %v353 = vadd.f32 0.0, %v352
  %v354 = vpop.f32.mrb[0].mxu0
  %v355 = vadd.f32 0.0, %v354
  %356 = vmatprep.mubr.f32.mxu0 0.0
  %357 = vmatmul.mubr.f32.gmra.mrb[0].mxu0 %v157
  %v358 = vpop.f32.mrb[0].mxu0
  %v359 = vadd.f32 0.0, %v358
  %v360 = vpop.f32.mrb[0].mxu0
  %v361 = vadd.f32 0.0, %v360
  %362 = vmatprep.mubr.f32.mxu0 0.0
  %363 = vmatmul.mubr.f32.gmra.mrb[0].mxu0 %v160
  %v364 = vpop.f32.mrb[0].mxu0
  %v365 = vadd.f32 0.0, %v364
  %v366 = vpop.f32.mrb[0].mxu0
  %v367 = vadd.f32 0.0, %v366
  %368 = vmatprep.mubr.f32.mxu0 0.0
  %369 = vmatmul.mubr.f32.gmra.mrb[0].mxu0 %v163
  %v370 = vpop.f32.mrb[0].mxu0
  %v371 = vadd.f32 0.0, %v370
  %v372 = vpop.f32.mrb[0].mxu0
  %v373 = vadd.f32 0.0, %v372
  %374 = vmatprep.mubr.f32.mxu0 0.0
  %375 = vmatmul.mubr.f32.gmra.mrb[0].mxu0 %v166
  %v376 = vpop.f32.mrb[0].mxu0
  %v377 = vadd.f32 0.0, %v376
  %v378 = vpop.f32.mrb[0].mxu0
  %v379 = vadd.f32 0.0, %v378
  %380 = vmatprep.mubr.f32.mxu0 0.0
  %381 = vmatmul.mubr.f32.gmra.mrb[0].mxu0 %v169
  %v382 = vpop.f32.mrb[0].mxu0
  %v383 = vadd.f32 0.0, %v382
  %v384 = vpop.f32.mrb[0].mxu0
  %v385 = vadd.f32 0.0, %v384
  %386 = vdwg.mxu0
  %v388 = vsel %vm98, %v32, 0
  %v391 = vsel %vm98, %v33, 0
  %v394 = vsel %vm98, %v34, 0
  %v397 = vsel %vm98, %v35, 0
  %v400 = vsel %vm98, %v36, 0
  %v403 = vsel %vm98, %v37, 0
  %v406 = vsel %vm98, %v38, 0
  %v409 = vsel %vm98, %v39, 0
  %v412 = vsel %vm98, %v40, 0
  %v415 = vsel %vm98, %v41, 0
  %v418 = vsel %vm98, %v42, 0
  %v421 = vsel %vm98, %v43, 0
  %v424 = vsel %vm98, %v44, 0
  %v427 = vsel %vm98, %v45, 0
  %v430 = vsel %vm98, %v46, 0
  %v433 = vsel %vm98, %v47, 0
  %v436 = vsel %vm98, %v48, 0
  %v439 = vsel %vm98, %v49, 0
  %v442 = vsel %vm98, %v50, 0
  %v445 = vsel %vm98, %v51, 0
  %v448 = vsel %vm98, %v52, 0
  %v451 = vsel %vm98, %v53, 0
  %v454 = vsel %vm98, %v54, 0
  %v457 = vsel %vm98, %v55, 0
  %v460 = vsel %vm171, %v62, 0
  %v463 = vsel %vm171, %v63, 0
  %465 = vmatprep.subr.mxu0 %v57
  %466 = vmatpush1.msra.mxu0 %v56
  %467 = vmatprep.subr.mxu0 %v59
  %468 = vmatpush1.msra.mxu0 %v58
  %469 = vmatprep.subr.mxu0 %v61
  %470 = vmatpush1.msra.mxu0 %v60
  %471 = vmatprep.subr.mxu0 %v463
  %472 = vmatpush1.msra.mxu0 %v460
  %473 = vmatprep.subr.mxu0 0.0
  %474 = vmatpush1.msra.mxu0 0.0
  %475 = vmatprep.subr.mxu0 0.0
  %476 = vmatpush1.msra.mxu0 0.0
  %477 = vmatprep.subr.mxu0 0.0
  %478 = vmatpush1.msra.mxu0 0.0
  %479 = vmatprep.subr.mxu0 0.0
  %480 = vmatpush1.msra.mxu0 0.0
  %481 = vmatprep.subr.mxu0 0.0
  %482 = vmatpush1.msra.mxu0 0.0
  %483 = vmatprep.subr.mxu0 0.0
  %484 = vmatpush1.msra.mxu0 0.0
  %485 = vmatprep.subr.mxu0 0.0
  %486 = vmatpush1.msra.mxu0 0.0
  %487 = vmatprep.subr.mxu0 0.0
  %488 = vmatpush1.msra.mxu0 0.0
  %489 = vmatprep.subr.mxu0 0.0
  %490 = vmatpush1.msra.mxu0 0.0
  %491 = vmatprep.subr.mxu0 0.0
  %492 = vmatpush1.msra.mxu0 0.0
  %493 = vmatprep.subr.mxu0 0.0
  %494 = vmatpush1.msra.mxu0 0.0
  %495 = vmatprep.subr.mxu0 0.0
  %496 = vmatpush1.msra.mxu0 0.0
  %497 = vmatprep.subr.mxu0 0.0
  %498 = vmatpush1.msra.mxu0 0.0
  %499 = vmatprep.subr.mxu0 0.0
  %500 = vmatpush1.msra.mxu0 0.0
  %501 = vmatprep.subr.mxu0 0.0
  %502 = vmatpush1.msra.mxu0 0.0
  %503 = vmatprep.subr.mxu0 0.0
  %504 = vmatpush1.msra.mxu0 0.0
  %505 = vmatprep.subr.mxu0 0.0
  %506 = vmatpush1.msra.mxu0 0.0
  %507 = vmatprep.subr.mxu0 0.0
  %508 = vmatpush1.msra.mxu0 0.0
  %509 = vmatprep.subr.mxu0 0.0
  %510 = vmatpush1.msra.mxu0 0.0
  %511 = vmatprep.subr.mxu0 0.0
  %512 = vmatpush1.msra.mxu0 0.0
  %513 = vmatprep.subr.mxu0 0.0
  %514 = vmatpush1.msra.mxu0 0.0
  %515 = vmatprep.subr.mxu0 0.0
  %516 = vmatpush1.msra.mxu0 0.0
  %517 = vmatprep.subr.mxu0 0.0
  %518 = vmatpush1.msra.mxu0 0.0
  %519 = vmatprep.subr.mxu0 0.0
  %520 = vmatpush1.msra.mxu0 0.0
  %521 = vmatprep.subr.mxu0 0.0
  %522 = vmatpush1.msra.mxu0 0.0
  %523 = vmatprep.subr.mxu0 0.0
  %524 = vmatpush1.msra.mxu0 0.0
  %525 = vmatprep.subr.mxu0 0.0
  %526 = vmatpush1.msra.mxu0 0.0
  %527 = vmatprep.subr.mxu0 0.0
  %528 = vmatpush1.msra.mxu0 0.0
  %529 = vmatprep.mubr.f32.mxu0 0.0
  %530 = vmatmul.mubr.f32.gmra.mrb[0].mxu0 %v388
  %v531 = vpop.f32.mrb[0].mxu0
  %v532 = vadd.f32 %v245, %v531
  %v533 = vpop.f32.mrb[0].mxu0
  %v534 = vadd.f32 %v247, %v533
  %535 = vmatprep.mubr.f32.mxu0 0.0
  %536 = vmatmul.mubr.f32.gmra.mrb[0].mxu0 %v391
  %v537 = vpop.f32.mrb[0].mxu0
  %v538 = vadd.f32 %v251, %v537
  %v539 = vpop.f32.mrb[0].mxu0
  %v540 = vadd.f32 %v253, %v539
  %541 = vmatprep.mubr.f32.mxu0 0.0
  %542 = vmatmul.mubr.f32.gmra.mrb[0].mxu0 %v394
  %v543 = vpop.f32.mrb[0].mxu0
  %v544 = vadd.f32 %v257, %v543
  %v545 = vpop.f32.mrb[0].mxu0
  %v546 = vadd.f32 %v259, %v545
  %547 = vmatprep.mubr.f32.mxu0 0.0
  %548 = vmatmul.mubr.f32.gmra.mrb[0].mxu0 %v397
  %v549 = vpop.f32.mrb[0].mxu0
  %v550 = vadd.f32 %v263, %v549
  %v551 = vpop.f32.mrb[0].mxu0
  %v552 = vadd.f32 %v265, %v551
  %553 = vmatprep.mubr.f32.mxu0 0.0
  %554 = vmatmul.mubr.f32.gmra.mrb[0].mxu0 %v400
  %v555 = vpop.f32.mrb[0].mxu0
  %v556 = vadd.f32 %v269, %v555
  %v557 = vpop.f32.mrb[0].mxu0
  %v558 = vadd.f32 %v271, %v557
  %559 = vmatprep.mubr.f32.mxu0 0.0
  %560 = vmatmul.mubr.f32.gmra.mrb[0].mxu0 %v403
  %v561 = vpop.f32.mrb[0].mxu0
  %v562 = vadd.f32 %v275, %v561
  %v563 = vpop.f32.mrb[0].mxu0
  %v564 = vadd.f32 %v277, %v563
  %565 = vmatprep.mubr.f32.mxu0 0.0
  %566 = vmatmul.mubr.f32.gmra.mrb[0].mxu0 %v406
  %v567 = vpop.f32.mrb[0].mxu0
  %v568 = vadd.f32 %v281, %v567
  %v569 = vpop.f32.mrb[0].mxu0
  %v570 = vadd.f32 %v283, %v569
  %571 = vmatprep.mubr.f32.mxu0 0.0
  %572 = vmatmul.mubr.f32.gmra.mrb[0].mxu0 %v409
  %v573 = vpop.f32.mrb[0].mxu0
  %v574 = vadd.f32 %v287, %v573
  %v575 = vpop.f32.mrb[0].mxu0
  %v576 = vadd.f32 %v289, %v575
  %577 = vmatprep.mubr.f32.mxu0 0.0
  %578 = vmatmul.mubr.f32.gmra.mrb[0].mxu0 %v412
  %v579 = vpop.f32.mrb[0].mxu0
  %v580 = vadd.f32 %v293, %v579
  %v581 = vpop.f32.mrb[0].mxu0
  %v582 = vadd.f32 %v295, %v581
  %583 = vmatprep.mubr.f32.mxu0 0.0
  %584 = vmatmul.mubr.f32.gmra.mrb[0].mxu0 %v415
  %v585 = vpop.f32.mrb[0].mxu0
  %v586 = vadd.f32 %v299, %v585
  %v587 = vpop.f32.mrb[0].mxu0
  %v588 = vadd.f32 %v301, %v587
  %589 = vmatprep.mubr.f32.mxu0 0.0
  %590 = vmatmul.mubr.f32.gmra.mrb[0].mxu0 %v418
  %v591 = vpop.f32.mrb[0].mxu0
  %v592 = vadd.f32 %v305, %v591
  %v593 = vpop.f32.mrb[0].mxu0
  %v594 = vadd.f32 %v307, %v593
  %595 = vmatprep.mubr.f32.mxu0 0.0
  %596 = vmatmul.mubr.f32.gmra.mrb[0].mxu0 %v421
  %v597 = vpop.f32.mrb[0].mxu0
  %v598 = vadd.f32 %v311, %v597
  %v599 = vpop.f32.mrb[0].mxu0
  %v600 = vadd.f32 %v313, %v599
  %601 = vmatprep.mubr.f32.mxu0 0.0
  %602 = vmatmul.mubr.f32.gmra.mrb[0].mxu0 %v424
  %v603 = vpop.f32.mrb[0].mxu0
  %v604 = vadd.f32 %v317, %v603
  %v605 = vpop.f32.mrb[0].mxu0
  %v606 = vadd.f32 %v319, %v605
  %607 = vmatprep.mubr.f32.mxu0 0.0
  %608 = vmatmul.mubr.f32.gmra.mrb[0].mxu0 %v427
  %v609 = vpop.f32.mrb[0].mxu0
  %v610 = vadd.f32 %v323, %v609
  %v611 = vpop.f32.mrb[0].mxu0
  %v612 = vadd.f32 %v325, %v611
  %613 = vmatprep.mubr.f32.mxu0 0.0
  %614 = vmatmul.mubr.f32.gmra.mrb[0].mxu0 %v430
  %v615 = vpop.f32.mrb[0].mxu0
  %v616 = vadd.f32 %v329, %v615
  %v617 = vpop.f32.mrb[0].mxu0
  %v618 = vadd.f32 %v331, %v617
  %619 = vmatprep.mubr.f32.mxu0 0.0
  %620 = vmatmul.mubr.f32.gmra.mrb[0].mxu0 %v433
  %v621 = vpop.f32.mrb[0].mxu0
  %v622 = vadd.f32 %v335, %v621
  %v623 = vpop.f32.mrb[0].mxu0
  %v624 = vadd.f32 %v337, %v623
  %625 = vmatprep.mubr.f32.mxu0 0.0
  %626 = vmatmul.mubr.f32.gmra.mrb[0].mxu0 %v436
  %v627 = vpop.f32.mrb[0].mxu0
  %v628 = vadd.f32 %v341, %v627
  %v629 = vpop.f32.mrb[0].mxu0
  %v630 = vadd.f32 %v343, %v629
  %631 = vmatprep.mubr.f32.mxu0 0.0
  %632 = vmatmul.mubr.f32.gmra.mrb[0].mxu0 %v439
  %v633 = vpop.f32.mrb[0].mxu0
  %v634 = vadd.f32 %v347, %v633
  %v635 = vpop.f32.mrb[0].mxu0
  %v636 = vadd.f32 %v349, %v635
  %637 = vmatprep.mubr.f32.mxu0 0.0
  %638 = vmatmul.mubr.f32.gmra.mrb[0].mxu0 %v442
  %v639 = vpop.f32.mrb[0].mxu0
  %v640 = vadd.f32 %v353, %v639
  %v641 = vpop.f32.mrb[0].mxu0
  %v642 = vadd.f32 %v355, %v641
  %643 = vmatprep.mubr.f32.mxu0 0.0
  %644 = vmatmul.mubr.f32.gmra.mrb[0].mxu0 %v445
  %v645 = vpop.f32.mrb[0].mxu0
  %v646 = vadd.f32 %v359, %v645
  %v647 = vpop.f32.mrb[0].mxu0
  %v648 = vadd.f32 %v361, %v647
  %649 = vmatprep.mubr.f32.mxu0 0.0
  %650 = vmatmul.mubr.f32.gmra.mrb[0].mxu0 %v448
  %v651 = vpop.f32.mrb[0].mxu0
  %v652 = vadd.f32 %v365, %v651
  %v653 = vpop.f32.mrb[0].mxu0
  %v654 = vadd.f32 %v367, %v653
  %655 = vmatprep.mubr.f32.mxu0 0.0
  %656 = vmatmul.mubr.f32.gmra.mrb[0].mxu0 %v451
  %v657 = vpop.f32.mrb[0].mxu0
  %v658 = vadd.f32 %v371, %v657
  %v659 = vpop.f32.mrb[0].mxu0
  %v660 = vadd.f32 %v373, %v659
  %661 = vmatprep.mubr.f32.mxu0 0.0
  %662 = vmatmul.mubr.f32.gmra.mrb[0].mxu0 %v454
  %v663 = vpop.f32.mrb[0].mxu0
  %v664 = vadd.f32 %v377, %v663
  %v665 = vpop.f32.mrb[0].mxu0
  %v666 = vadd.f32 %v379, %v665
  %667 = vmatprep.mubr.f32.mxu0 0.0
  %668 = vmatmul.mubr.f32.gmra.mrb[0].mxu0 %v457
  %v669 = vpop.f32.mrb[0].mxu0
  %v670 = vadd.f32 %v383, %v669
  %v671 = vpop.f32.mrb[0].mxu0
  %v672 = vadd.f32 %v385, %v671
  %673 = vdwg.mxu0
  %s674 = scalar_lea.vmem %s0, 16
  %v675 = vld [vmem:[%s674] sm:$0xff]
  %v676 = vld [vmem:[%s674 + $0x8] sm:$0xff]
  %v677 = vld [vmem:[%s674 + $0x10] sm:$0xff]
  %v678 = vld [vmem:[%s674 + $0x18] sm:$0xff]
  %v679 = vld [vmem:[%s674 + $0x20] sm:$0xff]
  %v680 = vld [vmem:[%s674 + $0x28] sm:$0xff]
  %v681 = vld [vmem:[%s674 + $0x30] sm:$0xff]
  %v682 = vld [vmem:[%s674 + $0x38] sm:$0xff]
  %v683 = vld [vmem:[%s674 + $0x40] sm:$0xff]
  %v684 = vld [vmem:[%s674 + $0x48] sm:$0xff]
  %v685 = vld [vmem:[%s674 + $0x50] sm:$0xff]
  %v686 = vld [vmem:[%s674 + $0x58] sm:$0xff]
  %v687 = vld [vmem:[%s674 + $0x60] sm:$0xff]
  %v688 = vld [vmem:[%s674 + $0x68] sm:$0xff]
  %v689 = vld [vmem:[%s674 + $0x70] sm:$0xff]
  %v690 = vld [vmem:[%s674 + $0x78] sm:$0xff]
  %v691 = vld [vmem:[%s674 + $0x80] sm:$0xff]
  %v692 = vld [vmem:[%s674 + $0x88] sm:$0xff]
  %v693 = vld [vmem:[%s674 + $0x90] sm:$0xff]
  %v694 = vld [vmem:[%s674 + $0x98] sm:$0xff]
  %v695 = vld [vmem:[%s674 + $0xa0] sm:$0xff]
  %v696 = vld [vmem:[%s674 + $0xa8] sm:$0xff]
  %v697 = vld [vmem:[%s674 + $0xb0] sm:$0xff]
  %v698 = vld [vmem:[%s674 + $0xb8] sm:$0xff]
  %s699 = scalar_lea.vmem %s1, 128
  %v700 = vld [vmem:[%s699] sm:$0xff]
  %v701 = vld [vmem:[%s699 + $0x8] sm:$0xff]
  %v702 = vld [vmem:[%s699 + $0x10] sm:$0xff]
  %v703 = vld [vmem:[%s699 + $0x18] sm:$0xff]
  %v704 = vld [vmem:[%s699 + $0x20] sm:$0xff]
  %v705 = vld [vmem:[%s699 + $0x28] sm:$0xff]
  %v706 = vld [vmem:[%s699 + $0x30] sm:$0xf]
  %v707 = vld [vmem:[%s699 + $0x38] sm:$0xf]
  %v709 = vsel %vm98, %v675, 0
  %v712 = vsel %vm98, %v676, 0
  %v715 = vsel %vm98, %v677, 0
  %v718 = vsel %vm98, %v678, 0
  %v721 = vsel %vm98, %v679, 0
  %v724 = vsel %vm98, %v680, 0
  %v727 = vsel %vm98, %v681, 0
  %v730 = vsel %vm98, %v682, 0
  %v733 = vsel %vm98, %v683, 0
  %v736 = vsel %vm98, %v684, 0
  %v739 = vsel %vm98, %v685, 0
  %v742 = vsel %vm98, %v686, 0
  %v745 = vsel %vm98, %v687, 0
  %v748 = vsel %vm98, %v688, 0
  %v751 = vsel %vm98, %v689, 0
  %v754 = vsel %vm98, %v690, 0
  %v757 = vsel %vm98, %v691, 0
  %v760 = vsel %vm98, %v692, 0
  %v763 = vsel %vm98, %v693, 0
  %v766 = vsel %vm98, %v694, 0
  %v769 = vsel %vm98, %v695, 0
  %v772 = vsel %vm98, %v696, 0
  %v775 = vsel %vm98, %v697, 0
  %v778 = vsel %vm98, %v698, 0
  %v781 = vsel %vm171, %v706, 0
  %v784 = vsel %vm171, %v707, 0
  %786 = vmatprep.subr.mxu0 %v701
  %787 = vmatpush1.msra.mxu0 %v700
  %788 = vmatprep.subr.mxu0 %v703
  %789 = vmatpush1.msra.mxu0 %v702
  %790 = vmatprep.subr.mxu0 %v705
  %791 = vmatpush1.msra.mxu0 %v704
  %792 = vmatprep.subr.mxu0 %v784
  %793 = vmatpush1.msra.mxu0 %v781
  %794 = vmatprep.subr.mxu0 0.0
  %795 = vmatpush1.msra.mxu0 0.0
  %796 = vmatprep.subr.mxu0 0.0
  %797 = vmatpush1.msra.mxu0 0.0
  %798 = vmatprep.subr.mxu0 0.0
  %799 = vmatpush1.msra.mxu0 0.0
  %800 = vmatprep.subr.mxu0 0.0
  %801 = vmatpush1.msra.mxu0 0.0
  %802 = vmatprep.subr.mxu0 0.0
  %803 = vmatpush1.msra.mxu0 0.0
  %804 = vmatprep.subr.mxu0 0.0
  %805 = vmatpush1.msra.mxu0 0.0
  %806 = vmatprep.subr.mxu0 0.0
  %807 = vmatpush1.msra.mxu0 0.0
  %808 = vmatprep.subr.mxu0 0.0
  %809 = vmatpush1.msra.mxu0 0.0
  %810 = vmatprep.subr.mxu0 0.0
  %811 = vmatpush1.msra.mxu0 0.0
  %812 = vmatprep.subr.mxu0 0.0
  %813 = vmatpush1.msra.mxu0 0.0
  %814 = vmatprep.subr.mxu0 0.0
  %815 = vmatpush1.msra.mxu0 0.0
  %816 = vmatprep.subr.mxu0 0.0
  %817 = vmatpush1.msra.mxu0 0.0
  %818 = vmatprep.subr.mxu0 0.0
  %819 = vmatpush1.msra.mxu0 0.0
  %820 = vmatprep.subr.mxu0 0.0
  %821 = vmatpush1.msra.mxu0 0.0
  %822 = vmatprep.subr.mxu0 0.0
  %823 = vmatpush1.msra.mxu0 0.0
  %824 = vmatprep.subr.mxu0 0.0
  %825 = vmatpush1.msra.mxu0 0.0
  %826 = vmatprep.subr.mxu0 0.0
  %827 = vmatpush1.msra.mxu0 0.0
  %828 = vmatprep.subr.mxu0 0.0
  %829 = vmatpush1.msra.mxu0 0.0
  %830 = vmatprep.subr.mxu0 0.0
  %831 = vmatpush1.msra.mxu0 0.0
  %832 = vmatprep.subr.mxu0 0.0
  %833 = vmatpush1.msra.mxu0 0.0
  %834 = vmatprep.subr.mxu0 0.0
  %835 = vmatpush1.msra.mxu0 0.0
  %836 = vmatprep.subr.mxu0 0.0
  %837 = vmatpush1.msra.mxu0 0.0
  %838 = vmatprep.subr.mxu0 0.0
  %839 = vmatpush1.msra.mxu0 0.0
  %840 = vmatprep.subr.mxu0 0.0
  %841 = vmatpush1.msra.mxu0 0.0
  %842 = vmatprep.subr.mxu0 0.0
  %843 = vmatpush1.msra.mxu0 0.0
  %844 = vmatprep.subr.mxu0 0.0
  %845 = vmatpush1.msra.mxu0 0.0
  %846 = vmatprep.subr.mxu0 0.0
  %847 = vmatpush1.msra.mxu0 0.0
  %848 = vmatprep.subr.mxu0 0.0
  %849 = vmatpush1.msra.mxu0 0.0
  %850 = vmatprep.mubr.f32.mxu0 0.0
  %851 = vmatmul.mubr.f32.gmra.mrb[0].mxu0 %v709
  %v852 = vpop.f32.mrb[0].mxu0
  %v853 = vadd.f32 0.0, %v852
  %v854 = vpop.f32.mrb[0].mxu0
  %v855 = vadd.f32 0.0, %v854
  %856 = vmatprep.mubr.f32.mxu0 0.0
  %857 = vmatmul.mubr.f32.gmra.mrb[0].mxu0 %v712
  %v858 = vpop.f32.mrb[0].mxu0
  %v859 = vadd.f32 0.0, %v858
  %v860 = vpop.f32.mrb[0].mxu0
  %v861 = vadd.f32 0.0, %v860
  %862 = vmatprep.mubr.f32.mxu0 0.0
  %863 = vmatmul.mubr.f32.gmra.mrb[0].mxu0 %v715
  %v864 = vpop.f32.mrb[0].mxu0
  %v865 = vadd.f32 0.0, %v864
  %v866 = vpop.f32.mrb[0].mxu0
  %v867 = vadd.f32 0.0, %v866
  %868 = vmatprep.mubr.f32.mxu0 0.0
  %869 = vmatmul.mubr.f32.gmra.mrb[0].mxu0 %v718
  %v870 = vpop.f32.mrb[0].mxu0
  %v871 = vadd.f32 0.0, %v870
  %v872 = vpop.f32.mrb[0].mxu0
  %v873 = vadd.f32 0.0, %v872
  %874 = vmatprep.mubr.f32.mxu0 0.0
  %875 = vmatmul.mubr.f32.gmra.mrb[0].mxu0 %v721
  %v876 = vpop.f32.mrb[0].mxu0
  %v877 = vadd.f32 0.0, %v876
  %v878 = vpop.f32.mrb[0].mxu0
  %v879 = vadd.f32 0.0, %v878
  %880 = vmatprep.mubr.f32.mxu0 0.0
  %881 = vmatmul.mubr.f32.gmra.mrb[0].mxu0 %v724
  %v882 = vpop.f32.mrb[0].mxu0
  %v883 = vadd.f32 0.0, %v882
  %v884 = vpop.f32.mrb[0].mxu0
  %v885 = vadd.f32 0.0, %v884
  %886 = vmatprep.mubr.f32.mxu0 0.0
  %887 = vmatmul.mubr.f32.gmra.mrb[0].mxu0 %v727
  %v888 = vpop.f32.mrb[0].mxu0
  %v889 = vadd.f32 0.0, %v888
  %v890 = vpop.f32.mrb[0].mxu0
  %v891 = vadd.f32 0.0, %v890
  %892 = vmatprep.mubr.f32.mxu0 0.0
  %893 = vmatmul.mubr.f32.gmra.mrb[0].mxu0 %v730
  %v894 = vpop.f32.mrb[0].mxu0
  %v895 = vadd.f32 0.0, %v894
  %v896 = vpop.f32.mrb[0].mxu0
  %v897 = vadd.f32 0.0, %v896
  %898 = vmatprep.mubr.f32.mxu0 0.0
  %899 = vmatmul.mubr.f32.gmra.mrb[0].mxu0 %v733
  %v900 = vpop.f32.mrb[0].mxu0
  %v901 = vadd.f32 0.0, %v900
  %v902 = vpop.f32.mrb[0].mxu0
  %v903 = vadd.f32 0.0, %v902
  %904 = vmatprep.mubr.f32.mxu0 0.0
  %905 = vmatmul.mubr.f32.gmra.mrb[0].mxu0 %v736
  %v906 = vpop.f32.mrb[0].mxu0
  %v907 = vadd.f32 0.0, %v906
  %v908 = vpop.f32.mrb[0].mxu0
  %v909 = vadd.f32 0.0, %v908
  %910 = vmatprep.mubr.f32.mxu0 0.0
  %911 = vmatmul.mubr.f32.gmra.mrb[0].mxu0 %v739
  %v912 = vpop.f32.mrb[0].mxu0
  %v913 = vadd.f32 0.0, %v912
  %v914 = vpop.f32.mrb[0].mxu0
  %v915 = vadd.f32 0.0, %v914
  %916 = vmatprep.mubr.f32.mxu0 0.0
  %917 = vmatmul.mubr.f32.gmra.mrb[0].mxu0 %v742
  %v918 = vpop.f32.mrb[0].mxu0
  %v919 = vadd.f32 0.0, %v918
  %v920 = vpop.f32.mrb[0].mxu0
  %v921 = vadd.f32 0.0, %v920
  %922 = vmatprep.mubr.f32.mxu0 0.0
  %923 = vmatmul.mubr.f32.gmra.mrb[0].mxu0 %v745
  %v924 = vpop.f32.mrb[0].mxu0
  %v925 = vadd.f32 0.0, %v924
  %v926 = vpop.f32.mrb[0].mxu0
  %v927 = vadd.f32 0.0, %v926
  %928 = vmatprep.mubr.f32.mxu0 0.0
  %929 = vmatmul.mubr.f32.gmra.mrb[0].mxu0 %v748
  %v930 = vpop.f32.mrb[0].mxu0
  %v931 = vadd.f32 0.0, %v930
  %v932 = vpop.f32.mrb[0].mxu0
  %v933 = vadd.f32 0.0, %v932
  %934 = vmatprep.mubr.f32.mxu0 0.0
  %935 = vmatmul.mubr.f32.gmra.mrb[0].mxu0 %v751
  %v936 = vpop.f32.mrb[0].mxu0
  %v937 = vadd.f32 0.0, %v936
  %v938 = vpop.f32.mrb[0].mxu0
  %v939 = vadd.f32 0.0, %v938
  %940 = vmatprep.mubr.f32.mxu0 0.0
  %941 = vmatmul.mubr.f32.gmra.mrb[0].mxu0 %v754
  %v942 = vpop.f32.mrb[0].mxu0
  %v943 = vadd.f32 0.0, %v942
  %v944 = vpop.f32.mrb[0].mxu0
  %v945 = vadd.f32 0.0, %v944
  %946 = vmatprep.mubr.f32.mxu0 0.0
  %947 = vmatmul.mubr.f32.gmra.mrb[0].mxu0 %v757
  %v948 = vpop.f32.mrb[0].mxu0
  %v949 = vadd.f32 0.0, %v948
  %v950 = vpop.f32.mrb[0].mxu0
  %v951 = vadd.f32 0.0, %v950
  %952 = vmatprep.mubr.f32.mxu0 0.0
  %953 = vmatmul.mubr.f32.gmra.mrb[0].mxu0 %v760
  %v954 = vpop.f32.mrb[0].mxu0
  %v955 = vadd.f32 0.0, %v954
  %v956 = vpop.f32.mrb[0].mxu0
  %v957 = vadd.f32 0.0, %v956
  %958 = vmatprep.mubr.f32.mxu0 0.0
  %959 = vmatmul.mubr.f32.gmra.mrb[0].mxu0 %v763
  %v960 = vpop.f32.mrb[0].mxu0
  %v961 = vadd.f32 0.0, %v960
  %v962 = vpop.f32.mrb[0].mxu0
  %v963 = vadd.f32 0.0, %v962
  %964 = vmatprep.mubr.f32.mxu0 0.0
  %965 = vmatmul.mubr.f32.gmra.mrb[0].mxu0 %v766
  %v966 = vpop.f32.mrb[0].mxu0
  %v967 = vadd.f32 0.0, %v966
  %v968 = vpop.f32.mrb[0].mxu0
  %v969 = vadd.f32 0.0, %v968
  %970 = vmatprep.mubr.f32.mxu0 0.0
  %971 = vmatmul.mubr.f32.gmra.mrb[0].mxu0 %v769
  %v972 = vpop.f32.mrb[0].mxu0
  %v973 = vadd.f32 0.0, %v972
  %v974 = vpop.f32.mrb[0].mxu0
  %v975 = vadd.f32 0.0, %v974
  %976 = vmatprep.mubr.f32.mxu0 0.0
  %977 = vmatmul.mubr.f32.gmra.mrb[0].mxu0 %v772
  %v978 = vpop.f32.mrb[0].mxu0
  %v979 = vadd.f32 0.0, %v978
  %v980 = vpop.f32.mrb[0].mxu0
  %v981 = vadd.f32 0.0, %v980
  %982 = vmatprep.mubr.f32.mxu0 0.0
  %983 = vmatmul.mubr.f32.gmra.mrb[0].mxu0 %v775
  %v984 = vpop.f32.mrb[0].mxu0
  %v985 = vadd.f32 0.0, %v984
  %v986 = vpop.f32.mrb[0].mxu0
  %v987 = vadd.f32 0.0, %v986
  %988 = vmatprep.mubr.f32.mxu0 0.0
  %989 = vmatmul.mubr.f32.gmra.mrb[0].mxu0 %v778
  %v990 = vpop.f32.mrb[0].mxu0
  %v991 = vadd.f32 0.0, %v990
  %v992 = vpop.f32.mrb[0].mxu0
  %v993 = vadd.f32 0.0, %v992
  %994 = vdwg.mxu0
  %v995 = vadd.f32 %v532, %v853
  %v996 = vadd.f32 %v534, %v855
  %v997 = vadd.f32 %v538, %v859
  %v998 = vadd.f32 %v540, %v861
  %v999 = vadd.f32 %v544, %v865
  %v1000 = vadd.f32 %v546, %v867
  %v1001 = vadd.f32 %v550, %v871
  %v1002 = vadd.f32 %v552, %v873
  %v1003 = vadd.f32 %v556, %v877
  %v1004 = vadd.f32 %v558, %v879
  %v1005 = vadd.f32 %v562, %v883
  %v1006 = vadd.f32 %v564, %v885
  %v1007 = vadd.f32 %v568, %v889
  %v1008 = vadd.f32 %v570, %v891
  %v1009 = vadd.f32 %v574, %v895
  %v1010 = vadd.f32 %v576, %v897
  %v1011 = vadd.f32 %v580, %v901
  %v1012 = vadd.f32 %v582, %v903
  %v1013 = vadd.f32 %v586, %v907
  %v1014 = vadd.f32 %v588, %v909
  %v1015 = vadd.f32 %v592, %v913
  %v1016 = vadd.f32 %v594, %v915
  %v1017 = vadd.f32 %v598, %v919
  %v1018 = vadd.f32 %v600, %v921
  %v1019 = vadd.f32 %v604, %v925
  %v1020 = vadd.f32 %v606, %v927
  %v1021 = vadd.f32 %v610, %v931
  %v1022 = vadd.f32 %v612, %v933
  %v1023 = vadd.f32 %v616, %v937
  %v1024 = vadd.f32 %v618, %v939
  %v1025 = vadd.f32 %v622, %v943
  %v1026 = vadd.f32 %v624, %v945
  %v1027 = vadd.f32 %v628, %v949
  %v1028 = vadd.f32 %v630, %v951
  %v1029 = vadd.f32 %v634, %v955
  %v1030 = vadd.f32 %v636, %v957
  %v1031 = vadd.f32 %v640, %v961
  %v1032 = vadd.f32 %v642, %v963
  %v1033 = vadd.f32 %v646, %v967
  %v1034 = vadd.f32 %v648, %v969
  %v1035 = vadd.f32 %v652, %v973
  %v1036 = vadd.f32 %v654, %v975
  %v1037 = vadd.f32 %v658, %v979
  %v1038 = vadd.f32 %v660, %v981
  %v1039 = vadd.f32 %v664, %v985
  %v1040 = vadd.f32 %v666, %v987
  %v1041 = vadd.f32 %v670, %v991
  %v1042 = vadd.f32 %v672, %v993
  %s1043 = scalar_lea.vmem %s0, 24
  %v1044 = vld [vmem:[%s1043] sm:$0xff]
  %v1045 = vld [vmem:[%s1043 + $0x8] sm:$0xff]
  %v1046 = vld [vmem:[%s1043 + $0x10] sm:$0xff]
  %v1047 = vld [vmem:[%s1043 + $0x18] sm:$0xff]
  %v1048 = vld [vmem:[%s1043 + $0x20] sm:$0xff]
  %v1049 = vld [vmem:[%s1043 + $0x28] sm:$0xff]
  %v1050 = vld [vmem:[%s1043 + $0x30] sm:$0xff]
  %v1051 = vld [vmem:[%s1043 + $0x38] sm:$0xff]
  %v1052 = vld [vmem:[%s1043 + $0x40] sm:$0xff]
  %v1053 = vld [vmem:[%s1043 + $0x48] sm:$0xff]
  %v1054 = vld [vmem:[%s1043 + $0x50] sm:$0xff]
  %v1055 = vld [vmem:[%s1043 + $0x58] sm:$0xff]
  %v1056 = vld [vmem:[%s1043 + $0x60] sm:$0xff]
  %v1057 = vld [vmem:[%s1043 + $0x68] sm:$0xff]
  %v1058 = vld [vmem:[%s1043 + $0x70] sm:$0xff]
  %v1059 = vld [vmem:[%s1043 + $0x78] sm:$0xff]
  %v1060 = vld [vmem:[%s1043 + $0x80] sm:$0xff]
  %v1061 = vld [vmem:[%s1043 + $0x88] sm:$0xff]
  %v1062 = vld [vmem:[%s1043 + $0x90] sm:$0xff]
  %v1063 = vld [vmem:[%s1043 + $0x98] sm:$0xff]
  %v1064 = vld [vmem:[%s1043 + $0xa0] sm:$0xff]
  %v1065 = vld [vmem:[%s1043 + $0xa8] sm:$0xff]
  %v1066 = vld [vmem:[%s1043 + $0xb0] sm:$0xff]
  %v1067 = vld [vmem:[%s1043 + $0xb8] sm:$0xff]
  %s1068 = scalar_lea.vmem %s1, 192
  %v1069 = vld [vmem:[%s1068] sm:$0xff]
  %v1070 = vld [vmem:[%s1068 + $0x8] sm:$0xff]
  %v1071 = vld [vmem:[%s1068 + $0x10] sm:$0xff]
  %v1072 = vld [vmem:[%s1068 + $0x18] sm:$0xff]
  %v1073 = vld [vmem:[%s1068 + $0x20] sm:$0xff]
  %v1074 = vld [vmem:[%s1068 + $0x28] sm:$0xff]
  %v1075 = vld [vmem:[%s1068 + $0x30] sm:$0xf]
  %v1076 = vld [vmem:[%s1068 + $0x38] sm:$0xf]
  %v1078 = vsel %vm98, %v1044, 0
  %v1081 = vsel %vm98, %v1045, 0
  %v1084 = vsel %vm98, %v1046, 0
  %v1087 = vsel %vm98, %v1047, 0
  %v1090 = vsel %vm98, %v1048, 0
  %v1093 = vsel %vm98, %v1049, 0
  %v1096 = vsel %vm98, %v1050, 0
  %v1099 = vsel %vm98, %v1051, 0
  %v1102 = vsel %vm98, %v1052, 0
  %v1105 = vsel %vm98, %v1053, 0
  %v1108 = vsel %vm98, %v1054, 0
  %v1111 = vsel %vm98, %v1055, 0
  %v1114 = vsel %vm98, %v1056, 0
  %v1117 = vsel %vm98, %v1057, 0
  %v1120 = vsel %vm98, %v1058, 0
  %v1123 = vsel %vm98, %v1059, 0
  %v1126 = vsel %vm98, %v1060, 0
  %v1129 = vsel %vm98, %v1061, 0
  %v1132 = vsel %vm98, %v1062, 0
  %v1135 = vsel %vm98, %v1063, 0
  %v1138 = vsel %vm98, %v1064, 0
  %v1141 = vsel %vm98, %v1065, 0
  %v1144 = vsel %vm98, %v1066, 0
  %v1147 = vsel %vm98, %v1067, 0
  %v1150 = vsel %vm171, %v1075, 0
  %v1153 = vsel %vm171, %v1076, 0
  %1155 = vmatprep.subr.mxu0 %v1070
  %1156 = vmatpush1.msra.mxu0 %v1069
  %1157 = vmatprep.subr.mxu0 %v1072
  %1158 = vmatpush1.msra.mxu0 %v1071
  %1159 = vmatprep.subr.mxu0 %v1074
  %1160 = vmatpush1.msra.mxu0 %v1073
  %1161 = vmatprep.subr.mxu0 %v1153
  %1162 = vmatpush1.msra.mxu0 %v1150
  %1163 = vmatprep.subr.mxu0 0.0
  %1164 = vmatpush1.msra.mxu0 0.0
  %1165 = vmatprep.subr.mxu0 0.0
  %1166 = vmatpush1.msra.mxu0 0.0
  %1167 = vmatprep.subr.mxu0 0.0
  %1168 = vmatpush1.msra.mxu0 0.0
  %1169 = vmatprep.subr.mxu0 0.0
  %1170 = vmatpush1.msra.mxu0 0.0
  %1171 = vmatprep.subr.mxu0 0.0
  %1172 = vmatpush1.msra.mxu0 0.0
  %1173 = vmatprep.subr.mxu0 0.0
  %1174 = vmatpush1.msra.mxu0 0.0
  %1175 = vmatprep.subr.mxu0 0.0
  %1176 = vmatpush1.msra.mxu0 0.0
  %1177 = vmatprep.subr.mxu0 0.0
  %1178 = vmatpush1.msra.mxu0 0.0
  %1179 = vmatprep.subr.mxu0 0.0
  %1180 = vmatpush1.msra.mxu0 0.0
  %1181 = vmatprep.subr.mxu0 0.0
  %1182 = vmatpush1.msra.mxu0 0.0
  %1183 = vmatprep.subr.mxu0 0.0
  %1184 = vmatpush1.msra.mxu0 0.0
  %1185 = vmatprep.subr.mxu0 0.0
  %1186 = vmatpush1.msra.mxu0 0.0
  %1187 = vmatprep.subr.mxu0 0.0
  %1188 = vmatpush1.msra.mxu0 0.0
  %1189 = vmatprep.subr.mxu0 0.0
  %1190 = vmatpush1.msra.mxu0 0.0
  %1191 = vmatprep.subr.mxu0 0.0
  %1192 = vmatpush1.msra.mxu0 0.0
  %1193 = vmatprep.subr.mxu0 0.0
  %1194 = vmatpush1.msra.mxu0 0.0
  %1195 = vmatprep.subr.mxu0 0.0
  %1196 = vmatpush1.msra.mxu0 0.0
  %1197 = vmatprep.subr.mxu0 0.0
  %1198 = vmatpush1.msra.mxu0 0.0
  %1199 = vmatprep.subr.mxu0 0.0
  %1200 = vmatpush1.msra.mxu0 0.0
  %1201 = vmatprep.subr.mxu0 0.0
  %1202 = vmatpush1.msra.mxu0 0.0
  %1203 = vmatprep.subr.mxu0 0.0
  %1204 = vmatpush1.msra.mxu0 0.0
  %1205 = vmatprep.subr.mxu0 0.0
  %1206 = vmatpush1.msra.mxu0 0.0
  %1207 = vmatprep.subr.mxu0 0.0
  %1208 = vmatpush1.msra.mxu0 0.0
  %1209 = vmatprep.subr.mxu0 0.0
  %1210 = vmatpush1.msra.mxu0 0.0
  %1211 = vmatprep.subr.mxu0 0.0
  %1212 = vmatpush1.msra.mxu0 0.0
  %1213 = vmatprep.subr.mxu0 0.0
  %1214 = vmatpush1.msra.mxu0 0.0
  %1215 = vmatprep.subr.mxu0 0.0
  %1216 = vmatpush1.msra.mxu0 0.0
  %1217 = vmatprep.subr.mxu0 0.0
  %1218 = vmatpush1.msra.mxu0 0.0
  %1219 = vmatprep.mubr.f32.mxu0 0.0
  %1220 = vmatmul.mubr.f32.gmra.mrb[0].mxu0 %v1078
  %v1221 = vpop.f32.mrb[0].mxu0
  %v1222 = vadd.f32 0.0, %v1221
  %v1223 = vpop.f32.mrb[0].mxu0
  %v1224 = vadd.f32 0.0, %v1223
  %1225 = vmatprep.mubr.f32.mxu0 0.0
  %1226 = vmatmul.mubr.f32.gmra.mrb[0].mxu0 %v1081
  %v1227 = vpop.f32.mrb[0].mxu0
  %v1228 = vadd.f32 0.0, %v1227
  %v1229 = vpop.f32.mrb[0].mxu0
  %v1230 = vadd.f32 0.0, %v1229
  %1231 = vmatprep.mubr.f32.mxu0 0.0
  %1232 = vmatmul.mubr.f32.gmra.mrb[0].mxu0 %v1084
  %v1233 = vpop.f32.mrb[0].mxu0
  %v1234 = vadd.f32 0.0, %v1233
  %v1235 = vpop.f32.mrb[0].mxu0
  %v1236 = vadd.f32 0.0, %v1235
  %1237 = vmatprep.mubr.f32.mxu0 0.0
  %1238 = vmatmul.mubr.f32.gmra.mrb[0].mxu0 %v1087
  %v1239 = vpop.f32.mrb[0].mxu0
  %v1240 = vadd.f32 0.0, %v1239
  %v1241 = vpop.f32.mrb[0].mxu0
  %v1242 = vadd.f32 0.0, %v1241
  %1243 = vmatprep.mubr.f32.mxu0 0.0
  %1244 = vmatmul.mubr.f32.gmra.mrb[0].mxu0 %v1090
  %v1245 = vpop.f32.mrb[0].mxu0
  %v1246 = vadd.f32 0.0, %v1245
  %v1247 = vpop.f32.mrb[0].mxu0
  %v1248 = vadd.f32 0.0, %v1247
  %1249 = vmatprep.mubr.f32.mxu0 0.0
  %1250 = vmatmul.mubr.f32.gmra.mrb[0].mxu0 %v1093
  %v1251 = vpop.f32.mrb[0].mxu0
  %v1252 = vadd.f32 0.0, %v1251
  %v1253 = vpop.f32.mrb[0].mxu0
  %v1254 = vadd.f32 0.0, %v1253
  %1255 = vmatprep.mubr.f32.mxu0 0.0
  %1256 = vmatmul.mubr.f32.gmra.mrb[0].mxu0 %v1096
  %v1257 = vpop.f32.mrb[0].mxu0
  %v1258 = vadd.f32 0.0, %v1257
  %v1259 = vpop.f32.mrb[0].mxu0
  %v1260 = vadd.f32 0.0, %v1259
  %1261 = vmatprep.mubr.f32.mxu0 0.0
  %1262 = vmatmul.mubr.f32.gmra.mrb[0].mxu0 %v1099
  %v1263 = vpop.f32.mrb[0].mxu0
  %v1264 = vadd.f32 0.0, %v1263
  %v1265 = vpop.f32.mrb[0].mxu0
  %v1266 = vadd.f32 0.0, %v1265
  %1267 = vmatprep.mubr.f32.mxu0 0.0
  %1268 = vmatmul.mubr.f32.gmra.mrb[0].mxu0 %v1102
  %v1269 = vpop.f32.mrb[0].mxu0
  %v1270 = vadd.f32 0.0, %v1269
  %v1271 = vpop.f32.mrb[0].mxu0
  %v1272 = vadd.f32 0.0, %v1271
  %1273 = vmatprep.mubr.f32.mxu0 0.0
  %1274 = vmatmul.mubr.f32.gmra.mrb[0].mxu0 %v1105
  %v1275 = vpop.f32.mrb[0].mxu0
  %v1276 = vadd.f32 0.0, %v1275
  %v1277 = vpop.f32.mrb[0].mxu0
  %v1278 = vadd.f32 0.0, %v1277
  %1279 = vmatprep.mubr.f32.mxu0 0.0
  %1280 = vmatmul.mubr.f32.gmra.mrb[0].mxu0 %v1108
  %v1281 = vpop.f32.mrb[0].mxu0
  %v1282 = vadd.f32 0.0, %v1281
  %v1283 = vpop.f32.mrb[0].mxu0
  %v1284 = vadd.f32 0.0, %v1283
  %1285 = vmatprep.mubr.f32.mxu0 0.0
  %1286 = vmatmul.mubr.f32.gmra.mrb[0].mxu0 %v1111
  %v1287 = vpop.f32.mrb[0].mxu0
  %v1288 = vadd.f32 0.0, %v1287
  %v1289 = vpop.f32.mrb[0].mxu0
  %v1290 = vadd.f32 0.0, %v1289
  %1291 = vmatprep.mubr.f32.mxu0 0.0
  %1292 = vmatmul.mubr.f32.gmra.mrb[0].mxu0 %v1114
  %v1293 = vpop.f32.mrb[0].mxu0
  %v1294 = vadd.f32 0.0, %v1293
  %v1295 = vpop.f32.mrb[0].mxu0
  %v1296 = vadd.f32 0.0, %v1295
  %1297 = vmatprep.mubr.f32.mxu0 0.0
  %1298 = vmatmul.mubr.f32.gmra.mrb[0].mxu0 %v1117
  %v1299 = vpop.f32.mrb[0].mxu0
  %v1300 = vadd.f32 0.0, %v1299
  %v1301 = vpop.f32.mrb[0].mxu0
  %v1302 = vadd.f32 0.0, %v1301
  %1303 = vmatprep.mubr.f32.mxu0 0.0
  %1304 = vmatmul.mubr.f32.gmra.mrb[0].mxu0 %v1120
  %v1305 = vpop.f32.mrb[0].mxu0
  %v1306 = vadd.f32 0.0, %v1305
  %v1307 = vpop.f32.mrb[0].mxu0
  %v1308 = vadd.f32 0.0, %v1307
  %1309 = vmatprep.mubr.f32.mxu0 0.0
  %1310 = vmatmul.mubr.f32.gmra.mrb[0].mxu0 %v1123
  %v1311 = vpop.f32.mrb[0].mxu0
  %v1312 = vadd.f32 0.0, %v1311
  %v1313 = vpop.f32.mrb[0].mxu0
  %v1314 = vadd.f32 0.0, %v1313
  %1315 = vmatprep.mubr.f32.mxu0 0.0
  %1316 = vmatmul.mubr.f32.gmra.mrb[0].mxu0 %v1126
  %v1317 = vpop.f32.mrb[0].mxu0
  %v1318 = vadd.f32 0.0, %v1317
  %v1319 = vpop.f32.mrb[0].mxu0
  %v1320 = vadd.f32 0.0, %v1319
  %1321 = vmatprep.mubr.f32.mxu0 0.0
  %1322 = vmatmul.mubr.f32.gmra.mrb[0].mxu0 %v1129
  %v1323 = vpop.f32.mrb[0].mxu0
  %v1324 = vadd.f32 0.0, %v1323
  %v1325 = vpop.f32.mrb[0].mxu0
  %v1326 = vadd.f32 0.0, %v1325
  %1327 = vmatprep.mubr.f32.mxu0 0.0
  %1328 = vmatmul.mubr.f32.gmra.mrb[0].mxu0 %v1132
  %v1329 = vpop.f32.mrb[0].mxu0
  %v1330 = vadd.f32 0.0, %v1329
  %v1331 = vpop.f32.mrb[0].mxu0
  %v1332 = vadd.f32 0.0, %v1331
  %1333 = vmatprep.mubr.f32.mxu0 0.0
  %1334 = vmatmul.mubr.f32.gmra.mrb[0].mxu0 %v1135
  %v1335 = vpop.f32.mrb[0].mxu0
  %v1336 = vadd.f32 0.0, %v1335
  %v1337 = vpop.f32.mrb[0].mxu0
  %v1338 = vadd.f32 0.0, %v1337
  %1339 = vmatprep.mubr.f32.mxu0 0.0
  %1340 = vmatmul.mubr.f32.gmra.mrb[0].mxu0 %v1138
  %v1341 = vpop.f32.mrb[0].mxu0
  %v1342 = vadd.f32 0.0, %v1341
  %v1343 = vpop.f32.mrb[0].mxu0
  %v1344 = vadd.f32 0.0, %v1343
  %1345 = vmatprep.mubr.f32.mxu0 0.0
  %1346 = vmatmul.mubr.f32.gmra.mrb[0].mxu0 %v1141
  %v1347 = vpop.f32.mrb[0].mxu0
  %v1348 = vadd.f32 0.0, %v1347
  %v1349 = vpop.f32.mrb[0].mxu0
  %v1350 = vadd.f32 0.0, %v1349
  %1351 = vmatprep.mubr.f32.mxu0 0.0
  %1352 = vmatmul.mubr.f32.gmra.mrb[0].mxu0 %v1144
  %v1353 = vpop.f32.mrb[0].mxu0
  %v1354 = vadd.f32 0.0, %v1353
  %v1355 = vpop.f32.mrb[0].mxu0
  %v1356 = vadd.f32 0.0, %v1355
  %1357 = vmatprep.mubr.f32.mxu0 0.0
  %1358 = vmatmul.mubr.f32.gmra.mrb[0].mxu0 %v1147
  %v1359 = vpop.f32.mrb[0].mxu0
  %v1360 = vadd.f32 0.0, %v1359
  %v1361 = vpop.f32.mrb[0].mxu0
  %v1362 = vadd.f32 0.0, %v1361
  %1363 = vdwg.mxu0
  %v1364 = vadd.f32 %v995, %v1222
  %v1365 = vadd.f32 %v996, %v1224
  %v1366 = vadd.f32 %v997, %v1228
  %v1367 = vadd.f32 %v998, %v1230
  %v1368 = vadd.f32 %v999, %v1234
  %v1369 = vadd.f32 %v1000, %v1236
  %v1370 = vadd.f32 %v1001, %v1240
  %v1371 = vadd.f32 %v1002, %v1242
  %v1372 = vadd.f32 %v1003, %v1246
  %v1373 = vadd.f32 %v1004, %v1248
  %v1374 = vadd.f32 %v1005, %v1252
  %v1375 = vadd.f32 %v1006, %v1254
  %v1376 = vadd.f32 %v1007, %v1258
  %v1377 = vadd.f32 %v1008, %v1260
  %v1378 = vadd.f32 %v1009, %v1264
  %v1379 = vadd.f32 %v1010, %v1266
  %v1380 = vadd.f32 %v1011, %v1270
  %v1381 = vadd.f32 %v1012, %v1272
  %v1382 = vadd.f32 %v1013, %v1276
  %v1383 = vadd.f32 %v1014, %v1278
  %v1384 = vadd.f32 %v1015, %v1282
  %v1385 = vadd.f32 %v1016, %v1284
  %v1386 = vadd.f32 %v1017, %v1288
  %v1387 = vadd.f32 %v1018, %v1290
  %v1388 = vadd.f32 %v1019, %v1294
  %v1389 = vadd.f32 %v1020, %v1296
  %v1390 = vadd.f32 %v1021, %v1300
  %v1391 = vadd.f32 %v1022, %v1302
  %v1392 = vadd.f32 %v1023, %v1306
  %v1393 = vadd.f32 %v1024, %v1308
  %v1394 = vadd.f32 %v1025, %v1312
  %v1395 = vadd.f32 %v1026, %v1314
  %v1396 = vadd.f32 %v1027, %v1318
  %v1397 = vadd.f32 %v1028, %v1320
  %v1398 = vadd.f32 %v1029, %v1324
  %v1399 = vadd.f32 %v1030, %v1326
  %v1400 = vadd.f32 %v1031, %v1330
  %v1401 = vadd.f32 %v1032, %v1332
  %v1402 = vadd.f32 %v1033, %v1336
  %v1403 = vadd.f32 %v1034, %v1338
  %v1404 = vadd.f32 %v1035, %v1342
  %v1405 = vadd.f32 %v1036, %v1344
  %v1406 = vadd.f32 %v1037, %v1348
  %v1407 = vadd.f32 %v1038, %v1350
  %v1408 = vadd.f32 %v1039, %v1354
  %v1409 = vadd.f32 %v1040, %v1356
  %v1410 = vadd.f32 %v1041, %v1360
  %v1411 = vadd.f32 %v1042, %v1362
  %s1412 = scalar_lea.vmem %s0, 32
  %v1413 = vld [vmem:[%s1412] sm:$0xff]
  %v1414 = vld [vmem:[%s1412 + $0x8] sm:$0xff]
  %v1415 = vld [vmem:[%s1412 + $0x10] sm:$0xff]
  %v1416 = vld [vmem:[%s1412 + $0x18] sm:$0xff]
  %v1417 = vld [vmem:[%s1412 + $0x20] sm:$0xff]
  %v1418 = vld [vmem:[%s1412 + $0x28] sm:$0xff]
  %v1419 = vld [vmem:[%s1412 + $0x30] sm:$0xff]
  %v1420 = vld [vmem:[%s1412 + $0x38] sm:$0xff]
  %v1421 = vld [vmem:[%s1412 + $0x40] sm:$0xff]
  %v1422 = vld [vmem:[%s1412 + $0x48] sm:$0xff]
  %v1423 = vld [vmem:[%s1412 + $0x50] sm:$0xff]
  %v1424 = vld [vmem:[%s1412 + $0x58] sm:$0xff]
  %v1425 = vld [vmem:[%s1412 + $0x60] sm:$0xff]
  %v1426 = vld [vmem:[%s1412 + $0x68] sm:$0xff]
  %v1427 = vld [vmem:[%s1412 + $0x70] sm:$0xff]
  %v1428 = vld [vmem:[%s1412 + $0x78] sm:$0xff]
  %v1429 = vld [vmem:[%s1412 + $0x80] sm:$0xff]
  %v1430 = vld [vmem:[%s1412 + $0x88] sm:$0xff]
  %v1431 = vld [vmem:[%s1412 + $0x90] sm:$0xff]
  %v1432 = vld [vmem:[%s1412 + $0x98] sm:$0xff]
  %v1433 = vld [vmem:[%s1412 + $0xa0] sm:$0xff]
  %v1434 = vld [vmem:[%s1412 + $0xa8] sm:$0xff]
  %v1435 = vld [vmem:[%s1412 + $0xb0] sm:$0xff]
  %v1436 = vld [vmem:[%s1412 + $0xb8] sm:$0xff]
  %s1437 = scalar_lea.vmem %s1, 256
  %v1438 = vld [vmem:[%s1437] sm:$0xff]
  %v1439 = vld [vmem:[%s1437 + $0x8] sm:$0xff]
  %v1440 = vld [vmem:[%s1437 + $0x10] sm:$0xff]
  %v1441 = vld [vmem:[%s1437 + $0x18] sm:$0xff]
  %v1442 = vld [vmem:[%s1437 + $0x20] sm:$0xff]
  %v1443 = vld [vmem:[%s1437 + $0x28] sm:$0xff]
  %v1444 = vld [vmem:[%s1437 + $0x30] sm:$0xf]
  %v1445 = vld [vmem:[%s1437 + $0x38] sm:$0xf]
  %v1447 = vsel %vm98, %v1413, 0
  %v1450 = vsel %vm98, %v1414, 0
  %v1453 = vsel %vm98, %v1415, 0
  %v1456 = vsel %vm98, %v1416, 0
  %v1459 = vsel %vm98, %v1417, 0
  %v1462 = vsel %vm98, %v1418, 0
  %v1465 = vsel %vm98, %v1419, 0
  %v1468 = vsel %vm98, %v1420, 0
  %v1471 = vsel %vm98, %v1421, 0
  %v1474 = vsel %vm98, %v1422, 0
  %v1477 = vsel %vm98, %v1423, 0
  %v1480 = vsel %vm98, %v1424, 0
  %v1483 = vsel %vm98, %v1425, 0
  %v1486 = vsel %vm98, %v1426, 0
  %v1489 = vsel %vm98, %v1427, 0
  %v1492 = vsel %vm98, %v1428, 0
  %v1495 = vsel %vm98, %v1429, 0
  %v1498 = vsel %vm98, %v1430, 0
  %v1501 = vsel %vm98, %v1431, 0
  %v1504 = vsel %vm98, %v1432, 0
  %v1507 = vsel %vm98, %v1433, 0
  %v1510 = vsel %vm98, %v1434, 0
  %v1513 = vsel %vm98, %v1435, 0
  %v1516 = vsel %vm98, %v1436, 0
  %v1519 = vsel %vm171, %v1444, 0
  %v1522 = vsel %vm171, %v1445, 0
  %1524 = vmatprep.subr.mxu0 %v1439
  %1525 = vmatpush1.msra.mxu0 %v1438
  %1526 = vmatprep.subr.mxu0 %v1441
  %1527 = vmatpush1.msra.mxu0 %v1440
  %1528 = vmatprep.subr.mxu0 %v1443
  %1529 = vmatpush1.msra.mxu0 %v1442
  %1530 = vmatprep.subr.mxu0 %v1522
  %1531 = vmatpush1.msra.mxu0 %v1519
  %1532 = vmatprep.subr.mxu0 0.0
  %1533 = vmatpush1.msra.mxu0 0.0
  %1534 = vmatprep.subr.mxu0 0.0
  %1535 = vmatpush1.msra.mxu0 0.0
  %1536 = vmatprep.subr.mxu0 0.0
  %1537 = vmatpush1.msra.mxu0 0.0
  %1538 = vmatprep.subr.mxu0 0.0
  %1539 = vmatpush1.msra.mxu0 0.0
  %1540 = vmatprep.subr.mxu0 0.0
  %1541 = vmatpush1.msra.mxu0 0.0
  %1542 = vmatprep.subr.mxu0 0.0
  %1543 = vmatpush1.msra.mxu0 0.0
  %1544 = vmatprep.subr.mxu0 0.0
  %1545 = vmatpush1.msra.mxu0 0.0
  %1546 = vmatprep.subr.mxu0 0.0
  %1547 = vmatpush1.msra.mxu0 0.0
  %1548 = vmatprep.subr.mxu0 0.0
  %1549 = vmatpush1.msra.mxu0 0.0
  %1550 = vmatprep.subr.mxu0 0.0
  %1551 = vmatpush1.msra.mxu0 0.0
  %1552 = vmatprep.subr.mxu0 0.0
  %1553 = vmatpush1.msra.mxu0 0.0
  %1554 = vmatprep.subr.mxu0 0.0
  %1555 = vmatpush1.msra.mxu0 0.0
  %1556 = vmatprep.subr.mxu0 0.0
  %1557 = vmatpush1.msra.mxu0 0.0
  %1558 = vmatprep.subr.mxu0 0.0
  %1559 = vmatpush1.msra.mxu0 0.0
  %1560 = vmatprep.subr.mxu0 0.0
  %1561 = vmatpush1.msra.mxu0 0.0
  %1562 = vmatprep.subr.mxu0 0.0
  %1563 = vmatpush1.msra.mxu0 0.0
  %1564 = vmatprep.subr.mxu0 0.0
  %1565 = vmatpush1.msra.mxu0 0.0
  %1566 = vmatprep.subr.mxu0 0.0
  %1567 = vmatpush1.msra.mxu0 0.0
  %1568 = vmatprep.subr.mxu0 0.0
  %1569 = vmatpush1.msra.mxu0 0.0
  %1570 = vmatprep.subr.mxu0 0.0
  %1571 = vmatpush1.msra.mxu0 0.0
  %1572 = vmatprep.subr.mxu0 0.0
  %1573 = vmatpush1.msra.mxu0 0.0
  %1574 = vmatprep.subr.mxu0 0.0
  %1575 = vmatpush1.msra.mxu0 0.0
  %1576 = vmatprep.subr.mxu0 0.0
  %1577 = vmatpush1.msra.mxu0 0.0
  %1578 = vmatprep.subr.mxu0 0.0
  %1579 = vmatpush1.msra.mxu0 0.0
  %1580 = vmatprep.subr.mxu0 0.0
  %1581 = vmatpush1.msra.mxu0 0.0
  %1582 = vmatprep.subr.mxu0 0.0
  %1583 = vmatpush1.msra.mxu0 0.0
  %1584 = vmatprep.subr.mxu0 0.0
  %1585 = vmatpush1.msra.mxu0 0.0
  %1586 = vmatprep.subr.mxu0 0.0
  %1587 = vmatpush1.msra.mxu0 0.0
  %1588 = vmatprep.mubr.f32.mxu0 0.0
  %1589 = vmatmul.mubr.f32.gmra.mrb[0].mxu0 %v1447
  %v1590 = vpop.f32.mrb[0].mxu0
  %v1591 = vadd.f32 0.0, %v1590
  %v1592 = vpop.f32.mrb[0].mxu0
  %v1593 = vadd.f32 0.0, %v1592
  %1594 = vmatprep.mubr.f32.mxu0 0.0
  %1595 = vmatmul.mubr.f32.gmra.mrb[0].mxu0 %v1450
  %v1596 = vpop.f32.mrb[0].mxu0
  %v1597 = vadd.f32 0.0, %v1596
  %v1598 = vpop.f32.mrb[0].mxu0
  %v1599 = vadd.f32 0.0, %v1598
  %1600 = vmatprep.mubr.f32.mxu0 0.0
  %1601 = vmatmul.mubr.f32.gmra.mrb[0].mxu0 %v1453
  %v1602 = vpop.f32.mrb[0].mxu0
  %v1603 = vadd.f32 0.0, %v1602
  %v1604 = vpop.f32.mrb[0].mxu0
  %v1605 = vadd.f32 0.0, %v1604
  %1606 = vmatprep.mubr.f32.mxu0 0.0
  %1607 = vmatmul.mubr.f32.gmra.mrb[0].mxu0 %v1456
  %v1608 = vpop.f32.mrb[0].mxu0
  %v1609 = vadd.f32 0.0, %v1608
  %v1610 = vpop.f32.mrb[0].mxu0
  %v1611 = vadd.f32 0.0, %v1610
  %1612 = vmatprep.mubr.f32.mxu0 0.0
  %1613 = vmatmul.mubr.f32.gmra.mrb[0].mxu0 %v1459
  %v1614 = vpop.f32.mrb[0].mxu0
  %v1615 = vadd.f32 0.0, %v1614
  %v1616 = vpop.f32.mrb[0].mxu0
  %v1617 = vadd.f32 0.0, %v1616
  %1618 = vmatprep.mubr.f32.mxu0 0.0
  %1619 = vmatmul.mubr.f32.gmra.mrb[0].mxu0 %v1462
  %v1620 = vpop.f32.mrb[0].mxu0
  %v1621 = vadd.f32 0.0, %v1620
  %v1622 = vpop.f32.mrb[0].mxu0
  %v1623 = vadd.f32 0.0, %v1622
  %1624 = vmatprep.mubr.f32.mxu0 0.0
  %1625 = vmatmul.mubr.f32.gmra.mrb[0].mxu0 %v1465
  %v1626 = vpop.f32.mrb[0].mxu0
  %v1627 = vadd.f32 0.0, %v1626
  %v1628 = vpop.f32.mrb[0].mxu0
  %v1629 = vadd.f32 0.0, %v1628
  %1630 = vmatprep.mubr.f32.mxu0 0.0
  %1631 = vmatmul.mubr.f32.gmra.mrb[0].mxu0 %v1468
  %v1632 = vpop.f32.mrb[0].mxu0
  %v1633 = vadd.f32 0.0, %v1632
  %v1634 = vpop.f32.mrb[0].mxu0
  %v1635 = vadd.f32 0.0, %v1634
  %1636 = vmatprep.mubr.f32.mxu0 0.0
  %1637 = vmatmul.mubr.f32.gmra.mrb[0].mxu0 %v1471
  %v1638 = vpop.f32.mrb[0].mxu0
  %v1639 = vadd.f32 0.0, %v1638
  %v1640 = vpop.f32.mrb[0].mxu0
  %v1641 = vadd.f32 0.0, %v1640
  %1642 = vmatprep.mubr.f32.mxu0 0.0
  %1643 = vmatmul.mubr.f32.gmra.mrb[0].mxu0 %v1474
  %v1644 = vpop.f32.mrb[0].mxu0
  %v1645 = vadd.f32 0.0, %v1644
  %v1646 = vpop.f32.mrb[0].mxu0
  %v1647 = vadd.f32 0.0, %v1646
  %1648 = vmatprep.mubr.f32.mxu0 0.0
  %1649 = vmatmul.mubr.f32.gmra.mrb[0].mxu0 %v1477
  %v1650 = vpop.f32.mrb[0].mxu0
  %v1651 = vadd.f32 0.0, %v1650
  %v1652 = vpop.f32.mrb[0].mxu0
  %v1653 = vadd.f32 0.0, %v1652
  %1654 = vmatprep.mubr.f32.mxu0 0.0
  %1655 = vmatmul.mubr.f32.gmra.mrb[0].mxu0 %v1480
  %v1656 = vpop.f32.mrb[0].mxu0
  %v1657 = vadd.f32 0.0, %v1656
  %v1658 = vpop.f32.mrb[0].mxu0
  %v1659 = vadd.f32 0.0, %v1658
  %1660 = vmatprep.mubr.f32.mxu0 0.0
  %1661 = vmatmul.mubr.f32.gmra.mrb[0].mxu0 %v1483
  %v1662 = vpop.f32.mrb[0].mxu0
  %v1663 = vadd.f32 0.0, %v1662
  %v1664 = vpop.f32.mrb[0].mxu0
  %v1665 = vadd.f32 0.0, %v1664
  %1666 = vmatprep.mubr.f32.mxu0 0.0
  %1667 = vmatmul.mubr.f32.gmra.mrb[0].mxu0 %v1486
  %v1668 = vpop.f32.mrb[0].mxu0
  %v1669 = vadd.f32 0.0, %v1668
  %v1670 = vpop.f32.mrb[0].mxu0
  %v1671 = vadd.f32 0.0, %v1670
  %1672 = vmatprep.mubr.f32.mxu0 0.0
  %1673 = vmatmul.mubr.f32.gmra.mrb[0].mxu0 %v1489
  %v1674 = vpop.f32.mrb[0].mxu0
  %v1675 = vadd.f32 0.0, %v1674
  %v1676 = vpop.f32.mrb[0].mxu0
  %v1677 = vadd.f32 0.0, %v1676
  %1678 = vmatprep.mubr.f32.mxu0 0.0
  %1679 = vmatmul.mubr.f32.gmra.mrb[0].mxu0 %v1492
  %v1680 = vpop.f32.mrb[0].mxu0
  %v1681 = vadd.f32 0.0, %v1680
  %v1682 = vpop.f32.mrb[0].mxu0
  %v1683 = vadd.f32 0.0, %v1682
  %1684 = vmatprep.mubr.f32.mxu0 0.0
  %1685 = vmatmul.mubr.f32.gmra.mrb[0].mxu0 %v1495
  %v1686 = vpop.f32.mrb[0].mxu0
  %v1687 = vadd.f32 0.0, %v1686
  %v1688 = vpop.f32.mrb[0].mxu0
  %v1689 = vadd.f32 0.0, %v1688
  %1690 = vmatprep.mubr.f32.mxu0 0.0
  %1691 = vmatmul.mubr.f32.gmra.mrb[0].mxu0 %v1498
  %v1692 = vpop.f32.mrb[0].mxu0
  %v1693 = vadd.f32 0.0, %v1692
  %v1694 = vpop.f32.mrb[0].mxu0
  %v1695 = vadd.f32 0.0, %v1694
  %1696 = vmatprep.mubr.f32.mxu0 0.0
  %1697 = vmatmul.mubr.f32.gmra.mrb[0].mxu0 %v1501
  %v1698 = vpop.f32.mrb[0].mxu0
  %v1699 = vadd.f32 0.0, %v1698
  %v1700 = vpop.f32.mrb[0].mxu0
  %v1701 = vadd.f32 0.0, %v1700
  %1702 = vmatprep.mubr.f32.mxu0 0.0
  %1703 = vmatmul.mubr.f32.gmra.mrb[0].mxu0 %v1504
  %v1704 = vpop.f32.mrb[0].mxu0
  %v1705 = vadd.f32 0.0, %v1704
  %v1706 = vpop.f32.mrb[0].mxu0
  %v1707 = vadd.f32 0.0, %v1706
  %1708 = vmatprep.mubr.f32.mxu0 0.0
  %1709 = vmatmul.mubr.f32.gmra.mrb[0].mxu0 %v1507
  %v1710 = vpop.f32.mrb[0].mxu0
  %v1711 = vadd.f32 0.0, %v1710
  %v1712 = vpop.f32.mrb[0].mxu0
  %v1713 = vadd.f32 0.0, %v1712
  %1714 = vmatprep.mubr.f32.mxu0 0.0
  %1715 = vmatmul.mubr.f32.gmra.mrb[0].mxu0 %v1510
  %v1716 = vpop.f32.mrb[0].mxu0
  %v1717 = vadd.f32 0.0, %v1716
  %v1718 = vpop.f32.mrb[0].mxu0
  %v1719 = vadd.f32 0.0, %v1718
  %1720 = vmatprep.mubr.f32.mxu0 0.0
  %1721 = vmatmul.mubr.f32.gmra.mrb[0].mxu0 %v1513
  %v1722 = vpop.f32.mrb[0].mxu0
  %v1723 = vadd.f32 0.0, %v1722
  %v1724 = vpop.f32.mrb[0].mxu0
  %v1725 = vadd.f32 0.0, %v1724
  %1726 = vmatprep.mubr.f32.mxu0 0.0
  %1727 = vmatmul.mubr.f32.gmra.mrb[0].mxu0 %v1516
  %v1728 = vpop.f32.mrb[0].mxu0
  %v1729 = vadd.f32 0.0, %v1728
  %v1730 = vpop.f32.mrb[0].mxu0
  %v1731 = vadd.f32 0.0, %v1730
  %1732 = vdwg.mxu0
  %v1733 = vadd.f32 %v1364, %v1591
  %v1734 = vadd.f32 %v1365, %v1593
  %v1735 = vadd.f32 %v1366, %v1597
  %v1736 = vadd.f32 %v1367, %v1599
  %v1737 = vadd.f32 %v1368, %v1603
  %v1738 = vadd.f32 %v1369, %v1605
  %v1739 = vadd.f32 %v1370, %v1609
  %v1740 = vadd.f32 %v1371, %v1611
  %v1741 = vadd.f32 %v1372, %v1615
  %v1742 = vadd.f32 %v1373, %v1617
  %v1743 = vadd.f32 %v1374, %v1621
  %v1744 = vadd.f32 %v1375, %v1623
  %v1745 = vadd.f32 %v1376, %v1627
  %v1746 = vadd.f32 %v1377, %v1629
  %v1747 = vadd.f32 %v1378, %v1633
  %v1748 = vadd.f32 %v1379, %v1635
  %v1749 = vadd.f32 %v1380, %v1639
  %v1750 = vadd.f32 %v1381, %v1641
  %v1751 = vadd.f32 %v1382, %v1645
  %v1752 = vadd.f32 %v1383, %v1647
  %v1753 = vadd.f32 %v1384, %v1651
  %v1754 = vadd.f32 %v1385, %v1653
  %v1755 = vadd.f32 %v1386, %v1657
  %v1756 = vadd.f32 %v1387, %v1659
  %v1757 = vadd.f32 %v1388, %v1663
  %v1758 = vadd.f32 %v1389, %v1665
  %v1759 = vadd.f32 %v1390, %v1669
  %v1760 = vadd.f32 %v1391, %v1671
  %v1761 = vadd.f32 %v1392, %v1675
  %v1762 = vadd.f32 %v1393, %v1677
  %v1763 = vadd.f32 %v1394, %v1681
  %v1764 = vadd.f32 %v1395, %v1683
  %v1765 = vadd.f32 %v1396, %v1687
  %v1766 = vadd.f32 %v1397, %v1689
  %v1767 = vadd.f32 %v1398, %v1693
  %v1768 = vadd.f32 %v1399, %v1695
  %v1769 = vadd.f32 %v1400, %v1699
  %v1770 = vadd.f32 %v1401, %v1701
  %v1771 = vadd.f32 %v1402, %v1705
  %v1772 = vadd.f32 %v1403, %v1707
  %v1773 = vadd.f32 %v1404, %v1711
  %v1774 = vadd.f32 %v1405, %v1713
  %v1775 = vadd.f32 %v1406, %v1717
  %v1776 = vadd.f32 %v1407, %v1719
  %v1777 = vadd.f32 %v1408, %v1723
  %v1778 = vadd.f32 %v1409, %v1725
  %v1779 = vadd.f32 %v1410, %v1729
  %v1780 = vadd.f32 %v1411, %v1731
  %v1781 = vmax.f32 %v1733, %v1735
  %v1782 = vmax.f32 %v1734, %v1736
  %v1783 = vmax.f32 %v1737, %v1739
  %v1784 = vmax.f32 %v1738, %v1740
  %v1785 = vmax.f32 %v1741, %v1743
  %v1786 = vmax.f32 %v1742, %v1744
  %v1787 = vmax.f32 %v1745, %v1747
  %v1788 = vmax.f32 %v1746, %v1748
  %v1789 = vmax.f32 %v1749, %v1751
  %v1790 = vmax.f32 %v1750, %v1752
  %v1791 = vmax.f32 %v1753, %v1755
  %v1792 = vmax.f32 %v1754, %v1756
  %v1793 = vmax.f32 %v1757, %v1759
  %v1794 = vmax.f32 %v1758, %v1760
  %v1795 = vmax.f32 %v1761, %v1763
  %v1796 = vmax.f32 %v1762, %v1764
  %v1797 = vmax.f32 %v1765, %v1767
  %v1798 = vmax.f32 %v1766, %v1768
  %v1799 = vmax.f32 %v1769, %v1771
  %v1800 = vmax.f32 %v1770, %v1772
  %v1801 = vmax.f32 %v1773, %v1775
  %v1802 = vmax.f32 %v1774, %v1776
  %v1803 = vmax.f32 %v1777, %v1779
  %v1804 = vmax.f32 %v1778, %v1780
  %v1805 = vmax.f32 %v1781, %v1782
  %v1806 = vmax.f32 %v1783, %v1784
  %v1807 = vmax.f32 %v1785, %v1786
  %v1808 = vmax.f32 %v1787, %v1788
  %v1809 = vmax.f32 %v1789, %v1790
  %v1810 = vmax.f32 %v1791, %v1792
  %v1811 = vmax.f32 %v1793, %v1794
  %v1812 = vmax.f32 %v1795, %v1796
  %v1813 = vmax.f32 %v1797, %v1798
  %v1814 = vmax.f32 %v1799, %v1800
  %v1815 = vmax.f32 %v1801, %v1802
  %v1816 = vmax.f32 %v1803, %v1804
  %v1817 = vld [vmem:[%s2] sm:$0x1]
  %v1819 = vlaneseq
  %v1820 = vshrl.u32 %v1819, 7
  %v1821 = vsub.s32 0, %v1820
  %v1822 = vrot.slane %v1817, %v1821
  %v1824 = vadd.f32 %v1805, %v1822
  %v1825 = vadd.f32 %v1806, %v1822
  %v1826 = vadd.f32 %v1807, %v1822
  %v1827 = vadd.f32 %v1808, %v1822
  %v1828 = vadd.f32 %v1809, %v1822
  %v1829 = vadd.f32 %v1810, %v1822
  %v1830 = vadd.f32 %v1811, %v1822
  %v1831 = vadd.f32 %v1812, %v1822
  %v1832 = vadd.f32 %v1813, %v1822
  %v1833 = vadd.f32 %v1814, %v1822
  %v1834 = vadd.f32 %v1815, %v1822
  %v1835 = vadd.f32 %v1816, %v1822
  %v1836 = vmax.f32 %v1824, 0.0
  %v1837 = vmax.f32 %v1825, 0.0
  %v1838 = vmax.f32 %v1826, 0.0
  %v1839 = vmax.f32 %v1827, 0.0
  %v1840 = vmax.f32 %v1828, 0.0
  %v1841 = vmax.f32 %v1829, 0.0
  %v1842 = vmax.f32 %v1830, 0.0
  %v1843 = vmax.f32 %v1831, 0.0
  %v1844 = vmax.f32 %v1832, 0.0
  %v1845 = vmax.f32 %v1833, 0.0
  %v1846 = vmax.f32 %v1834, 0.0
  %v1847 = vmax.f32 %v1835, 0.0
  %v1848 = vld [vmem:[%s3] sm:$0xff]
  %v1849 = vld [vmem:[%s3 + $0x8] sm:$0xff]
  %v1850 = vld [vmem:[%s3 + $0x10] sm:$0xff]
  %v1851 = vld [vmem:[%s3 + $0x18] sm:$0xff]
  %v1852 = vld [vmem:[%s3 + $0x20] sm:$0xff]
  %v1853 = vld [vmem:[%s3 + $0x28] sm:$0xff]
  %v1854 = vld [vmem:[%s3 + $0x30] sm:$0xff]
  %v1855 = vld [vmem:[%s3 + $0x38] sm:$0xff]
  %v1856 = vld [vmem:[%s3 + $0x40] sm:$0xff]
  %v1857 = vld [vmem:[%s3 + $0x48] sm:$0xff]
  %v1858 = vld [vmem:[%s3 + $0x50] sm:$0xff]
  %v1859 = vld [vmem:[%s3 + $0x58] sm:$0xff]
  %v1860 = vld [vmem:[%s3 + $0x60] sm:$0xff]
  %v1861 = vld [vmem:[%s3 + $0x68] sm:$0xff]
  %v1862 = vld [vmem:[%s3 + $0x70] sm:$0xff]
  %v1863 = vld [vmem:[%s3 + $0x78] sm:$0xff]
  %v1864 = vld [vmem:[%s3 + $0x80] sm:$0xff]
  %v1865 = vld [vmem:[%s3 + $0x88] sm:$0xff]
  %s1866 = scalar_lea.vmem %s3, 144
  %v1867 = vld [vmem:[%s1866] sm:$0xff]
  %v1868 = vld [vmem:[%s1866 + $0x8] sm:$0xff]
  %v1869 = vld [vmem:[%s1866 + $0x10] sm:$0xff]
  %v1870 = vld [vmem:[%s1866 + $0x18] sm:$0xff]
  %v1871 = vld [vmem:[%s1866 + $0x20] sm:$0xff]
  %v1872 = vld [vmem:[%s1866 + $0x28] sm:$0xff]
  %v1873 = vld [vmem:[%s1866 + $0x30] sm:$0xff]
  %v1874 = vld [vmem:[%s1866 + $0x38] sm:$0xff]
  %v1875 = vld [vmem:[%s1866 + $0x40] sm:$0xff]
  %v1876 = vld [vmem:[%s1866 + $0x48] sm:$0xff]
  %v1877 = vld [vmem:[%s1866 + $0x50] sm:$0xff]
  %v1878 = vld [vmem:[%s1866 + $0x58] sm:$0xff]
  %v1879 = vld [vmem:[%s1866 + $0x60] sm:$0xff]
  %v1880 = vld [vmem:[%s1866 + $0x68] sm:$0xff]
  %v1881 = vld [vmem:[%s1866 + $0x70] sm:$0xff]
  %v1882 = vld [vmem:[%s1866 + $0x78] sm:$0xff]
  %v1883 = vld [vmem:[%s1866 + $0x80] sm:$0xff]
  %v1884 = vld [vmem:[%s1866 + $0x88] sm:$0xff]
  %vm1885 = vcmask 588800
  %v1887 = vsel %vm1885, %v1837, 0
  %v1890 = vsel %vm1885, %v1838, 0
  %v1893 = vsel %vm1885, %v1839, 0
  %v1896 = vsel %vm1885, %v1840, 0
  %v1899 = vsel %vm1885, %v1841, 0
  %v1902 = vsel %vm1885, %v1842, 0
  %v1905 = vsel %vm1885, %v1843, 0
  %v1908 = vsel %vm1885, %v1844, 0
  %1910 = vmatprep.subr.mxu0 %v1868
  %1911 = vmatpush1.msra.mxu0 %v1867
  %1912 = vmatprep.subr.mxu0 %v1870
  %1913 = vmatpush1.msra.mxu0 %v1869
  %1914 = vmatprep.subr.mxu0 %v1872
  %1915 = vmatpush1.msra.mxu0 %v1871
  %1916 = vmatprep.subr.mxu0 %v1874
  %1917 = vmatpush1.msra.mxu0 %v1873
  %1918 = vmatprep.subr.mxu0 %v1876
  %1919 = vmatpush1.msra.mxu0 %v1875
  %1920 = vmatprep.subr.mxu0 %v1878
  %1921 = vmatpush1.msra.mxu0 %v1877
  %1922 = vmatprep.subr.mxu0 %v1880
  %1923 = vmatpush1.msra.mxu0 %v1879
  %1924 = vmatprep.subr.mxu0 %v1882
  %1925 = vmatpush1.msra.mxu0 %v1881
  %1926 = vmatprep.subr.mxu0 %v1884
  %1927 = vmatpush1.msra.mxu0 %v1883
  %1928 = vmatprep.subr.mxu0 0.0
  %1929 = vmatpush1.msra.mxu0 0.0
  %1930 = vmatprep.subr.mxu0 0.0
  %1931 = vmatpush1.msra.mxu0 0.0
  %1932 = vmatprep.subr.mxu0 0.0
  %1933 = vmatpush1.msra.mxu0 0.0
  %1934 = vmatprep.subr.mxu0 0.0
  %1935 = vmatpush1.msra.mxu0 0.0
  %1936 = vmatprep.subr.mxu0 0.0
  %1937 = vmatpush1.msra.mxu0 0.0
  %1938 = vmatprep.subr.mxu0 0.0
  %1939 = vmatpush1.msra.mxu0 0.0
  %1940 = vmatprep.subr.mxu0 0.0
  %1941 = vmatpush1.msra.mxu0 0.0
  %1942 = vmatprep.subr.mxu0 0.0
  %1943 = vmatpush1.msra.mxu0 0.0
  %1944 = vmatprep.subr.mxu0 0.0
  %1945 = vmatpush1.msra.mxu0 0.0
  %1946 = vmatprep.subr.mxu0 0.0
  %1947 = vmatpush1.msra.mxu0 0.0
  %1948 = vmatprep.subr.mxu0 0.0
  %1949 = vmatpush1.msra.mxu0 0.0
  %1950 = vmatprep.subr.mxu0 0.0
  %1951 = vmatpush1.msra.mxu0 0.0
  %1952 = vmatprep.subr.mxu0 0.0
  %1953 = vmatpush1.msra.mxu0 0.0
  %1954 = vmatprep.subr.mxu0 0.0
  %1955 = vmatpush1.msra.mxu0 0.0
  %1956 = vmatprep.subr.mxu0 0.0
  %1957 = vmatpush1.msra.mxu0 0.0
  %1958 = vmatprep.subr.mxu0 0.0
  %1959 = vmatpush1.msra.mxu0 0.0
  %1960 = vmatprep.subr.mxu0 0.0
  %1961 = vmatpush1.msra.mxu0 0.0
  %1962 = vmatprep.subr.mxu0 0.0
  %1963 = vmatpush1.msra.mxu0 0.0
  %1964 = vmatprep.subr.mxu0 0.0
  %1965 = vmatpush1.msra.mxu0 0.0
  %1966 = vmatprep.subr.mxu0 0.0
  %1967 = vmatpush1.msra.mxu0 0.0
  %1968 = vmatprep.subr.mxu0 0.0
  %1969 = vmatpush1.msra.mxu0 0.0
  %1970 = vmatprep.subr.mxu0 0.0
  %1971 = vmatpush1.msra.mxu0 0.0
  %1972 = vmatprep.subr.mxu0 0.0
  %1973 = vmatpush1.msra.mxu0 0.0
  %1974 = vmatprep.mubr.f32.mxu0 0.0
  %1975 = vmatmul.mubr.f32.gmra.mrb[0].mxu0 %v1887
  %v1976 = vpop.f32.mrb[0].mxu0
  %v1977 = vadd.f32 0.0, %v1976
  %v1978 = vpop.f32.mrb[0].mxu0
  %v1979 = vadd.f32 0.0, %v1978
  %1980 = vmatprep.mubr.f32.mxu0 0.0
  %1981 = vmatmul.mubr.f32.gmra.mrb[0].mxu0 %v1890
  %v1982 = vpop.f32.mrb[0].mxu0
  %v1983 = vadd.f32 0.0, %v1982
  %v1984 = vpop.f32.mrb[0].mxu0
  %v1985 = vadd.f32 0.0, %v1984
  %1986 = vmatprep.mubr.f32.mxu0 0.0
  %1987 = vmatmul.mubr.f32.gmra.mrb[0].mxu0 %v1893
  %v1988 = vpop.f32.mrb[0].mxu0
  %v1989 = vadd.f32 0.0, %v1988
  %v1990 = vpop.f32.mrb[0].mxu0
  %v1991 = vadd.f32 0.0, %v1990
  %1992 = vmatprep.mubr.f32.mxu0 0.0
  %1993 = vmatmul.mubr.f32.gmra.mrb[0].mxu0 %v1896
  %v1994 = vpop.f32.mrb[0].mxu0
  %v1995 = vadd.f32 0.0, %v1994
  %v1996 = vpop.f32.mrb[0].mxu0
  %v1997 = vadd.f32 0.0, %v1996
  %1998 = vmatprep.mubr.f32.mxu0 0.0
  %1999 = vmatmul.mubr.f32.gmra.mrb[0].mxu0 %v1899
  %v2000 = vpop.f32.mrb[0].mxu0
  %v2001 = vadd.f32 0.0, %v2000
  %v2002 = vpop.f32.mrb[0].mxu0
  %v2003 = vadd.f32 0.0, %v2002
  %2004 = vmatprep.mubr.f32.mxu0 0.0
  %2005 = vmatmul.mubr.f32.gmra.mrb[0].mxu0 %v1902
  %v2006 = vpop.f32.mrb[0].mxu0
  %v2007 = vadd.f32 0.0, %v2006
  %v2008 = vpop.f32.mrb[0].mxu0
  %v2009 = vadd.f32 0.0, %v2008
  %2010 = vmatprep.mubr.f32.mxu0 0.0
  %2011 = vmatmul.mubr.f32.gmra.mrb[0].mxu0 %v1905
  %v2012 = vpop.f32.mrb[0].mxu0
  %v2013 = vadd.f32 0.0, %v2012
  %v2014 = vpop.f32.mrb[0].mxu0
  %v2015 = vadd.f32 0.0, %v2014
  %2016 = vmatprep.mubr.f32.mxu0 0.0
  %2017 = vmatmul.mubr.f32.gmra.mrb[0].mxu0 %v1908
  %v2018 = vpop.f32.mrb[0].mxu0
  %v2019 = vadd.f32 0.0, %v2018
  %v2020 = vpop.f32.mrb[0].mxu0
  %v2021 = vadd.f32 0.0, %v2020
  %2022 = vdwg.mxu0
  %v2024 = vsel %vm1885, %v1836, 0
  %2026 = vmatprep.subr.mxu0 %v1849
  %2027 = vmatpush1.msra.mxu0 %v1848
  %2028 = vmatprep.subr.mxu0 %v1851
  %2029 = vmatpush1.msra.mxu0 %v1850
  %2030 = vmatprep.subr.mxu0 %v1853
  %2031 = vmatpush1.msra.mxu0 %v1852
  %2032 = vmatprep.subr.mxu0 %v1855
  %2033 = vmatpush1.msra.mxu0 %v1854
  %2034 = vmatprep.subr.mxu0 %v1857
  %2035 = vmatpush1.msra.mxu0 %v1856
  %2036 = vmatprep.subr.mxu0 %v1859
  %2037 = vmatpush1.msra.mxu0 %v1858
  %2038 = vmatprep.subr.mxu0 %v1861
  %2039 = vmatpush1.msra.mxu0 %v1860
  %2040 = vmatprep.subr.mxu0 %v1863
  %2041 = vmatpush1.msra.mxu0 %v1862
  %2042 = vmatprep.subr.mxu0 %v1865
  %2043 = vmatpush1.msra.mxu0 %v1864
  %2044 = vmatprep.subr.mxu0 0.0
  %2045 = vmatpush1.msra.mxu0 0.0
  %2046 = vmatprep.subr.mxu0 0.0
  %2047 = vmatpush1.msra.mxu0 0.0
  %2048 = vmatprep.subr.mxu0 0.0
  %2049 = vmatpush1.msra.mxu0 0.0
  %2050 = vmatprep.subr.mxu0 0.0
  %2051 = vmatpush1.msra.mxu0 0.0
  %2052 = vmatprep.subr.mxu0 0.0
  %2053 = vmatpush1.msra.mxu0 0.0
  %2054 = vmatprep.subr.mxu0 0.0
  %2055 = vmatpush1.msra.mxu0 0.0
  %2056 = vmatprep.subr.mxu0 0.0
  %2057 = vmatpush1.msra.mxu0 0.0
  %2058 = vmatprep.subr.mxu0 0.0
  %2059 = vmatpush1.msra.mxu0 0.0
  %2060 = vmatprep.subr.mxu0 0.0
  %2061 = vmatpush1.msra.mxu0 0.0
  %2062 = vmatprep.subr.mxu0 0.0
  %2063 = vmatpush1.msra.mxu0 0.0
  %2064 = vmatprep.subr.mxu0 0.0
  %2065 = vmatpush1.msra.mxu0 0.0
  %2066 = vmatprep.subr.mxu0 0.0
  %2067 = vmatpush1.msra.mxu0 0.0
  %2068 = vmatprep.subr.mxu0 0.0
  %2069 = vmatpush1.msra.mxu0 0.0
  %2070 = vmatprep.subr.mxu0 0.0
  %2071 = vmatpush1.msra.mxu0 0.0
  %2072 = vmatprep.subr.mxu0 0.0
  %2073 = vmatpush1.msra.mxu0 0.0
  %2074 = vmatprep.subr.mxu0 0.0
  %2075 = vmatpush1.msra.mxu0 0.0
  %2076 = vmatprep.subr.mxu0 0.0
  %2077 = vmatpush1.msra.mxu0 0.0
  %2078 = vmatprep.subr.mxu0 0.0
  %2079 = vmatpush1.msra.mxu0 0.0
  %2080 = vmatprep.subr.mxu0 0.0
  %2081 = vmatpush1.msra.mxu0 0.0
  %2082 = vmatprep.subr.mxu0 0.0
  %2083 = vmatpush1.msra.mxu0 0.0
  %2084 = vmatprep.subr.mxu0 0.0
  %2085 = vmatpush1.msra.mxu0 0.0
  %2086 = vmatprep.subr.mxu0 0.0
  %2087 = vmatpush1.msra.mxu0 0.0
  %2088 = vmatprep.subr.mxu0 0.0
  %2089 = vmatpush1.msra.mxu0 0.0
  %2090 = vmatprep.mubr.f32.mxu0 0.0
  %2091 = vmatmul.mubr.f32.gmra.mrb[0].mxu0 %v2024
  %v2092 = vpop.f32.mrb[0].mxu0
  %v2093 = vadd.f32 %v1977, %v2092
  %v2094 = vpop.f32.mrb[0].mxu0
  %v2095 = vadd.f32 %v1979, %v2094
  %2096 = vmatprep.mubr.f32.mxu0 0.0
  %2097 = vmatmul.mubr.f32.gmra.mrb[0].mxu0 %v1887
  %v2098 = vpop.f32.mrb[0].mxu0
  %v2099 = vadd.f32 %v1983, %v2098
  %v2100 = vpop.f32.mrb[0].mxu0
  %v2101 = vadd.f32 %v1985, %v2100
  %2102 = vmatprep.mubr.f32.mxu0 0.0
  %2103 = vmatmul.mubr.f32.gmra.mrb[0].mxu0 %v1890
  %v2104 = vpop.f32.mrb[0].mxu0
  %v2105 = vadd.f32 %v1989, %v2104
  %v2106 = vpop.f32.mrb[0].mxu0
  %v2107 = vadd.f32 %v1991, %v2106
  %2108 = vmatprep.mubr.f32.mxu0 0.0
  %2109 = vmatmul.mubr.f32.gmra.mrb[0].mxu0 %v1893
  %v2110 = vpop.f32.mrb[0].mxu0
  %v2111 = vadd.f32 %v1995, %v2110
  %v2112 = vpop.f32.mrb[0].mxu0
  %v2113 = vadd.f32 %v1997, %v2112
  %2114 = vmatprep.mubr.f32.mxu0 0.0
  %2115 = vmatmul.mubr.f32.gmra.mrb[0].mxu0 %v1896
  %v2116 = vpop.f32.mrb[0].mxu0
  %v2117 = vadd.f32 %v2001, %v2116
  %v2118 = vpop.f32.mrb[0].mxu0
  %v2119 = vadd.f32 %v2003, %v2118
  %2120 = vmatprep.mubr.f32.mxu0 0.0
  %2121 = vmatmul.mubr.f32.gmra.mrb[0].mxu0 %v1899
  %v2122 = vpop.f32.mrb[0].mxu0
  %v2123 = vadd.f32 %v2007, %v2122
  %v2124 = vpop.f32.mrb[0].mxu0
  %v2125 = vadd.f32 %v2009, %v2124
  %2126 = vmatprep.mubr.f32.mxu0 0.0
  %2127 = vmatmul.mubr.f32.gmra.mrb[0].mxu0 %v1902
  %v2128 = vpop.f32.mrb[0].mxu0
  %v2129 = vadd.f32 %v2013, %v2128
  %v2130 = vpop.f32.mrb[0].mxu0
  %v2131 = vadd.f32 %v2015, %v2130
  %2132 = vmatprep.mubr.f32.mxu0 0.0
  %2133 = vmatmul.mubr.f32.gmra.mrb[0].mxu0 %v1905
  %v2134 = vpop.f32.mrb[0].mxu0
  %v2135 = vadd.f32 %v2019, %v2134
  %v2136 = vpop.f32.mrb[0].mxu0
  %v2137 = vadd.f32 %v2021, %v2136
  %2138 = vdwg.mxu0
  %s2139 = scalar_lea.vmem %s3, 288
  %v2140 = vld [vmem:[%s2139] sm:$0xff]
  %v2141 = vld [vmem:[%s2139 + $0x8] sm:$0xff]
  %v2142 = vld [vmem:[%s2139 + $0x10] sm:$0xff]
  %v2143 = vld [vmem:[%s2139 + $0x18] sm:$0xff]
  %v2144 = vld [vmem:[%s2139 + $0x20] sm:$0xff]
  %v2145 = vld [vmem:[%s2139 + $0x28] sm:$0xff]
  %v2146 = vld [vmem:[%s2139 + $0x30] sm:$0xff]
  %v2147 = vld [vmem:[%s2139 + $0x38] sm:$0xff]
  %v2148 = vld [vmem:[%s2139 + $0x40] sm:$0xff]
  %v2149 = vld [vmem:[%s2139 + $0x48] sm:$0xff]
  %v2150 = vld [vmem:[%s2139 + $0x50] sm:$0xff]
  %v2151 = vld [vmem:[%s2139 + $0x58] sm:$0xff]
  %v2152 = vld [vmem:[%s2139 + $0x60] sm:$0xff]
  %v2153 = vld [vmem:[%s2139 + $0x68] sm:$0xff]
  %v2154 = vld [vmem:[%s2139 + $0x70] sm:$0xff]
  %v2155 = vld [vmem:[%s2139 + $0x78] sm:$0xff]
  %v2156 = vld [vmem:[%s2139 + $0x80] sm:$0xff]
  %v2157 = vld [vmem:[%s2139 + $0x88] sm:$0xff]
  %v2159 = vsel %vm1885, %v1845, 0
  %2161 = vmatprep.subr.mxu0 %v2141
  %2162 = vmatpush1.msra.mxu0 %v2140
  %2163 = vmatprep.subr.mxu0 %v2143
  %2164 = vmatpush1.msra.mxu0 %v2142
  %2165 = vmatprep.subr.mxu0 %v2145
  %2166 = vmatpush1.msra.mxu0 %v2144
  %2167 = vmatprep.subr.mxu0 %v2147
  %2168 = vmatpush1.msra.mxu0 %v2146
  %2169 = vmatprep.subr.mxu0 %v2149
  %2170 = vmatpush1.msra.mxu0 %v2148
  %2171 = vmatprep.subr.mxu0 %v2151
  %2172 = vmatpush1.msra.mxu0 %v2150
  %2173 = vmatprep.subr.mxu0 %v2153
  %2174 = vmatpush1.msra.mxu0 %v2152
  %2175 = vmatprep.subr.mxu0 %v2155
  %2176 = vmatpush1.msra.mxu0 %v2154
  %2177 = vmatprep.subr.mxu0 %v2157
  %2178 = vmatpush1.msra.mxu0 %v2156
  %2179 = vmatprep.subr.mxu0 0.0
  %2180 = vmatpush1.msra.mxu0 0.0
  %2181 = vmatprep.subr.mxu0 0.0
  %2182 = vmatpush1.msra.mxu0 0.0
  %2183 = vmatprep.subr.mxu0 0.0
  %2184 = vmatpush1.msra.mxu0 0.0
  %2185 = vmatprep.subr.mxu0 0.0
  %2186 = vmatpush1.msra.mxu0 0.0
  %2187 = vmatprep.subr.mxu0 0.0
  %2188 = vmatpush1.msra.mxu0 0.0
  %2189 = vmatprep.subr.mxu0 0.0
  %2190 = vmatpush1.msra.mxu0 0.0
  %2191 = vmatprep.subr.mxu0 0.0
  %2192 = vmatpush1.msra.mxu0 0.0
  %2193 = vmatprep.subr.mxu0 0.0
  %2194 = vmatpush1.msra.mxu0 0.0
  %2195 = vmatprep.subr.mxu0 0.0
  %2196 = vmatpush1.msra.mxu0 0.0
  %2197 = vmatprep.subr.mxu0 0.0
  %2198 = vmatpush1.msra.mxu0 0.0
  %2199 = vmatprep.subr.mxu0 0.0
  %2200 = vmatpush1.msra.mxu0 0.0
  %2201 = vmatprep.subr.mxu0 0.0
  %2202 = vmatpush1.msra.mxu0 0.0
  %2203 = vmatprep.subr.mxu0 0.0
  %2204 = vmatpush1.msra.mxu0 0.0
  %2205 = vmatprep.subr.mxu0 0.0
  %2206 = vmatpush1.msra.mxu0 0.0
  %2207 = vmatprep.subr.mxu0 0.0
  %2208 = vmatpush1.msra.mxu0 0.0
  %2209 = vmatprep.subr.mxu0 0.0
  %2210 = vmatpush1.msra.mxu0 0.0
  %2211 = vmatprep.subr.mxu0 0.0
  %2212 = vmatpush1.msra.mxu0 0.0
  %2213 = vmatprep.subr.mxu0 0.0
  %2214 = vmatpush1.msra.mxu0 0.0
  %2215 = vmatprep.subr.mxu0 0.0
  %2216 = vmatpush1.msra.mxu0 0.0
  %2217 = vmatprep.subr.mxu0 0.0
  %2218 = vmatpush1.msra.mxu0 0.0
  %2219 = vmatprep.subr.mxu0 0.0
  %2220 = vmatpush1.msra.mxu0 0.0
  %2221 = vmatprep.subr.mxu0 0.0
  %2222 = vmatpush1.msra.mxu0 0.0
  %2223 = vmatprep.subr.mxu0 0.0
  %2224 = vmatpush1.msra.mxu0 0.0
  %2225 = vmatprep.mubr.f32.mxu0 0.0
  %2226 = vmatmul.mubr.f32.gmra.mrb[0].mxu0 %v1890
  %v2227 = vpop.f32.mrb[0].mxu0
  %v2228 = vadd.f32 0.0, %v2227
  %v2229 = vpop.f32.mrb[0].mxu0
  %v2230 = vadd.f32 0.0, %v2229
  %2231 = vmatprep.mubr.f32.mxu0 0.0
  %2232 = vmatmul.mubr.f32.gmra.mrb[0].mxu0 %v1893
  %v2233 = vpop.f32.mrb[0].mxu0
  %v2234 = vadd.f32 0.0, %v2233
  %v2235 = vpop.f32.mrb[0].mxu0
  %v2236 = vadd.f32 0.0, %v2235
  %2237 = vmatprep.mubr.f32.mxu0 0.0
  %2238 = vmatmul.mubr.f32.gmra.mrb[0].mxu0 %v1896
  %v2239 = vpop.f32.mrb[0].mxu0
  %v2240 = vadd.f32 0.0, %v2239
  %v2241 = vpop.f32.mrb[0].mxu0
  %v2242 = vadd.f32 0.0, %v2241
  %2243 = vmatprep.mubr.f32.mxu0 0.0
  %2244 = vmatmul.mubr.f32.gmra.mrb[0].mxu0 %v1899
  %v2245 = vpop.f32.mrb[0].mxu0
  %v2246 = vadd.f32 0.0, %v2245
  %v2247 = vpop.f32.mrb[0].mxu0
  %v2248 = vadd.f32 0.0, %v2247
  %2249 = vmatprep.mubr.f32.mxu0 0.0
  %2250 = vmatmul.mubr.f32.gmra.mrb[0].mxu0 %v1902
  %v2251 = vpop.f32.mrb[0].mxu0
  %v2252 = vadd.f32 0.0, %v2251
  %v2253 = vpop.f32.mrb[0].mxu0
  %v2254 = vadd.f32 0.0, %v2253
  %2255 = vmatprep.mubr.f32.mxu0 0.0
  %2256 = vmatmul.mubr.f32.gmra.mrb[0].mxu0 %v1905
  %v2257 = vpop.f32.mrb[0].mxu0
  %v2258 = vadd.f32 0.0, %v2257
  %v2259 = vpop.f32.mrb[0].mxu0
  %v2260 = vadd.f32 0.0, %v2259
  %2261 = vmatprep.mubr.f32.mxu0 0.0
  %2262 = vmatmul.mubr.f32.gmra.mrb[0].mxu0 %v1908
  %v2263 = vpop.f32.mrb[0].mxu0
  %v2264 = vadd.f32 0.0, %v2263
  %v2265 = vpop.f32.mrb[0].mxu0
  %v2266 = vadd.f32 0.0, %v2265
  %2267 = vmatprep.mubr.f32.mxu0 0.0
  %2268 = vmatmul.mubr.f32.gmra.mrb[0].mxu0 %v2159
  %v2269 = vpop.f32.mrb[0].mxu0
  %v2270 = vadd.f32 0.0, %v2269
  %v2271 = vpop.f32.mrb[0].mxu0
  %v2272 = vadd.f32 0.0, %v2271
  %2273 = vdwg.mxu0
  %v2274 = vadd.f32 %v2093, %v2228
  %v2275 = vadd.f32 %v2095, %v2230
  %v2276 = vadd.f32 %v2099, %v2234
  %v2277 = vadd.f32 %v2101, %v2236
  %v2278 = vadd.f32 %v2105, %v2240
  %v2279 = vadd.f32 %v2107, %v2242
  %v2280 = vadd.f32 %v2111, %v2246
  %v2281 = vadd.f32 %v2113, %v2248
  %v2282 = vadd.f32 %v2117, %v2252
  %v2283 = vadd.f32 %v2119, %v2254
  %v2284 = vadd.f32 %v2123, %v2258
  %v2285 = vadd.f32 %v2125, %v2260
  %v2286 = vadd.f32 %v2129, %v2264
  %v2287 = vadd.f32 %v2131, %v2266
  %v2288 = vadd.f32 %v2135, %v2270
  %v2289 = vadd.f32 %v2137, %v2272
  %s2290 = scalar_lea.vmem %s3, 432
  %v2291 = vld [vmem:[%s2290] sm:$0xff]
  %v2292 = vld [vmem:[%s2290 + $0x8] sm:$0xff]
  %v2293 = vld [vmem:[%s2290 + $0x10] sm:$0xff]
  %v2294 = vld [vmem:[%s2290 + $0x18] sm:$0xff]
  %v2295 = vld [vmem:[%s2290 + $0x20] sm:$0xff]
  %v2296 = vld [vmem:[%s2290 + $0x28] sm:$0xff]
  %v2297 = vld [vmem:[%s2290 + $0x30] sm:$0xff]
  %v2298 = vld [vmem:[%s2290 + $0x38] sm:$0xff]
  %v2299 = vld [vmem:[%s2290 + $0x40] sm:$0xff]
  %v2300 = vld [vmem:[%s2290 + $0x48] sm:$0xff]
  %v2301 = vld [vmem:[%s2290 + $0x50] sm:$0xff]
  %v2302 = vld [vmem:[%s2290 + $0x58] sm:$0xff]
  %v2303 = vld [vmem:[%s2290 + $0x60] sm:$0xff]
  %v2304 = vld [vmem:[%s2290 + $0x68] sm:$0xff]
  %v2305 = vld [vmem:[%s2290 + $0x70] sm:$0xff]
  %v2306 = vld [vmem:[%s2290 + $0x78] sm:$0xff]
  %v2307 = vld [vmem:[%s2290 + $0x80] sm:$0xff]
  %v2308 = vld [vmem:[%s2290 + $0x88] sm:$0xff]
  %v2310 = vsel %vm1885, %v1846, 0
  %2312 = vmatprep.subr.mxu0 %v2292
  %2313 = vmatpush1.msra.mxu0 %v2291
  %2314 = vmatprep.subr.mxu0 %v2294
  %2315 = vmatpush1.msra.mxu0 %v2293
  %2316 = vmatprep.subr.mxu0 %v2296
  %2317 = vmatpush1.msra.mxu0 %v2295
  %2318 = vmatprep.subr.mxu0 %v2298
  %2319 = vmatpush1.msra.mxu0 %v2297
  %2320 = vmatprep.subr.mxu0 %v2300
  %2321 = vmatpush1.msra.mxu0 %v2299
  %2322 = vmatprep.subr.mxu0 %v2302
  %2323 = vmatpush1.msra.mxu0 %v2301
  %2324 = vmatprep.subr.mxu0 %v2304
  %2325 = vmatpush1.msra.mxu0 %v2303
  %2326 = vmatprep.subr.mxu0 %v2306
  %2327 = vmatpush1.msra.mxu0 %v2305
  %2328 = vmatprep.subr.mxu0 %v2308
  %2329 = vmatpush1.msra.mxu0 %v2307
  %2330 = vmatprep.subr.mxu0 0.0
  %2331 = vmatpush1.msra.mxu0 0.0
  %2332 = vmatprep.subr.mxu0 0.0
  %2333 = vmatpush1.msra.mxu0 0.0
  %2334 = vmatprep.subr.mxu0 0.0
  %2335 = vmatpush1.msra.mxu0 0.0
  %2336 = vmatprep.subr.mxu0 0.0
  %2337 = vmatpush1.msra.mxu0 0.0
  %2338 = vmatprep.subr.mxu0 0.0
  %2339 = vmatpush1.msra.mxu0 0.0
  %2340 = vmatprep.subr.mxu0 0.0
  %2341 = vmatpush1.msra.mxu0 0.0
  %2342 = vmatprep.subr.mxu0 0.0
  %2343 = vmatpush1.msra.mxu0 0.0
  %2344 = vmatprep.subr.mxu0 0.0
  %2345 = vmatpush1.msra.mxu0 0.0
  %2346 = vmatprep.subr.mxu0 0.0
  %2347 = vmatpush1.msra.mxu0 0.0
  %2348 = vmatprep.subr.mxu0 0.0
  %2349 = vmatpush1.msra.mxu0 0.0
  %2350 = vmatprep.subr.mxu0 0.0
  %2351 = vmatpush1.msra.mxu0 0.0
  %2352 = vmatprep.subr.mxu0 0.0
  %2353 = vmatpush1.msra.mxu0 0.0
  %2354 = vmatprep.subr.mxu0 0.0
  %2355 = vmatpush1.msra.mxu0 0.0
  %2356 = vmatprep.subr.mxu0 0.0
  %2357 = vmatpush1.msra.mxu0 0.0
  %2358 = vmatprep.subr.mxu0 0.0
  %2359 = vmatpush1.msra.mxu0 0.0
  %2360 = vmatprep.subr.mxu0 0.0
  %2361 = vmatpush1.msra.mxu0 0.0
  %2362 = vmatprep.subr.mxu0 0.0
  %2363 = vmatpush1.msra.mxu0 0.0
  %2364 = vmatprep.subr.mxu0 0.0
  %2365 = vmatpush1.msra.mxu0 0.0
  %2366 = vmatprep.subr.mxu0 0.0
  %2367 = vmatpush1.msra.mxu0 0.0
  %2368 = vmatprep.subr.mxu0 0.0
  %2369 = vmatpush1.msra.mxu0 0.0
  %2370 = vmatprep.subr.mxu0 0.0
  %2371 = vmatpush1.msra.mxu0 0.0
  %2372 = vmatprep.subr.mxu0 0.0
  %2373 = vmatpush1.msra.mxu0 0.0
  %2374 = vmatprep.subr.mxu0 0.0
  %2375 = vmatpush1.msra.mxu0 0.0
  %2376 = vmatprep.mubr.f32.mxu0 0.0
  %2377 = vmatmul.mubr.f32.gmra.mrb[0].mxu0 %v1893
  %v2378 = vpop.f32.mrb[0].mxu0
  %v2379 = vadd.f32 0.0, %v2378
  %v2380 = vpop.f32.mrb[0].mxu0
  %v2381 = vadd.f32 0.0, %v2380
  %2382 = vmatprep.mubr.f32.mxu0 0.0
  %2383 = vmatmul.mubr.f32.gmra.mrb[0].mxu0 %v1896
  %v2384 = vpop.f32.mrb[0].mxu0
  %v2385 = vadd.f32 0.0, %v2384
  %v2386 = vpop.f32.mrb[0].mxu0
  %v2387 = vadd.f32 0.0, %v2386
  %2388 = vmatprep.mubr.f32.mxu0 0.0
  %2389 = vmatmul.mubr.f32.gmra.mrb[0].mxu0 %v1899
  %v2390 = vpop.f32.mrb[0].mxu0
  %v2391 = vadd.f32 0.0, %v2390
  %v2392 = vpop.f32.mrb[0].mxu0
  %v2393 = vadd.f32 0.0, %v2392
  %2394 = vmatprep.mubr.f32.mxu0 0.0
  %2395 = vmatmul.mubr.f32.gmra.mrb[0].mxu0 %v1902
  %v2396 = vpop.f32.mrb[0].mxu0
  %v2397 = vadd.f32 0.0, %v2396
  %v2398 = vpop.f32.mrb[0].mxu0
  %v2399 = vadd.f32 0.0, %v2398
  %2400 = vmatprep.mubr.f32.mxu0 0.0
  %2401 = vmatmul.mubr.f32.gmra.mrb[0].mxu0 %v1905
  %v2402 = vpop.f32.mrb[0].mxu0
  %v2403 = vadd.f32 0.0, %v2402
  %v2404 = vpop.f32.mrb[0].mxu0
  %v2405 = vadd.f32 0.0, %v2404
  %2406 = vmatprep.mubr.f32.mxu0 0.0
  %2407 = vmatmul.mubr.f32.gmra.mrb[0].mxu0 %v1908
  %v2408 = vpop.f32.mrb[0].mxu0
  %v2409 = vadd.f32 0.0, %v2408
  %v2410 = vpop.f32.mrb[0].mxu0
  %v2411 = vadd.f32 0.0, %v2410
  %2412 = vmatprep.mubr.f32.mxu0 0.0
  %2413 = vmatmul.mubr.f32.gmra.mrb[0].mxu0 %v2159
  %v2414 = vpop.f32.mrb[0].mxu0
  %v2415 = vadd.f32 0.0, %v2414
  %v2416 = vpop.f32.mrb[0].mxu0
  %v2417 = vadd.f32 0.0, %v2416
  %2418 = vmatprep.mubr.f32.mxu0 0.0
  %2419 = vmatmul.mubr.f32.gmra.mrb[0].mxu0 %v2310
  %v2420 = vpop.f32.mrb[0].mxu0
  %v2421 = vadd.f32 0.0, %v2420
  %v2422 = vpop.f32.mrb[0].mxu0
  %v2423 = vadd.f32 0.0, %v2422
  %2424 = vdwg.mxu0
  %v2425 = vadd.f32 %v2274, %v2379
  %v2426 = vadd.f32 %v2275, %v2381
  %v2427 = vadd.f32 %v2276, %v2385
  %v2428 = vadd.f32 %v2277, %v2387
  %v2429 = vadd.f32 %v2278, %v2391
  %v2430 = vadd.f32 %v2279, %v2393
  %v2431 = vadd.f32 %v2280, %v2397
  %v2432 = vadd.f32 %v2281, %v2399
  %v2433 = vadd.f32 %v2282, %v2403
  %v2434 = vadd.f32 %v2283, %v2405
  %v2435 = vadd.f32 %v2284, %v2409
  %v2436 = vadd.f32 %v2285, %v2411
  %v2437 = vadd.f32 %v2286, %v2415
  %v2438 = vadd.f32 %v2287, %v2417
  %v2439 = vadd.f32 %v2288, %v2421
  %v2440 = vadd.f32 %v2289, %v2423
  %s2441 = scalar_lea.vmem %s3, 576
  %v2442 = vld [vmem:[%s2441] sm:$0xff]
  %v2443 = vld [vmem:[%s2441 + $0x8] sm:$0xff]
  %v2444 = vld [vmem:[%s2441 + $0x10] sm:$0xff]
  %v2445 = vld [vmem:[%s2441 + $0x18] sm:$0xff]
  %v2446 = vld [vmem:[%s2441 + $0x20] sm:$0xff]
  %v2447 = vld [vmem:[%s2441 + $0x28] sm:$0xff]
  %v2448 = vld [vmem:[%s2441 + $0x30] sm:$0xff]
  %v2449 = vld [vmem:[%s2441 + $0x38] sm:$0xff]
  %v2450 = vld [vmem:[%s2441 + $0x40] sm:$0xff]
  %v2451 = vld [vmem:[%s2441 + $0x48] sm:$0xff]
  %v2452 = vld [vmem:[%s2441 + $0x50] sm:$0xff]
  %v2453 = vld [vmem:[%s2441 + $0x58] sm:$0xff]
  %v2454 = vld [vmem:[%s2441 + $0x60] sm:$0xff]
  %v2455 = vld [vmem:[%s2441 + $0x68] sm:$0xff]
  %v2456 = vld [vmem:[%s2441 + $0x70] sm:$0xff]
  %v2457 = vld [vmem:[%s2441 + $0x78] sm:$0xff]
  %v2458 = vld [vmem:[%s2441 + $0x80] sm:$0xff]
  %v2459 = vld [vmem:[%s2441 + $0x88] sm:$0xff]
  %v2461 = vsel %vm1885, %v1847, 0
  %2463 = vmatprep.subr.mxu0 %v2443
  %2464 = vmatpush1.msra.mxu0 %v2442
  %2465 = vmatprep.subr.mxu0 %v2445
  %2466 = vmatpush1.msra.mxu0 %v2444
  %2467 = vmatprep.subr.mxu0 %v2447
  %2468 = vmatpush1.msra.mxu0 %v2446
  %2469 = vmatprep.subr.mxu0 %v2449
  %2470 = vmatpush1.msra.mxu0 %v2448
  %2471 = vmatprep.subr.mxu0 %v2451
  %2472 = vmatpush1.msra.mxu0 %v2450
  %2473 = vmatprep.subr.mxu0 %v2453
  %2474 = vmatpush1.msra.mxu0 %v2452
  %2475 = vmatprep.subr.mxu0 %v2455
  %2476 = vmatpush1.msra.mxu0 %v2454
  %2477 = vmatprep.subr.mxu0 %v2457
  %2478 = vmatpush1.msra.mxu0 %v2456
  %2479 = vmatprep.subr.mxu0 %v2459
  %2480 = vmatpush1.msra.mxu0 %v2458
  %2481 = vmatprep.subr.mxu0 0.0
  %2482 = vmatpush1.msra.mxu0 0.0
  %2483 = vmatprep.subr.mxu0 0.0
  %2484 = vmatpush1.msra.mxu0 0.0
  %2485 = vmatprep.subr.mxu0 0.0
  %2486 = vmatpush1.msra.mxu0 0.0
  %2487 = vmatprep.subr.mxu0 0.0
  %2488 = vmatpush1.msra.mxu0 0.0
  %2489 = vmatprep.subr.mxu0 0.0
  %2490 = vmatpush1.msra.mxu0 0.0
  %2491 = vmatprep.subr.mxu0 0.0
  %2492 = vmatpush1.msra.mxu0 0.0
  %2493 = vmatprep.subr.mxu0 0.0
  %2494 = vmatpush1.msra.mxu0 0.0
  %2495 = vmatprep.subr.mxu0 0.0
  %2496 = vmatpush1.msra.mxu0 0.0
  %2497 = vmatprep.subr.mxu0 0.0
  %2498 = vmatpush1.msra.mxu0 0.0
  %2499 = vmatprep.subr.mxu0 0.0
  %2500 = vmatpush1.msra.mxu0 0.0
  %2501 = vmatprep.subr.mxu0 0.0
  %2502 = vmatpush1.msra.mxu0 0.0
  %2503 = vmatprep.subr.mxu0 0.0
  %2504 = vmatpush1.msra.mxu0 0.0
  %2505 = vmatprep.subr.mxu0 0.0
  %2506 = vmatpush1.msra.mxu0 0.0
  %2507 = vmatprep.subr.mxu0 0.0
  %2508 = vmatpush1.msra.mxu0 0.0
  %2509 = vmatprep.subr.mxu0 0.0
  %2510 = vmatpush1.msra.mxu0 0.0
  %2511 = vmatprep.subr.mxu0 0.0
  %2512 = vmatpush1.msra.mxu0 0.0
  %2513 = vmatprep.subr.mxu0 0.0
  %2514 = vmatpush1.msra.mxu0 0.0
  %2515 = vmatprep.subr.mxu0 0.0
  %2516 = vmatpush1.msra.mxu0 0.0
  %2517 = vmatprep.subr.mxu0 0.0
  %2518 = vmatpush1.msra.mxu0 0.0
  %2519 = vmatprep.subr.mxu0 0.0
  %2520 = vmatpush1.msra.mxu0 0.0
  %2521 = vmatprep.subr.mxu0 0.0
  %2522 = vmatpush1.msra.mxu0 0.0
  %2523 = vmatprep.subr.mxu0 0.0
  %2524 = vmatpush1.msra.mxu0 0.0
  %2525 = vmatprep.subr.mxu0 0.0
  %2526 = vmatpush1.msra.mxu0 0.0
  %2527 = vmatprep.mubr.f32.mxu0 0.0
  %2528 = vmatmul.mubr.f32.gmra.mrb[0].mxu0 %v1896
  %v2529 = vpop.f32.mrb[0].mxu0
  %v2530 = vadd.f32 0.0, %v2529
  %v2531 = vpop.f32.mrb[0].mxu0
  %v2532 = vadd.f32 0.0, %v2531
  %2533 = vmatprep.mubr.f32.mxu0 0.0
  %2534 = vmatmul.mubr.f32.gmra.mrb[0].mxu0 %v1899
  %v2535 = vpop.f32.mrb[0].mxu0
  %v2536 = vadd.f32 0.0, %v2535
  %v2537 = vpop.f32.mrb[0].mxu0
  %v2538 = vadd.f32 0.0, %v2537
  %2539 = vmatprep.mubr.f32.mxu0 0.0
  %2540 = vmatmul.mubr.f32.gmra.mrb[0].mxu0 %v1902
  %v2541 = vpop.f32.mrb[0].mxu0
  %v2542 = vadd.f32 0.0, %v2541
  %v2543 = vpop.f32.mrb[0].mxu0
  %v2544 = vadd.f32 0.0, %v2543
  %2545 = vmatprep.mubr.f32.mxu0 0.0
  %2546 = vmatmul.mubr.f32.gmra.mrb[0].mxu0 %v1905
  %v2547 = vpop.f32.mrb[0].mxu0
  %v2548 = vadd.f32 0.0, %v2547
  %v2549 = vpop.f32.mrb[0].mxu0
  %v2550 = vadd.f32 0.0, %v2549
  %2551 = vmatprep.mubr.f32.mxu0 0.0
  %2552 = vmatmul.mubr.f32.gmra.mrb[0].mxu0 %v1908
  %v2553 = vpop.f32.mrb[0].mxu0
  %v2554 = vadd.f32 0.0, %v2553
  %v2555 = vpop.f32.mrb[0].mxu0
  %v2556 = vadd.f32 0.0, %v2555
  %2557 = vmatprep.mubr.f32.mxu0 0.0
  %2558 = vmatmul.mubr.f32.gmra.mrb[0].mxu0 %v2159
  %v2559 = vpop.f32.mrb[0].mxu0
  %v2560 = vadd.f32 0.0, %v2559
  %v2561 = vpop.f32.mrb[0].mxu0
  %v2562 = vadd.f32 0.0, %v2561
  %2563 = vmatprep.mubr.f32.mxu0 0.0
  %2564 = vmatmul.mubr.f32.gmra.mrb[0].mxu0 %v2310
  %v2565 = vpop.f32.mrb[0].mxu0
  %v2566 = vadd.f32 0.0, %v2565
  %v2567 = vpop.f32.mrb[0].mxu0
  %v2568 = vadd.f32 0.0, %v2567
  %2569 = vmatprep.mubr.f32.mxu0 0.0
  %2570 = vmatmul.mubr.f32.gmra.mrb[0].mxu0 %v2461
  %v2571 = vpop.f32.mrb[0].mxu0
  %v2572 = vadd.f32 0.0, %v2571
  %v2573 = vpop.f32.mrb[0].mxu0
  %v2574 = vadd.f32 0.0, %v2573
  %2575 = vdwg.mxu0
  %v2576 = vadd.f32 %v2425, %v2530
  %v2577 = vadd.f32 %v2426, %v2532
  %v2578 = vadd.f32 %v2427, %v2536
  %v2579 = vadd.f32 %v2428, %v2538
  %v2580 = vadd.f32 %v2429, %v2542
  %v2581 = vadd.f32 %v2430, %v2544
  %v2582 = vadd.f32 %v2431, %v2548
  %v2583 = vadd.f32 %v2432, %v2550
  %v2584 = vadd.f32 %v2433, %v2554
  %v2585 = vadd.f32 %v2434, %v2556
  %v2586 = vadd.f32 %v2435, %v2560
  %v2587 = vadd.f32 %v2436, %v2562
  %v2588 = vadd.f32 %v2437, %v2566
  %v2589 = vadd.f32 %v2438, %v2568
  %v2590 = vadd.f32 %v2439, %v2572
  %v2591 = vadd.f32 %v2440, %v2574
  %v2592 = vmax.f32 %v2576, %v2578
  %v2593 = vmax.f32 %v2577, %v2579
  %v2594 = vmax.f32 %v2580, %v2582
  %v2595 = vmax.f32 %v2581, %v2583
  %v2596 = vmax.f32 %v2584, %v2586
  %v2597 = vmax.f32 %v2585, %v2587
  %v2598 = vmax.f32 %v2588, %v2590
  %v2599 = vmax.f32 %v2589, %v2591
  %v2600 = vmax.f32 %v2592, %v2593
  %v2601 = vmax.f32 %v2594, %v2595
  %v2602 = vmax.f32 %v2596, %v2597
  %v2603 = vmax.f32 %v2598, %v2599
  %v2604 = vld [vmem:[%s4] sm:$0x1]
  %v2606 = vlaneseq
  %v2607 = vshrl.u32 %v2606, 7
  %v2608 = vsub.s32 0, %v2607
  %v2609 = vrot.slane %v2604, %v2608
  %v2611 = vadd.f32 %v2600, %v2609
  %v2612 = vadd.f32 %v2601, %v2609
  %v2613 = vadd.f32 %v2602, %v2609
  %v2614 = vadd.f32 %v2603, %v2609
  %v2615 = vmax.f32 %v2611, 0.0
  %v2616 = vmax.f32 %v2612, 0.0
  %v2617 = vmax.f32 %v2613, 0.0
  %v2618 = vmax.f32 %v2614, 0.0
  %v2619 = vld [vmem:[%s5] sm:$0xff]
  %v2620 = vld [vmem:[%s5 + $0x8] sm:$0xff]
  %v2621 = vld [vmem:[%s5 + $0x10] sm:$0xff]
  %v2622 = vld [vmem:[%s5 + $0x18] sm:$0xff]
  %v2623 = vld [vmem:[%s5 + $0x20] sm:$0xff]
  %v2624 = vld [vmem:[%s5 + $0x28] sm:$0xff]
  %v2625 = vld [vmem:[%s5 + $0x30] sm:$0xff]
  %v2626 = vld [vmem:[%s5 + $0x38] sm:$0xff]
  %s2627 = scalar_lea.vmem %s5, 64
  %v2628 = vld [vmem:[%s2627] sm:$0xff]
  %v2629 = vld [vmem:[%s2627 + $0x8] sm:$0xff]
  %v2630 = vld [vmem:[%s2627 + $0x10] sm:$0xff]
  %v2631 = vld [vmem:[%s2627 + $0x18] sm:$0xff]
  %v2632 = vld [vmem:[%s2627 + $0x20] sm:$0xff]
  %v2633 = vld [vmem:[%s2627 + $0x28] sm:$0xff]
  %v2634 = vld [vmem:[%s2627 + $0x30] sm:$0xff]
  %v2635 = vld [vmem:[%s2627 + $0x38] sm:$0xff]
  %vm2636 = vcmask 523264
  %v2638 = vsel %vm2636, %v2616, 0
  %2640 = vmatprep.subr.mxu0 0.0
  %2641 = vmatpush1.msra.mxu0 %v2628
  %2642 = vmatprep.subr.mxu0 0.0
  %2643 = vmatpush1.msra.mxu0 %v2629
  %2644 = vmatprep.subr.mxu0 0.0
  %2645 = vmatpush1.msra.mxu0 %v2630
  %2646 = vmatprep.subr.mxu0 0.0
  %2647 = vmatpush1.msra.mxu0 %v2631
  %2648 = vmatprep.subr.mxu0 0.0
  %2649 = vmatpush1.msra.mxu0 %v2632
  %2650 = vmatprep.subr.mxu0 0.0
  %2651 = vmatpush1.msra.mxu0 %v2633
  %2652 = vmatprep.subr.mxu0 0.0
  %2653 = vmatpush1.msra.mxu0 %v2634
  %2654 = vmatprep.subr.mxu0 0.0
  %2655 = vmatpush1.msra.mxu0 %v2635
  %2656 = vmatprep.subr.mxu0 0.0
  %2657 = vmatpush1.msra.mxu0 0.0
  %2658 = vmatprep.subr.mxu0 0.0
  %2659 = vmatpush1.msra.mxu0 0.0
  %2660 = vmatprep.subr.mxu0 0.0
  %2661 = vmatpush1.msra.mxu0 0.0
  %2662 = vmatprep.subr.mxu0 0.0
  %2663 = vmatpush1.msra.mxu0 0.0
  %2664 = vmatprep.subr.mxu0 0.0
  %2665 = vmatpush1.msra.mxu0 0.0
  %2666 = vmatprep.subr.mxu0 0.0
  %2667 = vmatpush1.msra.mxu0 0.0
  %2668 = vmatprep.subr.mxu0 0.0
  %2669 = vmatpush1.msra.mxu0 0.0
  %2670 = vmatprep.subr.mxu0 0.0
  %2671 = vmatpush1.msra.mxu0 0.0
  %2672 = vmatprep.subr.mxu0 0.0
  %2673 = vmatpush1.msra.mxu0 0.0
  %2674 = vmatprep.subr.mxu0 0.0
  %2675 = vmatpush1.msra.mxu0 0.0
  %2676 = vmatprep.subr.mxu0 0.0
  %2677 = vmatpush1.msra.mxu0 0.0
  %2678 = vmatprep.subr.mxu0 0.0
  %2679 = vmatpush1.msra.mxu0 0.0
  %2680 = vmatprep.subr.mxu0 0.0
  %2681 = vmatpush1.msra.mxu0 0.0
  %2682 = vmatprep.subr.mxu0 0.0
  %2683 = vmatpush1.msra.mxu0 0.0
  %2684 = vmatprep.subr.mxu0 0.0
  %2685 = vmatpush1.msra.mxu0 0.0
  %2686 = vmatprep.subr.mxu0 0.0
  %2687 = vmatpush1.msra.mxu0 0.0
  %2688 = vmatprep.subr.mxu0 0.0
  %2689 = vmatpush1.msra.mxu0 0.0
  %2690 = vmatprep.subr.mxu0 0.0
  %2691 = vmatpush1.msra.mxu0 0.0
  %2692 = vmatprep.subr.mxu0 0.0
  %2693 = vmatpush1.msra.mxu0 0.0
  %2694 = vmatprep.subr.mxu0 0.0
  %2695 = vmatpush1.msra.mxu0 0.0
  %2696 = vmatprep.subr.mxu0 0.0
  %2697 = vmatpush1.msra.mxu0 0.0
  %2698 = vmatprep.subr.mxu0 0.0
  %2699 = vmatpush1.msra.mxu0 0.0
  %2700 = vmatprep.subr.mxu0 0.0
  %2701 = vmatpush1.msra.mxu0 0.0
  %2702 = vmatprep.subr.mxu0 0.0
  %2703 = vmatpush1.msra.mxu0 0.0
  %2704 = vmatprep.mubr.f32.mxu0 0.0
  %2705 = vmatmul.mubr.f32.gmra.mrb[0].mxu0 %v2638
  %v2706 = vpop.f32.mrb[0].mxu0
  %v2707 = vadd.f32 0.0, %v2706
  %v2708 = vpop.f32.mrb[0].mxu0
  %2709 = vdwg.mxu0
  %v2711 = vsel %vm2636, %v2615, 0
  %2713 = vmatprep.subr.mxu0 0.0
  %2714 = vmatpush1.msra.mxu0 %v2619
  %2715 = vmatprep.subr.mxu0 0.0
  %2716 = vmatpush1.msra.mxu0 %v2620
  %2717 = vmatprep.subr.mxu0 0.0
  %2718 = vmatpush1.msra.mxu0 %v2621
  %2719 = vmatprep.subr.mxu0 0.0
  %2720 = vmatpush1.msra.mxu0 %v2622
  %2721 = vmatprep.subr.mxu0 0.0
  %2722 = vmatpush1.msra.mxu0 %v2623
  %2723 = vmatprep.subr.mxu0 0.0
  %2724 = vmatpush1.msra.mxu0 %v2624
  %2725 = vmatprep.subr.mxu0 0.0
  %2726 = vmatpush1.msra.mxu0 %v2625
  %2727 = vmatprep.subr.mxu0 0.0
  %2728 = vmatpush1.msra.mxu0 %v2626
  %2729 = vmatprep.subr.mxu0 0.0
  %2730 = vmatpush1.msra.mxu0 0.0
  %2731 = vmatprep.subr.mxu0 0.0
  %2732 = vmatpush1.msra.mxu0 0.0
  %2733 = vmatprep.subr.mxu0 0.0
  %2734 = vmatpush1.msra.mxu0 0.0
  %2735 = vmatprep.subr.mxu0 0.0
  %2736 = vmatpush1.msra.mxu0 0.0
  %2737 = vmatprep.subr.mxu0 0.0
  %2738 = vmatpush1.msra.mxu0 0.0
  %2739 = vmatprep.subr.mxu0 0.0
  %2740 = vmatpush1.msra.mxu0 0.0
  %2741 = vmatprep.subr.mxu0 0.0
  %2742 = vmatpush1.msra.mxu0 0.0
  %2743 = vmatprep.subr.mxu0 0.0
  %2744 = vmatpush1.msra.mxu0 0.0
  %2745 = vmatprep.subr.mxu0 0.0
  %2746 = vmatpush1.msra.mxu0 0.0
  %2747 = vmatprep.subr.mxu0 0.0
  %2748 = vmatpush1.msra.mxu0 0.0
  %2749 = vmatprep.subr.mxu0 0.0
  %2750 = vmatpush1.msra.mxu0 0.0
  %2751 = vmatprep.subr.mxu0 0.0
  %2752 = vmatpush1.msra.mxu0 0.0
  %2753 = vmatprep.subr.mxu0 0.0
  %2754 = vmatpush1.msra.mxu0 0.0
  %2755 = vmatprep.subr.mxu0 0.0
  %2756 = vmatpush1.msra.mxu0 0.0
  %2757 = vmatprep.subr.mxu0 0.0
  %2758 = vmatpush1.msra.mxu0 0.0
  %2759 = vmatprep.subr.mxu0 0.0
  %2760 = vmatpush1.msra.mxu0 0.0
  %2761 = vmatprep.subr.mxu0 0.0
  %2762 = vmatpush1.msra.mxu0 0.0
  %2763 = vmatprep.subr.mxu0 0.0
  %2764 = vmatpush1.msra.mxu0 0.0
  %2765 = vmatprep.subr.mxu0 0.0
  %2766 = vmatpush1.msra.mxu0 0.0
  %2767 = vmatprep.subr.mxu0 0.0
  %2768 = vmatpush1.msra.mxu0 0.0
  %2769 = vmatprep.subr.mxu0 0.0
  %2770 = vmatpush1.msra.mxu0 0.0
  %2771 = vmatprep.subr.mxu0 0.0
  %2772 = vmatpush1.msra.mxu0 0.0
  %2773 = vmatprep.subr.mxu0 0.0
  %2774 = vmatpush1.msra.mxu0 0.0
  %2775 = vmatprep.subr.mxu0 0.0
  %2776 = vmatpush1.msra.mxu0 0.0
  %2777 = vmatprep.mubr.f32.mxu0 0.0
  %2778 = vmatmul.mubr.f32.gmra.mrb[0].mxu0 %v2711
  %v2779 = vpop.f32.mrb[0].mxu0
  %v2780 = vadd.f32 %v2707, %v2779
  %v2781 = vpop.f32.mrb[0].mxu0
  %2782 = vdwg.mxu0
  %s2783 = scalar_lea.vmem %s5, 128
  %v2784 = vld [vmem:[%s2783] sm:$0xff]
  %v2785 = vld [vmem:[%s2783 + $0x8] sm:$0xff]
  %v2786 = vld [vmem:[%s2783 + $0x10] sm:$0xff]
  %v2787 = vld [vmem:[%s2783 + $0x18] sm:$0xff]
  %v2788 = vld [vmem:[%s2783 + $0x20] sm:$0xff]
  %v2789 = vld [vmem:[%s2783 + $0x28] sm:$0xff]
  %v2790 = vld [vmem:[%s2783 + $0x30] sm:$0xff]
  %v2791 = vld [vmem:[%s2783 + $0x38] sm:$0xff]
  %v2793 = vsel %vm2636, %v2617, 0
  %2795 = vmatprep.subr.mxu0 0.0
  %2796 = vmatpush1.msra.mxu0 %v2784
  %2797 = vmatprep.subr.mxu0 0.0
  %2798 = vmatpush1.msra.mxu0 %v2785
  %2799 = vmatprep.subr.mxu0 0.0
  %2800 = vmatpush1.msra.mxu0 %v2786
  %2801 = vmatprep.subr.mxu0 0.0
  %2802 = vmatpush1.msra.mxu0 %v2787
  %2803 = vmatprep.subr.mxu0 0.0
  %2804 = vmatpush1.msra.mxu0 %v2788
  %2805 = vmatprep.subr.mxu0 0.0
  %2806 = vmatpush1.msra.mxu0 %v2789
  %2807 = vmatprep.subr.mxu0 0.0
  %2808 = vmatpush1.msra.mxu0 %v2790
  %2809 = vmatprep.subr.mxu0 0.0
  %2810 = vmatpush1.msra.mxu0 %v2791
  %2811 = vmatprep.subr.mxu0 0.0
  %2812 = vmatpush1.msra.mxu0 0.0
  %2813 = vmatprep.subr.mxu0 0.0
  %2814 = vmatpush1.msra.mxu0 0.0
  %2815 = vmatprep.subr.mxu0 0.0
  %2816 = vmatpush1.msra.mxu0 0.0
  %2817 = vmatprep.subr.mxu0 0.0
  %2818 = vmatpush1.msra.mxu0 0.0
  %2819 = vmatprep.subr.mxu0 0.0
  %2820 = vmatpush1.msra.mxu0 0.0
  %2821 = vmatprep.subr.mxu0 0.0
  %2822 = vmatpush1.msra.mxu0 0.0
  %2823 = vmatprep.subr.mxu0 0.0
  %2824 = vmatpush1.msra.mxu0 0.0
  %2825 = vmatprep.subr.mxu0 0.0
  %2826 = vmatpush1.msra.mxu0 0.0
  %2827 = vmatprep.subr.mxu0 0.0
  %2828 = vmatpush1.msra.mxu0 0.0
  %2829 = vmatprep.subr.mxu0 0.0
  %2830 = vmatpush1.msra.mxu0 0.0
  %2831 = vmatprep.subr.mxu0 0.0
  %2832 = vmatpush1.msra.mxu0 0.0
  %2833 = vmatprep.subr.mxu0 0.0
  %2834 = vmatpush1.msra.mxu0 0.0
  %2835 = vmatprep.subr.mxu0 0.0
  %2836 = vmatpush1.msra.mxu0 0.0
  %2837 = vmatprep.subr.mxu0 0.0
  %2838 = vmatpush1.msra.mxu0 0.0
  %2839 = vmatprep.subr.mxu0 0.0
  %2840 = vmatpush1.msra.mxu0 0.0
  %2841 = vmatprep.subr.mxu0 0.0
  %2842 = vmatpush1.msra.mxu0 0.0
  %2843 = vmatprep.subr.mxu0 0.0
  %2844 = vmatpush1.msra.mxu0 0.0
  %2845 = vmatprep.subr.mxu0 0.0
  %2846 = vmatpush1.msra.mxu0 0.0
  %2847 = vmatprep.subr.mxu0 0.0
  %2848 = vmatpush1.msra.mxu0 0.0
  %2849 = vmatprep.subr.mxu0 0.0
  %2850 = vmatpush1.msra.mxu0 0.0
  %2851 = vmatprep.subr.mxu0 0.0
  %2852 = vmatpush1.msra.mxu0 0.0
  %2853 = vmatprep.subr.mxu0 0.0
  %2854 = vmatpush1.msra.mxu0 0.0
  %2855 = vmatprep.subr.mxu0 0.0
  %2856 = vmatpush1.msra.mxu0 0.0
  %2857 = vmatprep.subr.mxu0 0.0
  %2858 = vmatpush1.msra.mxu0 0.0
  %2859 = vmatprep.mubr.f32.mxu0 0.0
  %2860 = vmatmul.mubr.f32.gmra.mrb[0].mxu0 %v2793
  %v2861 = vpop.f32.mrb[0].mxu0
  %v2862 = vadd.f32 0.0, %v2861
  %v2863 = vpop.f32.mrb[0].mxu0
  %2864 = vdwg.mxu0
  %v2865 = vadd.f32 %v2780, %v2862
  %s2866 = scalar_lea.vmem %s5, 192
  %v2867 = vld [vmem:[%s2866] sm:$0xff]
  %v2868 = vld [vmem:[%s2866 + $0x8] sm:$0xff]
  %v2869 = vld [vmem:[%s2866 + $0x10] sm:$0xff]
  %v2870 = vld [vmem:[%s2866 + $0x18] sm:$0xff]
  %v2871 = vld [vmem:[%s2866 + $0x20] sm:$0xff]
  %v2872 = vld [vmem:[%s2866 + $0x28] sm:$0xff]
  %v2873 = vld [vmem:[%s2866 + $0x30] sm:$0xff]
  %v2874 = vld [vmem:[%s2866 + $0x38] sm:$0xff]
  %v2876 = vsel %vm2636, %v2618, 0
  %2878 = vmatprep.subr.mxu0 0.0
  %2879 = vmatpush1.msra.mxu0 %v2867
  %2880 = vmatprep.subr.mxu0 0.0
  %2881 = vmatpush1.msra.mxu0 %v2868
  %2882 = vmatprep.subr.mxu0 0.0
  %2883 = vmatpush1.msra.mxu0 %v2869
  %2884 = vmatprep.subr.mxu0 0.0
  %2885 = vmatpush1.msra.mxu0 %v2870
  %2886 = vmatprep.subr.mxu0 0.0
  %2887 = vmatpush1.msra.mxu0 %v2871
  %2888 = vmatprep.subr.mxu0 0.0
  %2889 = vmatpush1.msra.mxu0 %v2872
  %2890 = vmatprep.subr.mxu0 0.0
  %2891 = vmatpush1.msra.mxu0 %v2873
  %2892 = vmatprep.subr.mxu0 0.0
  %2893 = vmatpush1.msra.mxu0 %v2874
  %2894 = vmatprep.subr.mxu0 0.0
  %2895 = vmatpush1.msra.mxu0 0.0
  %2896 = vmatprep.subr.mxu0 0.0
  %2897 = vmatpush1.msra.mxu0 0.0
  %2898 = vmatprep.subr.mxu0 0.0
  %2899 = vmatpush1.msra.mxu0 0.0
  %2900 = vmatprep.subr.mxu0 0.0
  %2901 = vmatpush1.msra.mxu0 0.0
  %2902 = vmatprep.subr.mxu0 0.0
  %2903 = vmatpush1.msra.mxu0 0.0
  %2904 = vmatprep.subr.mxu0 0.0
  %2905 = vmatpush1.msra.mxu0 0.0
  %2906 = vmatprep.subr.mxu0 0.0
  %2907 = vmatpush1.msra.mxu0 0.0
  %2908 = vmatprep.subr.mxu0 0.0
  %2909 = vmatpush1.msra.mxu0 0.0
  %2910 = vmatprep.subr.mxu0 0.0
  %2911 = vmatpush1.msra.mxu0 0.0
  %2912 = vmatprep.subr.mxu0 0.0
  %2913 = vmatpush1.msra.mxu0 0.0
  %2914 = vmatprep.subr.mxu0 0.0
  %2915 = vmatpush1.msra.mxu0 0.0
  %2916 = vmatprep.subr.mxu0 0.0
  %2917 = vmatpush1.msra.mxu0 0.0
  %2918 = vmatprep.subr.mxu0 0.0
  %2919 = vmatpush1.msra.mxu0 0.0
  %2920 = vmatprep.subr.mxu0 0.0
  %2921 = vmatpush1.msra.mxu0 0.0
  %2922 = vmatprep.subr.mxu0 0.0
  %2923 = vmatpush1.msra.mxu0 0.0
  %2924 = vmatprep.subr.mxu0 0.0
  %2925 = vmatpush1.msra.mxu0 0.0
  %2926 = vmatprep.subr.mxu0 0.0
  %2927 = vmatpush1.msra.mxu0 0.0
  %2928 = vmatprep.subr.mxu0 0.0
  %2929 = vmatpush1.msra.mxu0 0.0
  %2930 = vmatprep.subr.mxu0 0.0
  %2931 = vmatpush1.msra.mxu0 0.0
  %2932 = vmatprep.subr.mxu0 0.0
  %2933 = vmatpush1.msra.mxu0 0.0
  %2934 = vmatprep.subr.mxu0 0.0
  %2935 = vmatpush1.msra.mxu0 0.0
  %2936 = vmatprep.subr.mxu0 0.0
  %2937 = vmatpush1.msra.mxu0 0.0
  %2938 = vmatprep.subr.mxu0 0.0
  %2939 = vmatpush1.msra.mxu0 0.0
  %2940 = vmatprep.subr.mxu0 0.0
  %2941 = vmatpush1.msra.mxu0 0.0
  %2942 = vmatprep.mubr.f32.mxu0 0.0
  %2943 = vmatmul.mubr.f32.gmra.mrb[0].mxu0 %v2876
  %v2944 = vpop.f32.mrb[0].mxu0
  %v2945 = vadd.f32 0.0, %v2944
  %v2946 = vpop.f32.mrb[0].mxu0
  %2947 = vdwg.mxu0
  %v2948 = vadd.f32 %v2865, %v2945
  %v2949 = vld [vmem:[%s6] sm:$0x1]
  %v2951 = vlaneseq
  %v2952 = vshrl.u32 %v2951, 7
  %v2953 = vsub.s32 0, %v2952
  %v2954 = vrot.slane %v2949, %v2953
  %v2956 = vadd.f32 %v2948, %v2954
  %v2957 = vmax.f32 %v2956, 0.0
  %v2958 = vld [vmem:[%s7] sm:$0xff]
  %v2959 = vld [vmem:[%s7 + $0x8] sm:$0xff]
  %v2960 = vld [vmem:[%s7 + $0x10] sm:$0xff]
  %v2961 = vld [vmem:[%s7 + $0x18] sm:$0xff]
  %v2962 = vld [vmem:[%s7 + $0x20] sm:$0xff]
  %v2963 = vld [vmem:[%s7 + $0x28] sm:$0xff]
  %v2964 = vld [vmem:[%s7 + $0x30] sm:$0xff]
  %v2965 = vld [vmem:[%s7 + $0x38] sm:$0xff]
  %v2966 = vld [vmem:[%s8] sm:$0x1]
  %v2968 = vlaneseq
  %v2969 = vshrl.u32 %v2968, 7
  %v2970 = vsub.s32 0, %v2969
  %v2971 = vrot.slane %v2966, %v2970
  %v2974 = vsel %vm2636, %v2957, 0
  %2976 = vmatprep.subr.mxu0 0.0
  %2977 = vmatpush1.msra.mxu0 %v2958
  %2978 = vmatprep.subr.mxu0 0.0
  %2979 = vmatpush1.msra.mxu0 %v2959
  %2980 = vmatprep.subr.mxu0 0.0
  %2981 = vmatpush1.msra.mxu0 %v2960
  %2982 = vmatprep.subr.mxu0 0.0
  %2983 = vmatpush1.msra.mxu0 %v2961
  %2984 = vmatprep.subr.mxu0 0.0
  %2985 = vmatpush1.msra.mxu0 %v2962
  %2986 = vmatprep.subr.mxu0 0.0
  %2987 = vmatpush1.msra.mxu0 %v2963
  %2988 = vmatprep.subr.mxu0 0.0
  %2989 = vmatpush1.msra.mxu0 %v2964
  %2990 = vmatprep.subr.mxu0 0.0
  %2991 = vmatpush1.msra.mxu0 %v2965
  %2992 = vmatprep.subr.mxu0 0.0
  %2993 = vmatpush1.msra.mxu0 0.0
  %2994 = vmatprep.subr.mxu0 0.0
  %2995 = vmatpush1.msra.mxu0 0.0
  %2996 = vmatprep.subr.mxu0 0.0
  %2997 = vmatpush1.msra.mxu0 0.0
  %2998 = vmatprep.subr.mxu0 0.0
  %2999 = vmatpush1.msra.mxu0 0.0
  %3000 = vmatprep.subr.mxu0 0.0
  %3001 = vmatpush1.msra.mxu0 0.0
  %3002 = vmatprep.subr.mxu0 0.0
  %3003 = vmatpush1.msra.mxu0 0.0
  %3004 = vmatprep.subr.mxu0 0.0
  %3005 = vmatpush1.msra.mxu0 0.0
  %3006 = vmatprep.subr.mxu0 0.0
  %3007 = vmatpush1.msra.mxu0 0.0
  %3008 = vmatprep.subr.mxu0 0.0
  %3009 = vmatpush1.msra.mxu0 0.0
  %3010 = vmatprep.subr.mxu0 0.0
  %3011 = vmatpush1.msra.mxu0 0.0
  %3012 = vmatprep.subr.mxu0 0.0
  %3013 = vmatpush1.msra.mxu0 0.0
  %3014 = vmatprep.subr.mxu0 0.0
  %3015 = vmatpush1.msra.mxu0 0.0
  %3016 = vmatprep.subr.mxu0 0.0
  %3017 = vmatpush1.msra.mxu0 0.0
  %3018 = vmatprep.subr.mxu0 0.0
  %3019 = vmatpush1.msra.mxu0 0.0
  %3020 = vmatprep.subr.mxu0 0.0
  %3021 = vmatpush1.msra.mxu0 0.0
  %3022 = vmatprep.subr.mxu0 0.0
  %3023 = vmatpush1.msra.mxu0 0.0
  %3024 = vmatprep.subr.mxu0 0.0
  %3025 = vmatpush1.msra.mxu0 0.0
  %3026 = vmatprep.subr.mxu0 0.0
  %3027 = vmatpush1.msra.mxu0 0.0
  %3028 = vmatprep.subr.mxu0 0.0
  %3029 = vmatpush1.msra.mxu0 0.0
  %3030 = vmatprep.subr.mxu0 0.0
  %3031 = vmatpush1.msra.mxu0 0.0
  %3032 = vmatprep.subr.mxu0 0.0
  %3033 = vmatpush1.msra.mxu0 0.0
  %3034 = vmatprep.subr.mxu0 0.0
  %3035 = vmatpush1.msra.mxu0 0.0
  %3036 = vmatprep.subr.mxu0 0.0
  %3037 = vmatpush1.msra.mxu0 0.0
  %3038 = vmatprep.subr.mxu0 0.0
  %3039 = vmatpush1.msra.mxu0 0.0
  %3040 = vmatprep.mubr.f32.mxu0 0.0
  %3041 = vmatmul.mubr.f32.gmra.mrb[0].mxu0 %v2974
  %v3042 = vpop.f32.mrb[0].mxu0
  %v3043 = vadd.f32 %v2971, %v3042
  %v3044 = vpop.f32.mrb[0].mxu0
  %3045 = vdwg.mxu0
  %vm3046 = vcmask 80896
  %v3047 = vsel %vm3046, %v3043, -inf
  %3048 = vmax.xlane.f32.xlu0 %v3047
  %v3049 = vpop.xlane.xlu0 %3048
  %v3050 = vsub.f32 %v3043, %v3049
  %v3051 = vmul.f32 %v3050, 1.442695
  %v3052 = vpow.pop %v3051
  %v3053 = vsel %vm3046, %v3052, 0.0
  %3054 = vadd.xlane.f32.xlu0 %v3053
  %v3055 = vpop.xlane.xlu0 %3054
  %v3056 = vlog2.pop %v3055
  %v3057 = vmul.f32 %v3056, 0.6931472
  %v3058 = vsub.f32 %v3050, %v3057
  %3059 = vst.msk [vmem:[%s9] sm:$0xff] %vm3046, %v3058
  // Predicated region
  $region38: #{net_forward.1} parent=0 // pred_check
    _
  $region39: #{net_forward.1} parent=0 // pred_check_branch
    %3061 = sbr.rel (0) target = $region41
  $region40: #{net_forward.1} parent=0 // pred_region
    _
  $region41: #{net_forward.1} parent=0 // pred_fallthru
    _
  // Predicated region
  $region42: #{net_forward.1} parent=0 // pred_check
    _
  $region43: #{net_forward.1} parent=0 // pred_check_branch
    %3063 = sbr.rel (0) target = $region45
  $region44: #{net_forward.1} parent=0 // pred_region
    _
  $region45: #{net_forward.1} parent=0 // pred_fallthru
    _

</llo_original>
